<compile_context>
chip_gen: v5e
topology: v5e:2x2
jax: 0.10.0
libtpu: 0.0.40
codegen_flags: <defaults>
</compile_context>

<pallas_src>
import math
import functools

import jax
import jax.numpy as jnp
from jax import lax
from jax.experimental import pallas as pl
from jax.experimental.pallas import tpu as pltpu


_NEG_INF = -1000000000.0   # matches torch masked_fill(-1e9)


# ---------------------------------------------------------------------------
# Kernel
# ---------------------------------------------------------------------------
def _mha_body(q_ref, k_ref, v_ref, kb_ref, wq_ref, wk_ref, wv_ref,
              bq_ref, bk_ref, bv_ref, out_ref, q_sc, k_sc, v_sc,
              *, tb, h, lq, lk, dk, dv, unroll, approx):
    """q_ref: [tb*lq, Dm]; k_ref/v_ref: [tb*lk, Dm]; weights [Dm, h*d];
    biases [1, h*d] (f32); kb_ref: [tb, 1, lk] additive key bias or None;
    out_ref: [tb*lq, h*dv]; q_sc/k_sc/v_sc: VMEM scratch for projections."""
    f32 = jnp.float32
    cdt = q_sc.dtype   # compute dtype for the attention matmuls (f32 or bf16)

    # Fused projections for the whole batch tile: [tb*L, Dm] @ [Dm, h*d] — one
    # well-shaped MXU matmul each. 1/sqrt(d_k) is already folded into wq/bq.
    q_sc[...] = (jnp.dot(q_ref[...], wq_ref[...], preferred_element_type=f32)
                 + bq_ref[...]).astype(cdt)
    k_sc[...] = (jnp.dot(k_ref[...], wk_ref[...], preferred_element_type=f32)
                 + bk_ref[...]).astype(cdt)
    v_sc[...] = (jnp.dot(v_ref[...], wv_ref[...], preferred_element_type=f32)
                 + bv_ref[...]).astype(cdt)

    def per_batch(b):
        if isinstance(b, int):
            qoff, koff = b * lq, b * lk
        else:
            qoff = pl.multiple_of(b * lq, 8)
            koff = pl.multiple_of(b * lk, 8)
        qb = q_sc[pl.ds(qoff, lq), :]                        # [lq, h*dk]
        kb = k_sc[pl.ds(koff, lk), :]                        # [lk, h*dk]
        vb = v_sc[pl.ds(koff, lk), :]                        # [lk, h*dv]
        if kb_ref is not None:
            bias_b = kb_ref[b].reshape(1, lk)                # [1, lk], f32
        outs = []
        # TODO(synk): for long sequences (Lk >~ 512) replace the full [lq, lk]
        # score matrix with a key-block online-softmax (flash-style) loop.
        for hh in range(h):
            qh = qb[:, hh * dk:(hh + 1) * dk]                # [lq, dk]
            kh = kb[:, hh * dk:(hh + 1) * dk]                # [lk, dk]
            vh = vb[:, hh * dv:(hh + 1) * dv]                # [lk, dv]
            # scores: contract d_k axes directly (no transpose materialized).
            s = lax.dot_general(qh, kh, (((1,), (1,)), ((), ())),
                                preferred_element_type=f32)  # [lq, lk]
            if kb_ref is not None:
                s = s + bias_b                               # broadcast over lq
            m = jnp.max(s, axis=-1, keepdims=True)
            e = jnp.exp(s - m)
            den = jnp.sum(e, axis=-1, keepdims=True)
            if approx:
                alpha = (e * pl.reciprocal(den, approx=True)).astype(cdt)
            else:
                alpha = (e / den).astype(cdt)
            outs.append(jnp.dot(alpha, vh, preferred_element_type=f32))
        # Heads concatenated along lanes -> single lane-dense (h*dv-wide) store.
        out_ref[pl.ds(qoff, lq), :] = (
            jnp.concatenate(outs, axis=-1).astype(out_ref.dtype))

    if tb <= unroll:
        for b in range(tb):            # static unroll for small batch tiles
            per_batch(b)
    else:
        def loop_body(b, carry):       # bounded live ranges for large tiles
            per_batch(b)
            return carry
        lax.fori_loop(0, tb, loop_body, 0)


def _mha_kernel_nomask(q_ref, k_ref, v_ref, wq_ref, wk_ref, wv_ref,
                       bq_ref, bk_ref, bv_ref, out_ref, q_sc, k_sc, v_sc, **kw):
    _mha_body(q_ref, k_ref, v_ref, None, wq_ref, wk_ref, wv_ref,
              bq_ref, bk_ref, bv_ref, out_ref, q_sc, k_sc, v_sc, **kw)


def _mha_kernel_masked(q_ref, k_ref, v_ref, kb_ref, wq_ref, wk_ref, wv_ref,
                       bq_ref, bk_ref, bv_ref, out_ref, q_sc, k_sc, v_sc, **kw):
    _mha_body(q_ref, k_ref, v_ref, kb_ref, wq_ref, wk_ref, wv_ref,
              bq_ref, bk_ref, bv_ref, out_ref, q_sc, k_sc, v_sc, **kw)


# ---------------------------------------------------------------------------
# Tile-size selection helpers
# ---------------------------------------------------------------------------
def _vmem_capacity_bytes():
    try:
        return int(pltpu.get_tpu_info().vmem_capacity_bytes)
    except Exception:
        return 64 * 1024 * 1024   # conservative: v7x per-TensorCore VMEM


def _tile_vmem_bytes(tb, lq, lk, dm, h, dk, dv, act_bytes, w_bytes, masked):
    rows_q, rows_k = tb * lq, tb * lk
    dbl = 2   # streamed tiles are double-buffered by the Pallas pipeline
    total = dbl * (rows_q * dm + 2 * rows_k * dm) * act_bytes           # Q,K,V
    total += dbl * rows_q * (h * dv) * act_bytes                        # output
    if masked:
        total += dbl * tb * lk * 4                                      # key bias
    total += (dm * h * dk * 2 + dm * h * dv) * w_bytes                  # weights (x1)
    total += (2 * h * dk + h * dv) * 4                                  # biases
    total += (rows_q * h * dk + rows_k * (h * dk + h * dv)) * act_bytes # scratch
    return total


def _pick_tb(B, lq, lk, dm, h, dk, dv, act_bytes, w_bytes, masked,
             vmem_budget, target_rows, max_tb):
    divisors = [d for d in range(1, B + 1) if B % d == 0]
    if max_tb is not None:
        capped = [d for d in divisors if d <= max_tb]
        divisors = capped if capped else [1]
    fits = [d for d in divisors
            if _tile_vmem_bytes(d, lq, lk, dm, h, dk, dv,
                                act_bytes, w_bytes, masked) <= vmem_budget]
    if not fits:
        fits = [min(divisors)]
    reach = [d for d in fits if d * lq >= target_rows]
    tb = min(reach) if reach else max(fits)
    # Keep at least 2 grid steps (both v7x TensorCores busy) when it does not
    # drop the tile below the row target.
    if B // tb < 2:
        alt = [d for d in fits if B // d >= 2]
        if alt:
            best = max(alt)
            if best * lq >= target_rows or not reach:
                tb = best
    return tb


# ---------------------------------------------------------------------------
# Wrapper
# ---------------------------------------------------------------------------
def multi_head_attention(Q, K, V, wq, wk, wv, bq, bk, bv, *,
                         h, d_k, d_v, mask=None, max_block_b=None,
                         target_rows=512, compute_dtype=None,
                         exact_softmax=False):
    """Q: [B, len_q, d_model], K/V: [B, len_k, d_model].
    Weights stored input-major (wq/wk: [d_model, h*d_k], wv: [d_model, h*d_v],
    i.e. torch `weight.T`), biases 1-D. mask: optional [B, len_k] (0 = masked).
    Returns [B, len_q, h*d_v].

    Note (matches the torch reference): rows whose keys are ALL masked get a
    uniform softmax over the -1e9-filled scores, not zeros/NaN."""
    B, Lq, Dm = Q.shape
    Lk = K.shape[1]
    assert K.shape == (B, Lk, Dm) and V.shape == (B, Lk, Dm)
    assert wq.shape == (Dm, h * d_k) and wk.shape == (Dm, h * d_k)
    assert wv.shape == (Dm, h * d_v)

    f32 = jnp.float32

    # Fold the 1/sqrt(d_k) attention scale into the Q projection.
    scale = 1.0 / math.sqrt(float(d_k))
    wq_s = wq * scale
    bq_s = bq * scale

    if compute_dtype is not None:
        Q = Q.astype(compute_dtype)
        K = K.astype(compute_dtype)
        V = V.astype(compute_dtype)
        wq_s = wq_s.astype(compute_dtype)
        wk = wk.astype(compute_dtype)
        wv = wv.astype(compute_dtype)

    # Pad sequence lengths to multiples of 8 (sublane rule) instead of falling
    # back to a single giant batch tile. Padded keys are masked out below;
    # padded query rows are sliced off at the end.
    Lq_p = -(-Lq // 8) * 8
    Lk_p = -(-Lk // 8) * 8
    if Lq_p != Lq:
        Q = jnp.pad(Q, ((0, 0), (0, Lq_p - Lq), (0, 0)))
    if Lk_p != Lk:
        K = jnp.pad(K, ((0, 0), (0, Lk_p - Lk), (0, 0)))
        V = jnp.pad(V, ((0, 0), (0, Lk_p - Lk), (0, 0)))

    masked = (mask is not None) or (Lk_p != Lk)
    kbias = None
    if masked:
        valid = jnp.ones((B, Lk), dtype=bool) if mask is None else (mask != 0)
        # Tiny [B, 1, Lk] additive key bias (0 valid / -1e9 masked); the
        # broadcast over the query axis happens inside the kernel.
        kbias = jnp.where(valid, 0.0, _NEG_INF).astype(f32)
        if Lk_p != Lk:
            kbias = jnp.pad(kbias, ((0, 0), (0, Lk_p - Lk)),
                            constant_values=_NEG_INF)
        kbias = kbias.reshape(B, 1, Lk_p)

    # Flatten (batch, seq) so every tile is a lane-dense 2-D slab. Keep h*d_v a
    # multiple of 128 upstream so output stores stay unmasked vst.
    Qf = Q.reshape(B * Lq_p, Dm)
    Kf = K.reshape(B * Lk_p, Dm)
    Vf = V.reshape(B * Lk_p, Dm)
    bq2 = bq_s.reshape(1, h * d_k).astype(f32)
    bk2 = bk.reshape(1, h * d_k).astype(f32)
    bv2 = bv.reshape(1, h * d_v).astype(f32)

    act_bytes = jnp.dtype(Qf.dtype).itemsize
    w_bytes = jnp.dtype(wq_s.dtype).itemsize

    # Explicit VMEM budget, re-derived per generation (v7x: 64 MiB physical).
    vmem_cap = _vmem_capacity_bytes()
    vmem_limit = min(int(vmem_cap * 0.75), 96 * 1024 * 1024)
    vmem_budget = vmem_limit - 2 * 1024 * 1024

    tb = _pick_tb(B, Lq_p, Lk_p, Dm, h, d_k, d_v, act_bytes, w_bytes, masked,
                  vmem_budget, target_rows, max_block_b)
    grid = (B // tb,)

    out_dtype = Qf.dtype
    kw_static = dict(tb=tb, h=h, lq=Lq_p, lk=Lk_p, dk=d_k, dv=d_v,
                     unroll=8, approx=not exact_softmax)

    def build_and_run(single_buffer_weights):
        # Constant-index resident parameters: single-buffer them (they never
        # change across the grid, double-buffering just doubles VMEM cost).
        w_kw = dict(pipeline_mode=pl.Buffered(1)) if single_buffer_weights else {}
        row_specs = [
            pl.BlockSpec((tb * Lq_p, Dm), lambda i: (i, 0)),   # Q rows
            pl.BlockSpec((tb * Lk_p, Dm), lambda i: (i, 0)),   # K rows
            pl.BlockSpec((tb * Lk_p, Dm), lambda i: (i, 0)),   # V rows
        ]
        weight_specs = [
            pl.BlockSpec((Dm, h * d_k), lambda i: (0, 0), **w_kw),   # W_Q
            pl.BlockSpec((Dm, h * d_k), lambda i: (0, 0), **w_kw),   # W_K
            pl.BlockSpec((Dm, h * d_v), lambda i: (0, 0), **w_kw),   # W_V
            pl.BlockSpec((1, h * d_k), lambda i: (0, 0), **w_kw),    # b_Q
            pl.BlockSpec((1, h * d_k), lambda i: (0, 0), **w_kw),    # b_K
            pl.BlockSpec((1, h * d_v), lambda i: (0, 0), **w_kw),    # b_V
        ]
        # TODO(synk): for large d_model, add a reduction grid axis over Dm (or
        # quantize resident weights: bf16/int8 on v5e/v6e, fp8 on v7x) instead
        # of keeping three full-precision copies resident.
        if masked:
            kernel = functools.partial(_mha_kernel_masked, **kw_static)
            in_specs = (row_specs
                        + [pl.BlockSpec((tb, 1, Lk_p), lambda i: (i, 0, 0))]
                        + weight_specs)
            args = (Qf, Kf, Vf, kbias, wq_s, wk, wv, bq2, bk2, bv2)
        else:
            kernel = functools.partial(_mha_kernel_nomask, **kw_static)
            in_specs = row_specs + weight_specs
            args = (Qf, Kf, Vf, wq_s, wk, wv, bq2, bk2, bv2)

        return pl.pallas_call(
            kernel,
            out_shape=jax.ShapeDtypeStruct((B * Lq_p, h * d_v), out_dtype),
            grid_spec=pltpu.PrefetchScalarGridSpec(
                num_scalar_prefetch=0,
                grid=grid,
                in_specs=in_specs,
                out_specs=pl.BlockSpec((tb * Lq_p, h * d_v), lambda i: (i, 0)),
                scratch_shapes=[
                    pltpu.VMEM((tb * Lq_p, h * d_k), Qf.dtype),   # projected Q
                    pltpu.VMEM((tb * Lk_p, h * d_k), Qf.dtype),   # projected K
                    pltpu.VMEM((tb * Lk_p, h * d_v), Qf.dtype),   # projected V
                ],
            ),
            compiler_params=pltpu.CompilerParams(
                dimension_semantics=("parallel",),
                vmem_limit_bytes=vmem_limit),
        )(*args)

    try:
        out = build_and_run(True)
    except Exception:
        # pipeline_mode=pl.Buffered(1) unsupported in this jax version — fall
        # back to default double-buffered weights (correctness unchanged).
        out = build_and_run(False)

    out = out.reshape(B, Lq_p, h * d_v)
    if Lq_p != Lq:
        out = out[:, :Lq, :]
    return out


# ---------------------------------------------------------------------------
# Reference + init helpers
# ---------------------------------------------------------------------------
def _xavier_uniform(key, fan_in, fan_out, dtype=jnp.float32):
    bound = math.sqrt(6.0 / (fan_in + fan_out))
    return jax.random.uniform(key, (fan_in, fan_out), dtype,
                              minval=-bound, maxval=bound)


def _reference(Q, K, V, wq, wk, wv, bq, bk, bv, *, h, d_k, d_v, mask=None):
    B, Lq, Dm = Q.shape
    Lk = K.shape[1]
    q = jnp.einsum("bld,de->ble", Q, wq) + bq
    k = jnp.einsum("bld,de->ble", K, wk) + bk
    v = jnp.einsum("bld,de->ble", V, wv) + bv
    q = q.reshape(B, Lq, h, d_k).transpose(0, 2, 1, 3)
    k = k.reshape(B, Lk, h, d_k).transpose(0, 2, 1, 3)
    v = v.reshape(B, Lk, h, d_v).transpose(0, 2, 1, 3)
    a = jnp.einsum("bhqd,bhkd->bhqk", q, k) / math.sqrt(float(d_k))
    if mask is not None:
        a = jnp.where(mask[:, None, None, :] == 0, _NEG_INF, a)
    alpha = jax.nn.softmax(a, axis=-1)
    o = jnp.einsum("bhqk,bhkd->bhqd", alpha, v)
    return o.transpose(0, 2, 1, 3).reshape(B, Lq, h * d_v)


# ---------------------------------------------------------------------------
# Demo / correctness check
# ---------------------------------------------------------------------------
if __name__ == "__main__":
    # Small TPU-friendly shapes; h*d_k = h*d_v = 128 -> lane-dense tiles.
    B, h = 4, 4
    d_model, len_q, len_k, d_k, d_v = 64, 8, 8, 32, 32

    key = jax.random.PRNGKey(0)
    ks = jax.random.split(key, 10)

    Q = jax.random.normal(ks[0], (B, len_q, d_model), jnp.float32)
    K = jax.random.normal(ks[1], (B, len_k, d_model), jnp.float32)
    V = jax.random.normal(ks[2], (B, len_k, d_model), jnp.float32)

    wq = _xavier_uniform(ks[3], d_model, h * d_k)
    wk = _xavier_uniform(ks[4], d_model, h * d_k)
    wv = _xavier_uniform(ks[5], d_model, h * d_v)
    # Module's initialize() zeroes the biases; use small nonzero biases here so
    # the bias path is numerically exercised.
    bq = 0.1 * jax.random.normal(ks[6], (h * d_k,), jnp.float32)
    bk = 0.1 * jax.random.normal(ks[7], (h * d_k,), jnp.float32)
    bv = 0.1 * jax.random.normal(ks[8], (h * d_v,), jnp.float32)

    # --- f32, no mask ---
    out = multi_head_attention(Q, K, V, wq, wk, wv, bq, bk, bv,
                               h=h, d_k=d_k, d_v=d_v)
    out = jax.block_until_ready(out)
    ref = _reference(Q, K, V, wq, wk, wv, bq, bk, bv, h=h, d_k=d_k, d_v=d_v)
    assert out.shape == (B, len_q, h * d_v)
    # approx-reciprocal softmax -> slightly looser than f32-ulp tolerance.
    assert jnp.allclose(out, ref, atol=1e-2, rtol=1e-2), \
        float(jnp.max(jnp.abs(out - ref)))

    # --- f32, masked (mask passed as [B, len_k], broadcast inside kernel) ---
    mask = (jax.random.uniform(ks[9], (B, len_k)) > 0.3).astype(jnp.int32)
    mask = mask.at[:, 0].set(1)   # guarantee at least one valid key per row
    out_m = multi_head_attention(Q, K, V, wq, wk, wv, bq, bk, bv,
                                 h=h, d_k=d_k, d_v=d_v, mask=mask)
    out_m = jax.block_until_ready(out_m)
    ref_m = _reference(Q, K, V, wq, wk, wv, bq, bk, bv,
                       h=h, d_k=d_k, d_v=d_v, mask=mask)
    assert jnp.allclose(out_m, ref_m, atol=1e-2, rtol=1e-2), \
        float(jnp.max(jnp.abs(out_m - ref_m)))

    # --- bf16 compute path (native MXU bf16 rate; f32 accumulation/softmax) ---
    out_bf = multi_head_attention(Q, K, V, wq, wk, wv, bq, bk, bv,
                                  h=h, d_k=d_k, d_v=d_v, mask=mask,
                                  compute_dtype=jnp.bfloat16)
    out_bf = jax.block_until_ready(out_bf).astype(jnp.float32)
    assert jnp.allclose(out_bf, ref_m, atol=7e-2, rtol=7e-2), \
        float(jnp.max(jnp.abs(out_bf - ref_m)))

    print("KERNEL_OK")
</pallas_src>

<mosaic_0001>
module attributes {stable_mosaic.version = 11 : i64} {
  func.func @_mha_kernel_nomask(%arg0: i32, %arg1: memref<16x64xf32, #tpu.memory_space<vmem>>, %arg2: memref<16x64xf32, #tpu.memory_space<vmem>>, %arg3: memref<16x64xf32, #tpu.memory_space<vmem>>, %arg4: memref<64x128xf32, #tpu.memory_space<vmem>>, %arg5: memref<64x128xf32, #tpu.memory_space<vmem>>, %arg6: memref<64x128xf32, #tpu.memory_space<vmem>>, %arg7: memref<1x128xf32, #tpu.memory_space<vmem>>, %arg8: memref<1x128xf32, #tpu.memory_space<vmem>>, %arg9: memref<1x128xf32, #tpu.memory_space<vmem>>, %arg10: memref<16x128xf32, #tpu.memory_space<vmem>>, %arg11: memref<16x128xf32, #tpu.memory_space<vmem>>, %arg12: memref<16x128xf32, #tpu.memory_space<vmem>>, %arg13: memref<16x128xf32, #tpu.memory_space<vmem>>) attributes {dimension_semantics = [#tpu.dimension_semantics<parallel>], iteration_bounds = array<i64: 2>, scalar_prefetch = 0 : i64, scratch_operands = 3 : i64, tpu.core_type = #tpu.core_type<tc>, window_params = [{transform_indices = @transform_0, window_bounds = array<i64: 16, 64>}, {transform_indices = @transform_1, window_bounds = array<i64: 16, 64>}, {transform_indices = @transform_2, window_bounds = array<i64: 16, 64>}, {pipeline_mode = #tpu.pipeline_mode<synchronous>, transform_indices = @transform_3, window_bounds = array<i64: 64, 128>}, {pipeline_mode = #tpu.pipeline_mode<synchronous>, transform_indices = @transform_4, window_bounds = array<i64: 64, 128>}, {pipeline_mode = #tpu.pipeline_mode<synchronous>, transform_indices = @transform_5, window_bounds = array<i64: 64, 128>}, {pipeline_mode = #tpu.pipeline_mode<synchronous>, transform_indices = @transform_6, window_bounds = array<i64: 1, 128>}, {pipeline_mode = #tpu.pipeline_mode<synchronous>, transform_indices = @transform_7, window_bounds = array<i64: 1, 128>}, {pipeline_mode = #tpu.pipeline_mode<synchronous>, transform_indices = @transform_8, window_bounds = array<i64: 1, 128>}, {transform_indices = @transform_9, window_bounds = array<i64: 16, 128>}]} {
    %c0 = arith.constant 0 : index
    %c0_0 = arith.constant 0 : index
    %0 = vector.load %arg1[%c0, %c0_0] : memref<16x64xf32, #tpu.memory_space<vmem>>, vector<16x64xf32>
    %c0_1 = arith.constant 0 : index
    %c0_2 = arith.constant 0 : index
    %1 = vector.load %arg4[%c0_1, %c0_2] : memref<64x128xf32, #tpu.memory_space<vmem>>, vector<64x128xf32>
    %cst = arith.constant dense<0.000000e+00> : vector<16x128xf32>
    %2 = tpu.matmul %0, %1, %cst {dimension_numbers = #tpu.dot_dimension_numbers<[1], [0], [0], [1], [0, 0, 1, 1], [], []>} : vector<16x64xf32>, vector<64x128xf32>, vector<16x128xf32> -> vector<16x128xf32>
    %c0_3 = arith.constant 0 : index
    %c0_4 = arith.constant 0 : index
    %3 = vector.load %arg7[%c0_3, %c0_4] : memref<1x128xf32, #tpu.memory_space<vmem>>, vector<1x128xf32>
    %4 = vector.broadcast %3 : vector<1x128xf32> to vector<16x128xf32>
    %5 = arith.addf %2, %4 : vector<16x128xf32>
    %c0_5 = arith.constant 0 : index
    %c0_6 = arith.constant 0 : index
    %6 = vector.load %arg11[%c0_5, %c0_6] : memref<16x128xf32, #tpu.memory_space<vmem>>, vector<16x128xf32>
    tpu.vector_store %arg11[%c0_5, %c0_6], %5 {strides = array<i32>} : memref<16x128xf32, #tpu.memory_space<vmem>>, vector<16x128xf32>,
    %c0_7 = arith.constant 0 : index
    %c0_8 = arith.constant 0 : index
    %7 = vector.load %arg2[%c0_7, %c0_8] : memref<16x64xf32, #tpu.memory_space<vmem>>, vector<16x64xf32>
    %c0_9 = arith.constant 0 : index
    %c0_10 = arith.constant 0 : index
    %8 = vector.load %arg5[%c0_9, %c0_10] : memref<64x128xf32, #tpu.memory_space<vmem>>, vector<64x128xf32>
    %cst_11 = arith.constant dense<0.000000e+00> : vector<16x128xf32>
    %9 = tpu.matmul %7, %8, %cst_11 {dimension_numbers = #tpu.dot_dimension_numbers<[1], [0], [0], [1], [0, 0, 1, 1], [], []>} : vector<16x64xf32>, vector<64x128xf32>, vector<16x128xf32> -> vector<16x128xf32>
    %c0_12 = arith.constant 0 : index
    %c0_13 = arith.constant 0 : index
    %10 = vector.load %arg8[%c0_12, %c0_13] : memref<1x128xf32, #tpu.memory_space<vmem>>, vector<1x128xf32>
    %11 = vector.broadcast %10 : vector<1x128xf32> to vector<16x128xf32>
    %12 = arith.addf %9, %11 : vector<16x128xf32>
    %c0_14 = arith.constant 0 : index
    %c0_15 = arith.constant 0 : index
    %13 = vector.load %arg12[%c0_14, %c0_15] : memref<16x128xf32, #tpu.memory_space<vmem>>, vector<16x128xf32>
    tpu.vector_store %arg12[%c0_14, %c0_15], %12 {strides = array<i32>} : memref<16x128xf32, #tpu.memory_space<vmem>>, vector<16x128xf32>,
    %c0_16 = arith.constant 0 : index
    %c0_17 = arith.constant 0 : index
    %14 = vector.load %arg3[%c0_16, %c0_17] : memref<16x64xf32, #tpu.memory_space<vmem>>, vector<16x64xf32>
    %c0_18 = arith.constant 0 : index
    %c0_19 = arith.constant 0 : index
    %15 = vector.load %arg6[%c0_18, %c0_19] : memref<64x128xf32, #tpu.memory_space<vmem>>, vector<64x128xf32>
    %cst_20 = arith.constant dense<0.000000e+00> : vector<16x128xf32>
    %16 = tpu.matmul %14, %15, %cst_20 {dimension_numbers = #tpu.dot_dimension_numbers<[1], [0], [0], [1], [0, 0, 1, 1], [], []>} : vector<16x64xf32>, vector<64x128xf32>, vector<16x128xf32> -> vector<16x128xf32>
    %c0_21 = arith.constant 0 : index
    %c0_22 = arith.constant 0 : index
    %17 = vector.load %arg9[%c0_21, %c0_22] : memref<1x128xf32, #tpu.memory_space<vmem>>, vector<1x128xf32>
    %18 = vector.broadcast %17 : vector<1x128xf32> to vector<16x128xf32>
    %19 = arith.addf %16, %18 : vector<16x128xf32>
    %c0_23 = arith.constant 0 : index
    %c0_24 = arith.constant 0 : index
    %20 = vector.load %arg13[%c0_23, %c0_24] : memref<16x128xf32, #tpu.memory_space<vmem>>, vector<16x128xf32>
    tpu.vector_store %arg13[%c0_23, %c0_24], %19 {strides = array<i32>} : memref<16x128xf32, #tpu.memory_space<vmem>>, vector<16x128xf32>,
    %c0_25 = arith.constant 0 : index
    %c0_26 = arith.constant 0 : index
    %21 = vector.load %arg11[%c0_25, %c0_26] : memref<16x128xf32, #tpu.memory_space<vmem>>, vector<8x128xf32>
    %c0_27 = arith.constant 0 : index
    %c0_28 = arith.constant 0 : index
    %22 = vector.load %arg12[%c0_27, %c0_28] : memref<16x128xf32, #tpu.memory_space<vmem>>, vector<8x128xf32>
    %c0_29 = arith.constant 0 : index
    %c0_30 = arith.constant 0 : index
    %23 = vector.load %arg13[%c0_29, %c0_30] : memref<16x128xf32, #tpu.memory_space<vmem>>, vector<8x128xf32>
    %24 = vector.extract_strided_slice %21 {offsets = [0, 0], sizes = [8, 32], strides = [1, 1]} : vector<8x128xf32> to vector<8x32xf32>
    %25 = vector.extract_strided_slice %22 {offsets = [0, 0], sizes = [8, 32], strides = [1, 1]} : vector<8x128xf32> to vector<8x32xf32>
    %26 = vector.extract_strided_slice %23 {offsets = [0, 0], sizes = [8, 32], strides = [1, 1]} : vector<8x128xf32> to vector<8x32xf32>
    %cst_31 = arith.constant dense<0.000000e+00> : vector<8x8xf32>
    %27 = tpu.matmul %24, %25, %cst_31 {dimension_numbers = #tpu.dot_dimension_numbers<[1], [1], [0], [0], [0, 0, 1, 0], [], []>} : vector<8x32xf32>, vector<8x32xf32>, vector<8x8xf32> -> vector<8x8xf32>
    %cst_32 = arith.constant dense<0xFF800000> : vector<8xf32>
    %28 = vector.multi_reduction <maximumf>, %27, %cst_32 [1] : vector<8x8xf32> to vector<8xf32>
    %29 = vector.shape_cast %28 : vector<8xf32> to vector<8x1xf32>
    %30 = vector.broadcast %29 : vector<8x1xf32> to vector<8x8xf32>
    %31 = arith.subf %27, %30 : vector<8x8xf32>
    %32 = math.exp %31 : vector<8x8xf32>
    %cst_33 = arith.constant dense<0.000000e+00> : vector<8xf32>
    %33 = vector.multi_reduction <add>, %32, %cst_33 [1] : vector<8x8xf32> to vector<8xf32>
    %34 = vector.shape_cast %33 : vector<8xf32> to vector<8x1xf32>
    %35 = tpu.reciprocal %34 {approx = true} : vector<8x1xf32> -> vector<8x1xf32>
    %36 = vector.broadcast %35 : vector<8x1xf32> to vector<8x8xf32>
    %37 = arith.mulf %32, %36 : vector<8x8xf32>
    %cst_34 = arith.constant dense<0.000000e+00> : vector<8x32xf32>
    %38 = tpu.matmul %37, %26, %cst_34 {dimension_numbers = #tpu.dot_dimension_numbers<[1], [0], [0], [1], [0, 0, 1, 1], [], []>} : vector<8x8xf32>, vector<8x32xf32>, vector<8x32xf32> -> vector<8x32xf32>
    %39 = vector.extract_strided_slice %21 {offsets = [0, 32], sizes = [8, 32], strides = [1, 1]} : vector<8x128xf32> to vector<8x32xf32>
    %40 = vector.extract_strided_slice %22 {offsets = [0, 32], sizes = [8, 32], strides = [1, 1]} : vector<8x128xf32> to vector<8x32xf32>
    %41 = vector.extract_strided_slice %23 {offsets = [0, 32], sizes = [8, 32], strides = [1, 1]} : vector<8x128xf32> to vector<8x32xf32>
    %cst_35 = arith.constant dense<0.000000e+00> : vector<8x8xf32>
    %42 = tpu.matmul %39, %40, %cst_35 {dimension_numbers = #tpu.dot_dimension_numbers<[1], [1], [0], [0], [0, 0, 1, 0], [], []>} : vector<8x32xf32>, vector<8x32xf32>, vector<8x8xf32> -> vector<8x8xf32>
    %cst_36 = arith.constant dense<0xFF800000> : vector<8xf32>
    %43 = vector.multi_reduction <maximumf>, %42, %cst_36 [1] : vector<8x8xf32> to vector<8xf32>
    %44 = vector.shape_cast %43 : vector<8xf32> to vector<8x1xf32>
    %45 = vector.broadcast %44 : vector<8x1xf32> to vector<8x8xf32>
    %46 = arith.subf %42, %45 : vector<8x8xf32>
    %47 = math.exp %46 : vector<8x8xf32>
    %cst_37 = arith.constant dense<0.000000e+00> : vector<8xf32>
    %48 = vector.multi_reduction <add>, %47, %cst_37 [1] : vector<8x8xf32> to vector<8xf32>
    %49 = vector.shape_cast %48 : vector<8xf32> to vector<8x1xf32>
    %50 = tpu.reciprocal %49 {approx = true} : vector<8x1xf32> -> vector<8x1xf32>
    %51 = vector.broadcast %50 : vector<8x1xf32> to vector<8x8xf32>
    %52 = arith.mulf %47, %51 : vector<8x8xf32>
    %cst_38 = arith.constant dense<0.000000e+00> : vector<8x32xf32>
    %53 = tpu.matmul %52, %41, %cst_38 {dimension_numbers = #tpu.dot_dimension_numbers<[1], [0], [0], [1], [0, 0, 1, 1], [], []>} : vector<8x8xf32>, vector<8x32xf32>, vector<8x32xf32> -> vector<8x32xf32>
    %54 = vector.extract_strided_slice %21 {offsets = [0, 64], sizes = [8, 32], strides = [1, 1]} : vector<8x128xf32> to vector<8x32xf32>
    %55 = vector.extract_strided_slice %22 {offsets = [0, 64], sizes = [8, 32], strides = [1, 1]} : vector<8x128xf32> to vector<8x32xf32>
    %56 = vector.extract_strided_slice %23 {offsets = [0, 64], sizes = [8, 32], strides = [1, 1]} : vector<8x128xf32> to vector<8x32xf32>
    %cst_39 = arith.constant dense<0.000000e+00> : vector<8x8xf32>
    %57 = tpu.matmul %54, %55, %cst_39 {dimension_numbers = #tpu.dot_dimension_numbers<[1], [1], [0], [0], [0, 0, 1, 0], [], []>} : vector<8x32xf32>, vector<8x32xf32>, vector<8x8xf32> -> vector<8x8xf32>
    %cst_40 = arith.constant dense<0xFF800000> : vector<8xf32>
    %58 = vector.multi_reduction <maximumf>, %57, %cst_40 [1] : vector<8x8xf32> to vector<8xf32>
    %59 = vector.shape_cast %58 : vector<8xf32> to vector<8x1xf32>
    %60 = vector.broadcast %59 : vector<8x1xf32> to vector<8x8xf32>
    %61 = arith.subf %57, %60 : vector<8x8xf32>
    %62 = math.exp %61 : vector<8x8xf32>
    %cst_41 = arith.constant dense<0.000000e+00> : vector<8xf32>
    %63 = vector.multi_reduction <add>, %62, %cst_41 [1] : vector<8x8xf32> to vector<8xf32>
    %64 = vector.shape_cast %63 : vector<8xf32> to vector<8x1xf32>
    %65 = tpu.reciprocal %64 {approx = true} : vector<8x1xf32> -> vector<8x1xf32>
    %66 = vector.broadcast %65 : vector<8x1xf32> to vector<8x8xf32>
    %67 = arith.mulf %62, %66 : vector<8x8xf32>
    %cst_42 = arith.constant dense<0.000000e+00> : vector<8x32xf32>
    %68 = tpu.matmul %67, %56, %cst_42 {dimension_numbers = #tpu.dot_dimension_numbers<[1], [0], [0], [1], [0, 0, 1, 1], [], []>} : vector<8x8xf32>, vector<8x32xf32>, vector<8x32xf32> -> vector<8x32xf32>
    %69 = vector.extract_strided_slice %21 {offsets = [0, 96], sizes = [8, 32], strides = [1, 1]} : vector<8x128xf32> to vector<8x32xf32>
    %70 = vector.extract_strided_slice %22 {offsets = [0, 96], sizes = [8, 32], strides = [1, 1]} : vector<8x128xf32> to vector<8x32xf32>
    %71 = vector.extract_strided_slice %23 {offsets = [0, 96], sizes = [8, 32], strides = [1, 1]} : vector<8x128xf32> to vector<8x32xf32>
    %cst_43 = arith.constant dense<0.000000e+00> : vector<8x8xf32>
    %72 = tpu.matmul %69, %70, %cst_43 {dimension_numbers = #tpu.dot_dimension_numbers<[1], [1], [0], [0], [0, 0, 1, 0], [], []>} : vector<8x32xf32>, vector<8x32xf32>, vector<8x8xf32> -> vector<8x8xf32>
    %cst_44 = arith.constant dense<0xFF800000> : vector<8xf32>
    %73 = vector.multi_reduction <maximumf>, %72, %cst_44 [1] : vector<8x8xf32> to vector<8xf32>
    %74 = vector.shape_cast %73 : vector<8xf32> to vector<8x1xf32>
    %75 = vector.broadcast %74 : vector<8x1xf32> to vector<8x8xf32>
    %76 = arith.subf %72, %75 : vector<8x8xf32>
    %77 = math.exp %76 : vector<8x8xf32>
    %cst_45 = arith.constant dense<0.000000e+00> : vector<8xf32>
    %78 = vector.multi_reduction <add>, %77, %cst_45 [1] : vector<8x8xf32> to vector<8xf32>
    %79 = vector.shape_cast %78 : vector<8xf32> to vector<8x1xf32>
    %80 = tpu.reciprocal %79 {approx = true} : vector<8x1xf32> -> vector<8x1xf32>
    %81 = vector.broadcast %80 : vector<8x1xf32> to vector<8x8xf32>
    %82 = arith.mulf %77, %81 : vector<8x8xf32>
    %cst_46 = arith.constant dense<0.000000e+00> : vector<8x32xf32>
    %83 = tpu.matmul %82, %71, %cst_46 {dimension_numbers = #tpu.dot_dimension_numbers<[1], [0], [0], [1], [0, 0, 1, 1], [], []>} : vector<8x8xf32>, vector<8x32xf32>, vector<8x32xf32> -> vector<8x32xf32>
    %84 = tpu.concatenate %38, %53, %68, %83 in 1 : vector<8x32xf32>, vector<8x32xf32>, vector<8x32xf32>, vector<8x32xf32> -> vector<8x128xf32>
    %c0_47 = arith.constant 0 : index
    %c0_48 = arith.constant 0 : index
    %85 = vector.load %arg10[%c0_47, %c0_48] : memref<16x128xf32, #tpu.memory_space<vmem>>, vector<8x128xf32>
    tpu.vector_store %arg10[%c0_47, %c0_48], %84 {strides = array<i32>} : memref<16x128xf32, #tpu.memory_space<vmem>>, vector<8x128xf32>,
    %c8 = arith.constant 8 : index
    %c0_49 = arith.constant 0 : index
    %86 = vector.load %arg11[%c8, %c0_49] : memref<16x128xf32, #tpu.memory_space<vmem>>, vector<8x128xf32>
    %c8_50 = arith.constant 8 : index
    %c0_51 = arith.constant 0 : index
    %87 = vector.load %arg12[%c8_50, %c0_51] : memref<16x128xf32, #tpu.memory_space<vmem>>, vector<8x128xf32>
    %c8_52 = arith.constant 8 : index
    %c0_53 = arith.constant 0 : index
    %88 = vector.load %arg13[%c8_52, %c0_53] : memref<16x128xf32, #tpu.memory_space<vmem>>, vector<8x128xf32>
    %89 = vector.extract_strided_slice %86 {offsets = [0, 0], sizes = [8, 32], strides = [1, 1]} : vector<8x128xf32> to vector<8x32xf32>
    %90 = vector.extract_strided_slice %87 {offsets = [0, 0], sizes = [8, 32], strides = [1, 1]} : vector<8x128xf32> to vector<8x32xf32>
    %91 = vector.extract_strided_slice %88 {offsets = [0, 0], sizes = [8, 32], strides = [1, 1]} : vector<8x128xf32> to vector<8x32xf32>
    %cst_54 = arith.constant dense<0.000000e+00> : vector<8x8xf32>
    %92 = tpu.matmul %89, %90, %cst_54 {dimension_numbers = #tpu.dot_dimension_numbers<[1], [1], [0], [0], [0, 0, 1, 0], [], []>} : vector<8x32xf32>, vector<8x32xf32>, vector<8x8xf32> -> vector<8x8xf32>
    %cst_55 = arith.constant dense<0xFF800000> : vector<8xf32>
    %93 = vector.multi_reduction <maximumf>, %92, %cst_55 [1] : vector<8x8xf32> to vector<8xf32>
    %94 = vector.shape_cast %93 : vector<8xf32> to vector<8x1xf32>
    %95 = vector.broadcast %94 : vector<8x1xf32> to vector<8x8xf32>
    %96 = arith.subf %92, %95 : vector<8x8xf32>
    %97 = math.exp %96 : vector<8x8xf32>
    %cst_56 = arith.constant dense<0.000000e+00> : vector<8xf32>
    %98 = vector.multi_reduction <add>, %97, %cst_56 [1] : vector<8x8xf32> to vector<8xf32>
    %99 = vector.shape_cast %98 : vector<8xf32> to vector<8x1xf32>
    %100 = tpu.reciprocal %99 {approx = true} : vector<8x1xf32> -> vector<8x1xf32>
    %101 = vector.broadcast %100 : vector<8x1xf32> to vector<8x8xf32>
    %102 = arith.mulf %97, %101 : vector<8x8xf32>
    %cst_57 = arith.constant dense<0.000000e+00> : vector<8x32xf32>
    %103 = tpu.matmul %102, %91, %cst_57 {dimension_numbers = #tpu.dot_dimension_numbers<[1], [0], [0], [1], [0, 0, 1, 1], [], []>} : vector<8x8xf32>, vector<8x32xf32>, vector<8x32xf32> -> vector<8x32xf32>
    %104 = vector.extract_strided_slice %86 {offsets = [0, 32], sizes = [8, 32], strides = [1, 1]} : vector<8x128xf32> to vector<8x32xf32>
    %105 = vector.extract_strided_slice %87 {offsets = [0, 32], sizes = [8, 32], strides = [1, 1]} : vector<8x128xf32> to vector<8x32xf32>
    %106 = vector.extract_strided_slice %88 {offsets = [0, 32], sizes = [8, 32], strides = [1, 1]} : vector<8x128xf32> to vector<8x32xf32>
    %cst_58 = arith.constant dense<0.000000e+00> : vector<8x8xf32>
    %107 = tpu.matmul %104, %105, %cst_58 {dimension_numbers = #tpu.dot_dimension_numbers<[1], [1], [0], [0], [0, 0, 1, 0], [], []>} : vector<8x32xf32>, vector<8x32xf32>, vector<8x8xf32> -> vector<8x8xf32>
    %cst_59 = arith.constant dense<0xFF800000> : vector<8xf32>
    %108 = vector.multi_reduction <maximumf>, %107, %cst_59 [1] : vector<8x8xf32> to vector<8xf32>
    %109 = vector.shape_cast %108 : vector<8xf32> to vector<8x1xf32>
    %110 = vector.broadcast %109 : vector<8x1xf32> to vector<8x8xf32>
    %111 = arith.subf %107, %110 : vector<8x8xf32>
    %112 = math.exp %111 : vector<8x8xf32>
    %cst_60 = arith.constant dense<0.000000e+00> : vector<8xf32>
    %113 = vector.multi_reduction <add>, %112, %cst_60 [1] : vector<8x8xf32> to vector<8xf32>
    %114 = vector.shape_cast %113 : vector<8xf32> to vector<8x1xf32>
    %115 = tpu.reciprocal %114 {approx = true} : vector<8x1xf32> -> vector<8x1xf32>
    %116 = vector.broadcast %115 : vector<8x1xf32> to vector<8x8xf32>
    %117 = arith.mulf %112, %116 : vector<8x8xf32>
    %cst_61 = arith.constant dense<0.000000e+00> : vector<8x32xf32>
    %118 = tpu.matmul %117, %106, %cst_61 {dimension_numbers = #tpu.dot_dimension_numbers<[1], [0], [0], [1], [0, 0, 1, 1], [], []>} : vector<8x8xf32>, vector<8x32xf32>, vector<8x32xf32> -> vector<8x32xf32>
    %119 = vector.extract_strided_slice %86 {offsets = [0, 64], sizes = [8, 32], strides = [1, 1]} : vector<8x128xf32> to vector<8x32xf32>
    %120 = vector.extract_strided_slice %87 {offsets = [0, 64], sizes = [8, 32], strides = [1, 1]} : vector<8x128xf32> to vector<8x32xf32>
    %121 = vector.extract_strided_slice %88 {offsets = [0, 64], sizes = [8, 32], strides = [1, 1]} : vector<8x128xf32> to vector<8x32xf32>
    %cst_62 = arith.constant dense<0.000000e+00> : vector<8x8xf32>
    %122 = tpu.matmul %119, %120, %cst_62 {dimension_numbers = #tpu.dot_dimension_numbers<[1], [1], [0], [0], [0, 0, 1, 0], [], []>} : vector<8x32xf32>, vector<8x32xf32>, vector<8x8xf32> -> vector<8x8xf32>
    %cst_63 = arith.constant dense<0xFF800000> : vector<8xf32>
    %123 = vector.multi_reduction <maximumf>, %122, %cst_63 [1] : vector<8x8xf32> to vector<8xf32>
    %124 = vector.shape_cast %123 : vector<8xf32> to vector<8x1xf32>
    %125 = vector.broadcast %124 : vector<8x1xf32> to vector<8x8xf32>
    %126 = arith.subf %122, %125 : vector<8x8xf32>
    %127 = math.exp %126 : vector<8x8xf32>
    %cst_64 = arith.constant dense<0.000000e+00> : vector<8xf32>
    %128 = vector.multi_reduction <add>, %127, %cst_64 [1] : vector<8x8xf32> to vector<8xf32>
    %129 = vector.shape_cast %128 : vector<8xf32> to vector<8x1xf32>
    %130 = tpu.reciprocal %129 {approx = true} : vector<8x1xf32> -> vector<8x1xf32>
    %131 = vector.broadcast %130 : vector<8x1xf32> to vector<8x8xf32>
    %132 = arith.mulf %127, %131 : vector<8x8xf32>
    %cst_65 = arith.constant dense<0.000000e+00> : vector<8x32xf32>
    %133 = tpu.matmul %132, %121, %cst_65 {dimension_numbers = #tpu.dot_dimension_numbers<[1], [0], [0], [1], [0, 0, 1, 1], [], []>} : vector<8x8xf32>, vector<8x32xf32>, vector<8x32xf32> -> vector<8x32xf32>
    %134 = vector.extract_strided_slice %86 {offsets = [0, 96], sizes = [8, 32], strides = [1, 1]} : vector<8x128xf32> to vector<8x32xf32>
    %135 = vector.extract_strided_slice %87 {offsets = [0, 96], sizes = [8, 32], strides = [1, 1]} : vector<8x128xf32> to vector<8x32xf32>
    %136 = vector.extract_strided_slice %88 {offsets = [0, 96], sizes = [8, 32], strides = [1, 1]} : vector<8x128xf32> to vector<8x32xf32>
    %cst_66 = arith.constant dense<0.000000e+00> : vector<8x8xf32>
    %137 = tpu.matmul %134, %135, %cst_66 {dimension_numbers = #tpu.dot_dimension_numbers<[1], [1], [0], [0], [0, 0, 1, 0], [], []>} : vector<8x32xf32>, vector<8x32xf32>, vector<8x8xf32> -> vector<8x8xf32>
    %cst_67 = arith.constant dense<0xFF800000> : vector<8xf32>
    %138 = vector.multi_reduction <maximumf>, %137, %cst_67 [1] : vector<8x8xf32> to vector<8xf32>
    %139 = vector.shape_cast %138 : vector<8xf32> to vector<8x1xf32>
    %140 = vector.broadcast %139 : vector<8x1xf32> to vector<8x8xf32>
    %141 = arith.subf %137, %140 : vector<8x8xf32>
    %142 = math.exp %141 : vector<8x8xf32>
    %cst_68 = arith.constant dense<0.000000e+00> : vector<8xf32>
    %143 = vector.multi_reduction <add>, %142, %cst_68 [1] : vector<8x8xf32> to vector<8xf32>
    %144 = vector.shape_cast %143 : vector<8xf32> to vector<8x1xf32>
    %145 = tpu.reciprocal %144 {approx = true} : vector<8x1xf32> -> vector<8x1xf32>
    %146 = vector.broadcast %145 : vector<8x1xf32> to vector<8x8xf32>
    %147 = arith.mulf %142, %146 : vector<8x8xf32>
    %cst_69 = arith.constant dense<0.000000e+00> : vector<8x32xf32>
    %148 = tpu.matmul %147, %136, %cst_69 {dimension_numbers = #tpu.dot_dimension_numbers<[1], [0], [0], [1], [0, 0, 1, 1], [], []>} : vector<8x8xf32>, vector<8x32xf32>, vector<8x32xf32> -> vector<8x32xf32>
    %149 = tpu.concatenate %103, %118, %133, %148 in 1 : vector<8x32xf32>, vector<8x32xf32>, vector<8x32xf32>, vector<8x32xf32> -> vector<8x128xf32>
    %c8_70 = arith.constant 8 : index
    %c0_71 = arith.constant 0 : index
    %150 = vector.load %arg10[%c8_70, %c0_71] : memref<16x128xf32, #tpu.memory_space<vmem>>, vector<8x128xf32>
    tpu.vector_store %arg10[%c8_70, %c0_71], %149 {strides = array<i32>} : memref<16x128xf32, #tpu.memory_space<vmem>>, vector<8x128xf32>,
    return
  }
  func.func @transform_0(%arg0: i32) -> (i32, i32) {
    %c0_i32 = arith.constant 0 : i32
    %c0_i32_0 = arith.constant 0 : i32
    return %arg0, %c0_i32 : i32, i32
  }
  func.func @transform_1(%arg0: i32) -> (i32, i32) {
    %c0_i32 = arith.constant 0 : i32
    %c0_i32_0 = arith.constant 0 : i32
    return %arg0, %c0_i32 : i32, i32
  }
  func.func @transform_2(%arg0: i32) -> (i32, i32) {
    %c0_i32 = arith.constant 0 : i32
    %c0_i32_0 = arith.constant 0 : i32
    return %arg0, %c0_i32 : i32, i32
  }
  func.func @transform_3(%arg0: i32) -> (i32, i32) {
    %c0_i32 = arith.constant 0 : i32
    %c0_i32_0 = arith.constant 0 : i32
    %c0_i32_1 = arith.constant 0 : i32
    return %c0_i32, %c0_i32_0 : i32, i32
  }
  func.func @transform_4(%arg0: i32) -> (i32, i32) {
    %c0_i32 = arith.constant 0 : i32
    %c0_i32_0 = arith.constant 0 : i32
    %c0_i32_1 = arith.constant 0 : i32
    return %c0_i32, %c0_i32_0 : i32, i32
  }
  func.func @transform_5(%arg0: i32) -> (i32, i32) {
    %c0_i32 = arith.constant 0 : i32
    %c0_i32_0 = arith.constant 0 : i32
    %c0_i32_1 = arith.constant 0 : i32
    return %c0_i32, %c0_i32_0 : i32, i32
  }
  func.func @transform_6(%arg0: i32) -> (i32, i32) {
    %c0_i32 = arith.constant 0 : i32
    %c0_i32_0 = arith.constant 0 : i32
    %c0_i32_1 = arith.constant 0 : i32
    return %c0_i32, %c0_i32_0 : i32, i32
  }
  func.func @transform_7(%arg0: i32) -> (i32, i32) {
    %c0_i32 = arith.constant 0 : i32
    %c0_i32_0 = arith.constant 0 : i32
    %c0_i32_1 = arith.constant 0 : i32
    return %c0_i32, %c0_i32_0 : i32, i32
  }
  func.func @transform_8(%arg0: i32) -> (i32, i32) {
    %c0_i32 = arith.constant 0 : i32
    %c0_i32_0 = arith.constant 0 : i32
    %c0_i32_1 = arith.constant 0 : i32
    return %c0_i32, %c0_i32_0 : i32, i32
  }
  func.func @transform_9(%arg0: i32) -> (i32, i32) {
    %c0_i32 = arith.constant 0 : i32
    %c0_i32_0 = arith.constant 0 : i32
    return %arg0, %c0_i32 : i32, i32
  }
}

module attributes {stable_mosaic.version = 11 : i64} {
  func.func @_mha_kernel_nomask(%arg0: i32, %arg1: memref<16x64xf32, #tpu.memory_space<vmem>>, %arg2: memref<16x64xf32, #tpu.memory_space<vmem>>, %arg3: memref<16x64xf32, #tpu.memory_space<vmem>>, %arg4: memref<64x128xf32, #tpu.memory_space<vmem>>, %arg5: memref<64x128xf32, #tpu.memory_space<vmem>>, %arg6: memref<64x128xf32, #tpu.memory_space<vmem>>, %arg7: memref<1x128xf32, #tpu.memory_space<vmem>>, %arg8: memref<1x128xf32, #tpu.memory_space<vmem>>, %arg9: memref<1x128xf32, #tpu.memory_space<vmem>>, %arg10: memref<16x128xf32, #tpu.memory_space<vmem>>, %arg11: memref<16x128xf32, #tpu.memory_space<vmem>>, %arg12: memref<16x128xf32, #tpu.memory_space<vmem>>, %arg13: memref<16x128xf32, #tpu.memory_space<vmem>>) attributes {dimension_semantics = [#tpu.dimension_semantics<parallel>], iteration_bounds = array<i64: 2>, scalar_prefetch = 0 : i64, scratch_operands = 3 : i64, tpu.core_type = #tpu.core_type<tc>, window_params = [{transform_indices = @transform_0, window_bounds = array<i64: 16, 64>}, {transform_indices = @transform_1, window_bounds = array<i64: 16, 64>}, {transform_indices = @transform_2, window_bounds = array<i64: 16, 64>}, {pipeline_mode = #tpu.pipeline_mode<synchronous>, transform_indices = @transform_3, window_bounds = array<i64: 64, 128>}, {pipeline_mode = #tpu.pipeline_mode<synchronous>, transform_indices = @transform_4, window_bounds = array<i64: 64, 128>}, {pipeline_mode = #tpu.pipeline_mode<synchronous>, transform_indices = @transform_5, window_bounds = array<i64: 64, 128>}, {pipeline_mode = #tpu.pipeline_mode<synchronous>, transform_indices = @transform_6, window_bounds = array<i64: 1, 128>}, {pipeline_mode = #tpu.pipeline_mode<synchronous>, transform_indices = @transform_7, window_bounds = array<i64: 1, 128>}, {pipeline_mode = #tpu.pipeline_mode<synchronous>, transform_indices = @transform_8, window_bounds = array<i64: 1, 128>}, {transform_indices = @transform_9, window_bounds = array<i64: 16, 128>}]} {
    %c0 = arith.constant 0 : index
    %c0_0 = arith.constant 0 : index
    %0 = vector.load %arg1[%c0, %c0_0] : memref<16x64xf32, #tpu.memory_space<vmem>>, vector<16x64xf32>
    %c0_1 = arith.constant 0 : index
    %c0_2 = arith.constant 0 : index
    %1 = vector.load %arg4[%c0_1, %c0_2] : memref<64x128xf32, #tpu.memory_space<vmem>>, vector<64x128xf32>
    %cst = arith.constant dense<0.000000e+00> : vector<16x128xf32>
    %2 = tpu.matmul %0, %1, %cst {dimension_numbers = #tpu.dot_dimension_numbers<[1], [0], [0], [1], [0, 0, 1, 1], [], []>} : vector<16x64xf32>, vector<64x128xf32>, vector<16x128xf32> -> vector<16x128xf32>
    %c0_3 = arith.constant 0 : index
    %c0_4 = arith.constant 0 : index
    %3 = vector.load %arg7[%c0_3, %c0_4] : memref<1x128xf32, #tpu.memory_space<vmem>>, vector<1x128xf32>
    %4 = vector.broadcast %3 : vector<1x128xf32> to vector<16x128xf32>
    %5 = arith.addf %2, %4 : vector<16x128xf32>
    %c0_5 = arith.constant 0 : index
    %c0_6 = arith.constant 0 : index
    %6 = vector.load %arg11[%c0_5, %c0_6] : memref<16x128xf32, #tpu.memory_space<vmem>>, vector<16x128xf32>
    tpu.vector_store %arg11[%c0_5, %c0_6], %5 {strides = array<i32>} : memref<16x128xf32, #tpu.memory_space<vmem>>, vector<16x128xf32>,
    %c0_7 = arith.constant 0 : index
    %c0_8 = arith.constant 0 : index
    %7 = vector.load %arg2[%c0_7, %c0_8] : memref<16x64xf32, #tpu.memory_space<vmem>>, vector<16x64xf32>
    %c0_9 = arith.constant 0 : index
    %c0_10 = arith.constant 0 : index
    %8 = vector.load %arg5[%c0_9, %c0_10] : memref<64x128xf32, #tpu.memory_space<vmem>>, vector<64x128xf32>
    %cst_11 = arith.constant dense<0.000000e+00> : vector<16x128xf32>
    %9 = tpu.matmul %7, %8, %cst_11 {dimension_numbers = #tpu.dot_dimension_numbers<[1], [0], [0], [1], [0, 0, 1, 1], [], []>} : vector<16x64xf32>, vector<64x128xf32>, vector<16x128xf32> -> vector<16x128xf32>
    %c0_12 = arith.constant 0 : index
    %c0_13 = arith.constant 0 : index
    %10 = vector.load %arg8[%c0_12, %c0_13] : memref<1x128xf32, #tpu.memory_space<vmem>>, vector<1x128xf32>
    %11 = vector.broadcast %10 : vector<1x128xf32> to vector<16x128xf32>
    %12 = arith.addf %9, %11 : vector<16x128xf32>
    %c0_14 = arith.constant 0 : index
    %c0_15 = arith.constant 0 : index
    %13 = vector.load %arg12[%c0_14, %c0_15] : memref<16x128xf32, #tpu.memory_space<vmem>>, vector<16x128xf32>
    tpu.vector_store %arg12[%c0_14, %c0_15], %12 {strides = array<i32>} : memref<16x128xf32, #tpu.memory_space<vmem>>, vector<16x128xf32>,
    %c0_16 = arith.constant 0 : index
    %c0_17 = arith.constant 0 : index
    %14 = vector.load %arg3[%c0_16, %c0_17] : memref<16x64xf32, #tpu.memory_space<vmem>>, vector<16x64xf32>
    %c0_18 = arith.constant 0 : index
    %c0_19 = arith.constant 0 : index
    %15 = vector.load %arg6[%c0_18, %c0_19] : memref<64x128xf32, #tpu.memory_space<vmem>>, vector<64x128xf32>
    %cst_20 = arith.constant dense<0.000000e+00> : vector<16x128xf32>
    %16 = tpu.matmul %14, %15, %cst_20 {dimension_numbers = #tpu.dot_dimension_numbers<[1], [0], [0], [1], [0, 0, 1, 1], [], []>} : vector<16x64xf32>, vector<64x128xf32>, vector<16x128xf32> -> vector<16x128xf32>
    %c0_21 = arith.constant 0 : index
    %c0_22 = arith.constant 0 : index
    %17 = vector.load %arg9[%c0_21, %c0_22] : memref<1x128xf32, #tpu.memory_space<vmem>>, vector<1x128xf32>
    %18 = vector.broadcast %17 : vector<1x128xf32> to vector<16x128xf32>
    %19 = arith.addf %16, %18 : vector<16x128xf32>
    %c0_23 = arith.constant 0 : index
    %c0_24 = arith.constant 0 : index
    %20 = vector.load %arg13[%c0_23, %c0_24] : memref<16x128xf32, #tpu.memory_space<vmem>>, vector<16x128xf32>
    tpu.vector_store %arg13[%c0_23, %c0_24], %19 {strides = array<i32>} : memref<16x128xf32, #tpu.memory_space<vmem>>, vector<16x128xf32>,
    %c0_25 = arith.constant 0 : index
    %c0_26 = arith.constant 0 : index
    %21 = vector.load %arg11[%c0_25, %c0_26] : memref<16x128xf32, #tpu.memory_space<vmem>>, vector<8x128xf32>
    %c0_27 = arith.constant 0 : index
    %c0_28 = arith.constant 0 : index
    %22 = vector.load %arg12[%c0_27, %c0_28] : memref<16x128xf32, #tpu.memory_space<vmem>>, vector<8x128xf32>
    %c0_29 = arith.constant 0 : index
    %c0_30 = arith.constant 0 : index
    %23 = vector.load %arg13[%c0_29, %c0_30] : memref<16x128xf32, #tpu.memory_space<vmem>>, vector<8x128xf32>
    %24 = vector.extract_strided_slice %21 {offsets = [0, 0], sizes = [8, 32], strides = [1, 1]} : vector<8x128xf32> to vector<8x32xf32>
    %25 = vector.extract_strided_slice %22 {offsets = [0, 0], sizes = [8, 32], strides = [1, 1]} : vector<8x128xf32> to vector<8x32xf32>
    %26 = vector.extract_strided_slice %23 {offsets = [0, 0], sizes = [8, 32], strides = [1, 1]} : vector<8x128xf32> to vector<8x32xf32>
    %cst_31 = arith.constant dense<0.000000e+00> : vector<8x8xf32>
    %27 = tpu.matmul %24, %25, %cst_31 {dimension_numbers = #tpu.dot_dimension_numbers<[1], [1], [0], [0], [0, 0, 1, 0], [], []>} : vector<8x32xf32>, vector<8x32xf32>, vector<8x8xf32> -> vector<8x8xf32>
    %cst_32 = arith.constant dense<0xFF800000> : vector<8xf32>
    %28 = vector.multi_reduction <maximumf>, %27, %cst_32 [1] : vector<8x8xf32> to vector<8xf32>
    %29 = vector.shape_cast %28 : vector<8xf32> to vector<8x1xf32>
    %30 = vector.broadcast %29 : vector<8x1xf32> to vector<8x8xf32>
    %31 = arith.subf %27, %30 : vector<8x8xf32>
    %32 = math.exp %31 : vector<8x8xf32>
    %cst_33 = arith.constant dense<0.000000e+00> : vector<8xf32>
    %33 = vector.multi_reduction <add>, %32, %cst_33 [1] : vector<8x8xf32> to vector<8xf32>
    %34 = vector.shape_cast %33 : vector<8xf32> to vector<8x1xf32>
    %35 = tpu.reciprocal %34 {approx = true} : vector<8x1xf32> -> vector<8x1xf32>
    %36 = vector.broadcast %35 : vector<8x1xf32> to vector<8x8xf32>
    %37 = arith.mulf %32, %36 : vector<8x8xf32>
    %cst_34 = arith.constant dense<0.000000e+00> : vector<8x32xf32>
    %38 = tpu.matmul %37, %26, %cst_34 {dimension_numbers = #tpu.dot_dimension_numbers<[1], [0], [0], [1], [0, 0, 1, 1], [], []>} : vector<8x8xf32>, vector<8x32xf32>, vector<8x32xf32> -> vector<8x32xf32>
    %39 = vector.extract_strided_slice %21 {offsets = [0, 32], sizes = [8, 32], strides = [1, 1]} : vector<8x128xf32> to vector<8x32xf32>
    %40 = vector.extract_strided_slice %22 {offsets = [0, 32], sizes = [8, 32], strides = [1, 1]} : vector<8x128xf32> to vector<8x32xf32>
    %41 = vector.extract_strided_slice %23 {offsets = [0, 32], sizes = [8, 32], strides = [1, 1]} : vector<8x128xf32> to vector<8x32xf32>
    %cst_35 = arith.constant dense<0.000000e+00> : vector<8x8xf32>
    %42 = tpu.matmul %39, %40, %cst_35 {dimension_numbers = #tpu.dot_dimension_numbers<[1], [1], [0], [0], [0, 0, 1, 0], [], []>} : vector<8x32xf32>, vector<8x32xf32>, vector<8x8xf32> -> vector<8x8xf32>
    %cst_36 = arith.constant dense<0xFF800000> : vector<8xf32>
    %43 = vector.multi_reduction <maximumf>, %42, %cst_36 [1] : vector<8x8xf32> to vector<8xf32>
    %44 = vector.shape_cast %43 : vector<8xf32> to vector<8x1xf32>
    %45 = vector.broadcast %44 : vector<8x1xf32> to vector<8x8xf32>
    %46 = arith.subf %42, %45 : vector<8x8xf32>
    %47 = math.exp %46 : vector<8x8xf32>
    %cst_37 = arith.constant dense<0.000000e+00> : vector<8xf32>
    %48 = vector.multi_reduction <add>, %47, %cst_37 [1] : vector<8x8xf32> to vector<8xf32>
    %49 = vector.shape_cast %48 : vector<8xf32> to vector<8x1xf32>
    %50 = tpu.reciprocal %49 {approx = true} : vector<8x1xf32> -> vector<8x1xf32>
    %51 = vector.broadcast %50 : vector<8x1xf32> to vector<8x8xf32>
    %52 = arith.mulf %47, %51 : vector<8x8xf32>
    %cst_38 = arith.constant dense<0.000000e+00> : vector<8x32xf32>
    %53 = tpu.matmul %52, %41, %cst_38 {dimension_numbers = #tpu.dot_dimension_numbers<[1], [0], [0], [1], [0, 0, 1, 1], [], []>} : vector<8x8xf32>, vector<8x32xf32>, vector<8x32xf32> -> vector<8x32xf32>
    %54 = vector.extract_strided_slice %21 {offsets = [0, 64], sizes = [8, 32], strides = [1, 1]} : vector<8x128xf32> to vector<8x32xf32>
    %55 = vector.extract_strided_slice %22 {offsets = [0, 64], sizes = [8, 32], strides = [1, 1]} : vector<8x128xf32> to vector<8x32xf32>
    %56 = vector.extract_strided_slice %23 {offsets = [0, 64], sizes = [8, 32], strides = [1, 1]} : vector<8x128xf32> to vector<8x32xf32>
    %cst_39 = arith.constant dense<0.000000e+00> : vector<8x8xf32>
    %57 = tpu.matmul %54, %55, %cst_39 {dimension_numbers = #tpu.dot_dimension_numbers<[1], [1], [0], [0], [0, 0, 1, 0], [], []>} : vector<8x32xf32>, vector<8x32xf32>, vector<8x8xf32> -> vector<8x8xf32>
    %cst_40 = arith.constant dense<0xFF800000> : vector<8xf32>
    %58 = vector.multi_reduction <maximumf>, %57, %cst_40 [1] : vector<8x8xf32> to vector<8xf32>
    %59 = vector.shape_cast %58 : vector<8xf32> to vector<8x1xf32>
    %60 = vector.broadcast %59 : vector<8x1xf32> to vector<8x8xf32>
    %61 = arith.subf %57, %60 : vector<8x8xf32>
    %62 = math.exp %61 : vector<8x8xf32>
    %cst_41 = arith.constant dense<0.000000e+00> : vector<8xf32>
    %63 = vector.multi_reduction <add>, %62, %cst_41 [1] : vector<8x8xf32> to vector<8xf32>
    %64 = vector.shape_cast %63 : vector<8xf32> to vector<8x1xf32>
    %65 = tpu.reciprocal %64 {approx = true} : vector<8x1xf32> -> vector<8x1xf32>
    %66 = vector.broadcast %65 : vector<8x1xf32> to vector<8x8xf32>
    %67 = arith.mulf %62, %66 : vector<8x8xf32>
    %cst_42 = arith.constant dense<0.000000e+00> : vector<8x32xf32>
    %68 = tpu.matmul %67, %56, %cst_42 {dimension_numbers = #tpu.dot_dimension_numbers<[1], [0], [0], [1], [0, 0, 1, 1], [], []>} : vector<8x8xf32>, vector<8x32xf32>, vector<8x32xf32> -> vector<8x32xf32>
    %69 = vector.extract_strided_slice %21 {offsets = [0, 96], sizes = [8, 32], strides = [1, 1]} : vector<8x128xf32> to vector<8x32xf32>
    %70 = vector.extract_strided_slice %22 {offsets = [0, 96], sizes = [8, 32], strides = [1, 1]} : vector<8x128xf32> to vector<8x32xf32>
    %71 = vector.extract_strided_slice %23 {offsets = [0, 96], sizes = [8, 32], strides = [1, 1]} : vector<8x128xf32> to vector<8x32xf32>
    %cst_43 = arith.constant dense<0.000000e+00> : vector<8x8xf32>
    %72 = tpu.matmul %69, %70, %cst_43 {dimension_numbers = #tpu.dot_dimension_numbers<[1], [1], [0], [0], [0, 0, 1, 0], [], []>} : vector<8x32xf32>, vector<8x32xf32>, vector<8x8xf32> -> vector<8x8xf32>
    %cst_44 = arith.constant dense<0xFF800000> : vector<8xf32>
    %73 = vector.multi_reduction <maximumf>, %72, %cst_44 [1] : vector<8x8xf32> to vector<8xf32>
    %74 = vector.shape_cast %73 : vector<8xf32> to vector<8x1xf32>
    %75 = vector.broadcast %74 : vector<8x1xf32> to vector<8x8xf32>
    %76 = arith.subf %72, %75 : vector<8x8xf32>
    %77 = math.exp %76 : vector<8x8xf32>
    %cst_45 = arith.constant dense<0.000000e+00> : vector<8xf32>
    %78 = vector.multi_reduction <add>, %77, %cst_45 [1] : vector<8x8xf32> to vector<8xf32>
    %79 = vector.shape_cast %78 : vector<8xf32> to vector<8x1xf32>
    %80 = tpu.reciprocal %79 {approx = true} : vector<8x1xf32> -> vector<8x1xf32>
    %81 = vector.broadcast %80 : vector<8x1xf32> to vector<8x8xf32>
    %82 = arith.mulf %77, %81 : vector<8x8xf32>
    %cst_46 = arith.constant dense<0.000000e+00> : vector<8x32xf32>
    %83 = tpu.matmul %82, %71, %cst_46 {dimension_numbers = #tpu.dot_dimension_numbers<[1], [0], [0], [1], [0, 0, 1, 1], [], []>} : vector<8x8xf32>, vector<8x32xf32>, vector<8x32xf32> -> vector<8x32xf32>
    %84 = tpu.concatenate %38, %53, %68, %83 in 1 : vector<8x32xf32>, vector<8x32xf32>, vector<8x32xf32>, vector<8x32xf32> -> vector<8x128xf32>
    %c0_47 = arith.constant 0 : index
    %c0_48 = arith.constant 0 : index
    %85 = vector.load %arg10[%c0_47, %c0_48] : memref<16x128xf32, #tpu.memory_space<vmem>>, vector<8x128xf32>
    tpu.vector_store %arg10[%c0_47, %c0_48], %84 {strides = array<i32>} : memref<16x128xf32, #tpu.memory_space<vmem>>, vector<8x128xf32>,
    %c8 = arith.constant 8 : index
    %c0_49 = arith.constant 0 : index
    %86 = vector.load %arg11[%c8, %c0_49] : memref<16x128xf32, #tpu.memory_space<vmem>>, vector<8x128xf32>
    %c8_50 = arith.constant 8 : index
    %c0_51 = arith.constant 0 : index
    %87 = vector.load %arg12[%c8_50, %c0_51] : memref<16x128xf32, #tpu.memory_space<vmem>>, vector<8x128xf32>
    %c8_52 = arith.constant 8 : index
    %c0_53 = arith.constant 0 : index
    %88 = vector.load %arg13[%c8_52, %c0_53] : memref<16x128xf32, #tpu.memory_space<vmem>>, vector<8x128xf32>
    %89 = vector.extract_strided_slice %86 {offsets = [0, 0], sizes = [8, 32], strides = [1, 1]} : vector<8x128xf32> to vector<8x32xf32>
    %90 = vector.extract_strided_slice %87 {offsets = [0, 0], sizes = [8, 32], strides = [1, 1]} : vector<8x128xf32> to vector<8x32xf32>
    %91 = vector.extract_strided_slice %88 {offsets = [0, 0], sizes = [8, 32], strides = [1, 1]} : vector<8x128xf32> to vector<8x32xf32>
    %cst_54 = arith.constant dense<0.000000e+00> : vector<8x8xf32>
    %92 = tpu.matmul %89, %90, %cst_54 {dimension_numbers = #tpu.dot_dimension_numbers<[1], [1], [0], [0], [0, 0, 1, 0], [], []>} : vector<8x32xf32>, vector<8x32xf32>, vector<8x8xf32> -> vector<8x8xf32>
    %cst_55 = arith.constant dense<0xFF800000> : vector<8xf32>
    %93 = vector.multi_reduction <maximumf>, %92, %cst_55 [1] : vector<8x8xf32> to vector<8xf32>
    %94 = vector.shape_cast %93 : vector<8xf32> to vector<8x1xf32>
    %95 = vector.broadcast %94 : vector<8x1xf32> to vector<8x8xf32>
    %96 = arith.subf %92, %95 : vector<8x8xf32>
    %97 = math.exp %96 : vector<8x8xf32>
    %cst_56 = arith.constant dense<0.000000e+00> : vector<8xf32>
    %98 = vector.multi_reduction <add>, %97, %cst_56 [1] : vector<8x8xf32> to vector<8xf32>
    %99 = vector.shape_cast %98 : vector<8xf32> to vector<8x1xf32>
    %100 = tpu.reciprocal %99 {approx = true} : vector<8x1xf32> -> vector<8x1xf32>
    %101 = vector.broadcast %100 : vector<8x1xf32> to vector<8x8xf32>
    %102 = arith.mulf %97, %101 : vector<8x8xf32>
    %cst_57 = arith.constant dense<0.000000e+00> : vector<8x32xf32>
    %103 = tpu.matmul %102, %91, %cst_57 {dimension_numbers = #tpu.dot_dimension_numbers<[1], [0], [0], [1], [0, 0, 1, 1], [], []>} : vector<8x8xf32>, vector<8x32xf32>, vector<8x32xf32> -> vector<8x32xf32>
    %104 = vector.extract_strided_slice %86 {offsets = [0, 32], sizes = [8, 32], strides = [1, 1]} : vector<8x128xf32> to vector<8x32xf32>
    %105 = vector.extract_strided_slice %87 {offsets = [0, 32], sizes = [8, 32], strides = [1, 1]} : vector<8x128xf32> to vector<8x32xf32>
    %106 = vector.extract_strided_slice %88 {offsets = [0, 32], sizes = [8, 32], strides = [1, 1]} : vector<8x128xf32> to vector<8x32xf32>
    %cst_58 = arith.constant dense<0.000000e+00> : vector<8x8xf32>
    %107 = tpu.matmul %104, %105, %cst_58 {dimension_numbers = #tpu.dot_dimension_numbers<[1], [1], [0], [0], [0, 0, 1, 0], [], []>} : vector<8x32xf32>, vector<8x32xf32>, vector<8x8xf32> -> vector<8x8xf32>
    %cst_59 = arith.constant dense<0xFF800000> : vector<8xf32>
    %108 = vector.multi_reduction <maximumf>, %107, %cst_59 [1] : vector<8x8xf32> to vector<8xf32>
    %109 = vector.shape_cast %108 : vector<8xf32> to vector<8x1xf32>
    %110 = vector.broadcast %109 : vector<8x1xf32> to vector<8x8xf32>
    %111 = arith.subf %107, %110 : vector<8x8xf32>
    %112 = math.exp %111 : vector<8x8xf32>
    %cst_60 = arith.constant dense<0.000000e+00> : vector<8xf32>
    %113 = vector.multi_reduction <add>, %112, %cst_60 [1] : vector<8x8xf32> to vector<8xf32>
    %114 = vector.shape_cast %113 : vector<8xf32> to vector<8x1xf32>
    %115 = tpu.reciprocal %114 {approx = true} : vector<8x1xf32> -> vector<8x1xf32>
    %116 = vector.broadcast %115 : vector<8x1xf32> to vector<8x8xf32>
    %117 = arith.mulf %112, %116 : vector<8x8xf32>
    %cst_61 = arith.constant dense<0.000000e+00> : vector<8x32xf32>
    %118 = tpu.matmul %117, %106, %cst_61 {dimension_numbers = #tpu.dot_dimension_numbers<[1], [0], [0], [1], [0, 0, 1, 1], [], []>} : vector<8x8xf32>, vector<8x32xf32>, vector<8x32xf32> -> vector<8x32xf32>
    %119 = vector.extract_strided_slice %86 {offsets = [0, 64], sizes = [8, 32], strides = [1, 1]} : vector<8x128xf32> to vector<8x32xf32>
    %120 = vector.extract_strided_slice %87 {offsets = [0, 64], sizes = [8, 32], strides = [1, 1]} : vector<8x128xf32> to vector<8x32xf32>
    %121 = vector.extract_strided_slice %88 {offsets = [0, 64], sizes = [8, 32], strides = [1, 1]} : vector<8x128xf32> to vector<8x32xf32>
    %cst_62 = arith.constant dense<0.000000e+00> : vector<8x8xf32>
    %122 = tpu.matmul %119, %120, %cst_62 {dimension_numbers = #tpu.dot_dimension_numbers<[1], [1], [0], [0], [0, 0, 1, 0], [], []>} : vector<8x32xf32>, vector<8x32xf32>, vector<8x8xf32> -> vector<8x8xf32>
    %cst_63 = arith.constant dense<0xFF800000> : vector<8xf32>
    %123 = vector.multi_reduction <maximumf>, %122, %cst_63 [1] : vector<8x8xf32> to vector<8xf32>
    %124 = vector.shape_cast %123 : vector<8xf32> to vector<8x1xf32>
    %125 = vector.broadcast %124 : vector<8x1xf32> to vector<8x8xf32>
    %126 = arith.subf %122, %125 : vector<8x8xf32>
    %127 = math.exp %126 : vector<8x8xf32>
    %cst_64 = arith.constant dense<0.000000e+00> : vector<8xf32>
    %128 = vector.multi_reduction <add>, %127, %cst_64 [1] : vector<8x8xf32> to vector<8xf32>
    %129 = vector.shape_cast %128 : vector<8xf32> to vector<8x1xf32>
    %130 = tpu.reciprocal %129 {approx = true} : vector<8x1xf32> -> vector<8x1xf32>
    %131 = vector.broadcast %130 : vector<8x1xf32> to vector<8x8xf32>
    %132 = arith.mulf %127, %131 : vector<8x8xf32>
    %cst_65 = arith.constant dense<0.000000e+00> : vector<8x32xf32>
    %133 = tpu.matmul %132, %121, %cst_65 {dimension_numbers = #tpu.dot_dimension_numbers<[1], [0], [0], [1], [0, 0, 1, 1], [], []>} : vector<8x8xf32>, vector<8x32xf32>, vector<8x32xf32> -> vector<8x32xf32>
    %134 = vector.extract_strided_slice %86 {offsets = [0, 96], sizes = [8, 32], strides = [1, 1]} : vector<8x128xf32> to vector<8x32xf32>
    %135 = vector.extract_strided_slice %87 {offsets = [0, 96], sizes = [8, 32], strides = [1, 1]} : vector<8x128xf32> to vector<8x32xf32>
    %136 = vector.extract_strided_slice %88 {offsets = [0, 96], sizes = [8, 32], strides = [1, 1]} : vector<8x128xf32> to vector<8x32xf32>
    %cst_66 = arith.constant dense<0.000000e+00> : vector<8x8xf32>
    %137 = tpu.matmul %134, %135, %cst_66 {dimension_numbers = #tpu.dot_dimension_numbers<[1], [1], [0], [0], [0, 0, 1, 0], [], []>} : vector<8x32xf32>, vector<8x32xf32>, vector<8x8xf32> -> vector<8x8xf32>
    %cst_67 = arith.constant dense<0xFF800000> : vector<8xf32>
    %138 = vector.multi_reduction <maximumf>, %137, %cst_67 [1] : vector<8x8xf32> to vector<8xf32>
    %139 = vector.shape_cast %138 : vector<8xf32> to vector<8x1xf32>
    %140 = vector.broadcast %139 : vector<8x1xf32> to vector<8x8xf32>
    %141 = arith.subf %137, %140 : vector<8x8xf32>
    %142 = math.exp %141 : vector<8x8xf32>
    %cst_68 = arith.constant dense<0.000000e+00> : vector<8xf32>
    %143 = vector.multi_reduction <add>, %142, %cst_68 [1] : vector<8x8xf32> to vector<8xf32>
    %144 = vector.shape_cast %143 : vector<8xf32> to vector<8x1xf32>
    %145 = tpu.reciprocal %144 {approx = true} : vector<8x1xf32> -> vector<8x1xf32>
    %146 = vector.broadcast %145 : vector<8x1xf32> to vector<8x8xf32>
    %147 = arith.mulf %142, %146 : vector<8x8xf32>
    %cst_69 = arith.constant dense<0.000000e+00> : vector<8x32xf32>
    %148 = tpu.matmul %147, %136, %cst_69 {dimension_numbers = #tpu.dot_dimension_numbers<[1], [0], [0], [1], [0, 0, 1, 1], [], []>} : vector<8x8xf32>, vector<8x32xf32>, vector<8x32xf32> -> vector<8x32xf32>
    %149 = tpu.concatenate %103, %118, %133, %148 in 1 : vector<8x32xf32>, vector<8x32xf32>, vector<8x32xf32>, vector<8x32xf32> -> vector<8x128xf32>
    %c8_70 = arith.constant 8 : index
    %c0_71 = arith.constant 0 : index
    %150 = vector.load %arg10[%c8_70, %c0_71] : memref<16x128xf32, #tpu.memory_space<vmem>>, vector<8x128xf32>
    tpu.vector_store %arg10[%c8_70, %c0_71], %149 {strides = array<i32>} : memref<16x128xf32, #tpu.memory_space<vmem>>, vector<8x128xf32>,
    return
  }
  func.func @transform_0(%arg0: i32) -> (i32, i32) {
    %c0_i32 = arith.constant 0 : i32
    %c0_i32_0 = arith.constant 0 : i32
    return %arg0, %c0_i32 : i32, i32
  }
  func.func @transform_1(%arg0: i32) -> (i32, i32) {
    %c0_i32 = arith.constant 0 : i32
    %c0_i32_0 = arith.constant 0 : i32
    return %arg0, %c0_i32 : i32, i32
  }
  func.func @transform_2(%arg0: i32) -> (i32, i32) {
    %c0_i32 = arith.constant 0 : i32
    %c0_i32_0 = arith.constant 0 : i32
    return %arg0, %c0_i32 : i32, i32
  }
  func.func @transform_3(%arg0: i32) -> (i32, i32) {
    %c0_i32 = arith.constant 0 : i32
    %c0_i32_0 = arith.constant 0 : i32
    %c0_i32_1 = arith.constant 0 : i32
    return %c0_i32, %c0_i32_0 : i32, i32
  }
  func.func @transform_4(%arg0: i32) -> (i32, i32) {
    %c0_i32 = arith.constant 0 : i32
    %c0_i32_0 = arith.constant 0 : i32
    %c0_i32_1 = arith.constant 0 : i32
    return %c0_i32, %c0_i32_0 : i32, i32
  }
  func.func @transform_5(%arg0: i32) -> (i32, i32) {
    %c0_i32 = arith.constant 0 : i32
    %c0_i32_0 = arith.constant 0 : i32
    %c0_i32_1 = arith.constant 0 : i32
    return %c0_i32, %c0_i32_0 : i32, i32
  }
  func.func @transform_6(%arg0: i32) -> (i32, i32) {
    %c0_i32 = arith.constant 0 : i32
    %c0_i32_0 = arith.constant 0 : i32
    %c0_i32_1 = arith.constant 0 : i32
    return %c0_i32, %c0_i32_0 : i32, i32
  }
  func.func @transform_7(%arg0: i32) -> (i32, i32) {
    %c0_i32 = arith.constant 0 : i32
    %c0_i32_0 = arith.constant 0 : i32
    %c0_i32_1 = arith.constant 0 : i32
    return %c0_i32, %c0_i32_0 : i32, i32
  }
  func.func @transform_8(%arg0: i32) -> (i32, i32) {
    %c0_i32 = arith.constant 0 : i32
    %c0_i32_0 = arith.constant 0 : i32
    %c0_i32_1 = arith.constant 0 : i32
    return %c0_i32, %c0_i32_0 : i32, i32
  }
  func.func @transform_9(%arg0: i32) -> (i32, i32) {
    %c0_i32 = arith.constant 0 : i32
    %c0_i32_0 = arith.constant 0 : i32
    return %arg0, %c0_i32 : i32, i32
  }
}

</mosaic_0001>

<llo_original>
// kernel: tpu_custom_call.1
$region0: #{tpu_custom_call.1}
  #allocation0 [shape = 'u32[]', space=smem, size = 0x4, offset = 0x4, fixed_abs, tag = 'smem constant byte address 0x4 - core index']
  #allocation1 [shape = 'u32[72,128]{1,0:T(1,128)}', space=vmem, size = 0x9000, scoped, tag = 'internal scratch']
  #allocation2 [shape = 'f32[16,128]{1,0:T(8,128)}', space=vmem, size = 0x2000, scoped, tag = 'scratch operand']
  #allocation3 [shape = 'f32[16,128]{1,0:T(8,128)}', space=vmem, size = 0x2000, scoped, tag = 'scratch operand']
  #allocation4 [shape = 'f32[16,128]{1,0:T(8,128)}', space=vmem, size = 0x2000, scoped, tag = 'scratch operand']
  %s0 = inlined_call_operand.hbm [shape: f32[32,64], index: 0, kind: input, shape index: {}]
  %s1 = inlined_call_operand.hbm [shape: f32[32,64], index: 1, kind: input, shape index: {}]
  %s2 = inlined_call_operand.hbm [shape: f32[32,64], index: 2, kind: input, shape index: {}]
  %s3 = inlined_call_operand.hbm [shape: f32[64,128], index: 3, kind: input, shape index: {}]
  %s4 = inlined_call_operand.hbm [shape: f32[64,128], index: 4, kind: input, shape index: {}]
  %s5 = inlined_call_operand.hbm [shape: f32[64,128], index: 5, kind: input, shape index: {}]
  %s6 = inlined_call_operand.vmem [shape: f32[1,128], index: 6, kind: input, shape index: {}]
  %s7 = inlined_call_operand.vmem [shape: f32[1,128], index: 7, kind: input, shape index: {}]
  %s8 = inlined_call_operand.vmem [shape: f32[1,128], index: 8, kind: input, shape index: {}]
  %s9 = inlined_call_operand.hbm [shape: f32[32,128], index: 9, kind: output, shape index: {}]
  %s10 = sld [smem:[#allocation0]]
  $region93: #{tpu_custom_call.1} parent=0
    _
  %s12 = ssub.s32 1, %s10
  %s13 = scalar_select 0, %s12, %s10
  $region1: #{tpu_custom_call.1} parent=0
    #allocation5 [shape = 'u8[16384]{0}', space=vmem, size = 0x4000, scoped, tag = 'input window, operand 0']
    #allocation6 [shape = 's32[2]{0}', space=sflag, size = 0x8, scoped, tag = 'scoped memory for tpu_custom_call.1']
    #allocation7 [shape = 's32[2]{0}', space=sflag, size = 0x8, scoped, tag = 'scoped memory for tpu_custom_call.1']
    #allocation8 [shape = 'u8[16384]{0}', space=vmem, size = 0x4000, scoped, tag = 'input window, operand 1']
    #allocation9 [shape = 's32[2]{0}', space=sflag, size = 0x8, scoped, tag = 'scoped memory for tpu_custom_call.1']
    #allocation10 [shape = 'u8[16384]{0}', space=vmem, size = 0x4000, scoped, tag = 'input window, operand 2']
    #allocation11 [shape = 'u8[32768]{0}', space=vmem, size = 0x8000, scoped, tag = 'input window, operand 3, single buffered']
    #allocation12 [shape = 's32[1]{0}', space=sflag, size = 0x4, scoped, tag = 'scoped memory for tpu_custom_call.1']
    #allocation13 [shape = 'u8[32768]{0}', space=vmem, size = 0x8000, scoped, tag = 'input window, operand 4, single buffered']
    #allocation14 [shape = 'u8[32768]{0}', space=vmem, size = 0x8000, scoped, tag = 'input window, operand 5, single buffered']
    #allocation15 [shape = 's32[1]{0}', space=sflag, size = 0x4, scoped, tag = 'scoped memory for tpu_custom_call.1']
    #allocation16 [shape = 'u8[16384]{0}', space=vmem, size = 0x4000, scoped, tag = 'output window, operand 0']
    %14 = vsyncpa [#allocation6], 0
    %s15 = scalar_lea.sflag [#allocation6], 1
    %16 = vsyncpa %s15, 0
    %17 = vsyncpa [#allocation9], 0
    %s18 = scalar_lea.sflag [#allocation9], 1
    %19 = vsyncpa %s18, 0
    %20 = vsyncpa [#allocation12], 0
    %21 = vsyncpa [#allocation15], 0
    %22 = vsyncpa [#allocation7], 0
    %s23 = scalar_lea.sflag [#allocation7], 1
    %24 = vsyncpa %s23, 0
    loop: start=0, step=1, limit=4
    $region2: #{tpu_custom_call.1} parent=1 // loop_pre_header
      _
    $region3: #{tpu_custom_call.1} parent=1 // loop_header
      %s26 = sphi 0, %s30
      %p27 = scmp.ge.s32.totalorder %s26, 4
      %s36 = sphi 0, %s38
      %s39 = sphi 0, %s36
      %s40 = sphi 0, %s39
      %s56 = sphi 0, %s40
      %s62 = sphi 0, %s64
      %s65 = sphi 0, %s62
      %s66 = sphi 0, %s65
      %s82 = sphi 0, %s66
      %s88 = sphi 0, %s90
      %s91 = sphi 0, %s88
      %s92 = sphi 0, %s91
      %s108 = sphi 0, %s92
      %s112 = sphi 0, %s112
      %s114 = sphi 0, %s112
      %s115 = sphi 0, %s114
      %s129 = sphi 0, %s115
      %s133 = sphi 0, %s133
      %s135 = sphi 0, %s133
      %s136 = sphi 0, %s135
      %s150 = sphi 0, %s136
      %s154 = sphi 0, %s154
      %s156 = sphi 0, %s154
      %s157 = sphi 0, %s156
      %s171 = sphi 0, %s157
      %s175 = sphi 0, %s175
      %s177 = sphi 0, %s175
      %s178 = sphi 0, %s177
      %s192 = sphi 0, %s178
      %s196 = sphi 0, %s196
      %s198 = sphi 0, %s196
      %s199 = sphi 0, %s198
      %s213 = sphi 0, %s199
      %s217 = sphi 0, %s217
      %s219 = sphi 0, %s217
      %s220 = sphi 0, %s219
      %s234 = sphi 0, %s220
      %s240 = sphi 0, %s242
      %s243 = sphi 0, %s240
      %s244 = sphi 0, %s243
      %s260 = sphi 0, %s244
    $region4: #{tpu_custom_call.1} parent=1 // loop_header_branch
      %29 = sbr.rel (%p27) target = $region8
    $region5: #{tpu_custom_call.1} parent=1 // loop_body
      %s31 = ssub.s32 %s26, 1
      %s32 = ssub.s32 %s26, 2
      %s33 = sadd.s32 %s26, 1
      %s34 = ssub.s32 %s26, %s33
      %p35 = scmp.eq.s32.totalorder %s34, 0
      %s37 = sadd.s32 %s36, 1
      %s38 = scalar_select %p35, %s36, %s37
      %p41 = pneg %p35
      %p42 = scmp.eq.s32.totalorder %s26, 1
      %p43 = por %p41, %p42
      %p44 = scmp.ne.s32.totalorder %s36, %s39
      %p45 = scmp.eq.s32.totalorder %s26, 0
      %p46 = por %p44, %p45
      %p47 = scmp.ne.s32.totalorder %s36, %s39
      %p48 = scmp.eq.s32.totalorder %s31, 1
      %p49 = por %p47, %p48
      %p50 = scmp.ne.s32.totalorder %s39, %s40
      %p51 = scmp.eq.s32.totalorder %s31, 0
      %p52 = por %p50, %p51
      %p53 = scmp.ne.s32.totalorder %s39, %s40
      %p54 = scmp.eq.s32.totalorder %s32, 1
      %p55 = por %p53, %p54
      %p57 = scmp.ne.s32.totalorder %s40, %s56
      %p58 = scmp.eq.s32.totalorder %s32, 0
      %p59 = por %p57, %p58
      %s60 = ssub.s32 %s26, %s33
      %p61 = scmp.eq.s32.totalorder %s60, 0
      %s63 = sadd.s32 %s62, 1
      %s64 = scalar_select %p61, %s62, %s63
      %p67 = pneg %p61
      %p68 = scmp.eq.s32.totalorder %s26, 1
      %p69 = por %p67, %p68
      %p70 = scmp.ne.s32.totalorder %s62, %s65
      %p71 = scmp.eq.s32.totalorder %s26, 0
      %p72 = por %p70, %p71
      %p73 = scmp.ne.s32.totalorder %s62, %s65
      %p74 = scmp.eq.s32.totalorder %s31, 1
      %p75 = por %p73, %p74
      %p76 = scmp.ne.s32.totalorder %s65, %s66
      %p77 = scmp.eq.s32.totalorder %s31, 0
      %p78 = por %p76, %p77
      %p79 = scmp.ne.s32.totalorder %s65, %s66
      %p80 = scmp.eq.s32.totalorder %s32, 1
      %p81 = por %p79, %p80
      %p83 = scmp.ne.s32.totalorder %s66, %s82
      %p84 = scmp.eq.s32.totalorder %s32, 0
      %p85 = por %p83, %p84
      %s86 = ssub.s32 %s26, %s33
      %p87 = scmp.eq.s32.totalorder %s86, 0
      %s89 = sadd.s32 %s88, 1
      %s90 = scalar_select %p87, %s88, %s89
      %p93 = pneg %p87
      %p94 = scmp.eq.s32.totalorder %s26, 1
      %p95 = por %p93, %p94
      %p96 = scmp.ne.s32.totalorder %s88, %s91
      %p97 = scmp.eq.s32.totalorder %s26, 0
      %p98 = por %p96, %p97
      %p99 = scmp.ne.s32.totalorder %s88, %s91
      %p100 = scmp.eq.s32.totalorder %s31, 1
      %p101 = por %p99, %p100
      %p102 = scmp.ne.s32.totalorder %s91, %s92
      %p103 = scmp.eq.s32.totalorder %s31, 0
      %p104 = por %p102, %p103
      %p105 = scmp.ne.s32.totalorder %s91, %s92
      %p106 = scmp.eq.s32.totalorder %s32, 1
      %p107 = por %p105, %p106
      %p109 = scmp.ne.s32.totalorder %s92, %s108
      %p110 = scmp.eq.s32.totalorder %s32, 0
      %p111 = por %p109, %p110
      %s113 = sadd.s32 %s112, 1
      %p116 = scmp.eq.s32.totalorder %s26, 1
      %p117 = scmp.ne.s32.totalorder %s112, %s114
      %p118 = scmp.eq.s32.totalorder %s26, 0
      %p119 = por %p117, %p118
      %p120 = scmp.ne.s32.totalorder %s112, %s114
      %p121 = scmp.eq.s32.totalorder %s31, 1
      %p122 = por %p120, %p121
      %p123 = scmp.ne.s32.totalorder %s114, %s115
      %p124 = scmp.eq.s32.totalorder %s31, 0
      %p125 = por %p123, %p124
      %p126 = scmp.ne.s32.totalorder %s114, %s115
      %p127 = scmp.eq.s32.totalorder %s32, 1
      %p128 = por %p126, %p127
      %p130 = scmp.ne.s32.totalorder %s115, %s129
      %p131 = scmp.eq.s32.totalorder %s32, 0
      %p132 = por %p130, %p131
      %s134 = sadd.s32 %s133, 1
      %p137 = scmp.eq.s32.totalorder %s26, 1
      %p138 = scmp.ne.s32.totalorder %s133, %s135
      %p139 = scmp.eq.s32.totalorder %s26, 0
      %p140 = por %p138, %p139
      %p141 = scmp.ne.s32.totalorder %s133, %s135
      %p142 = scmp.eq.s32.totalorder %s31, 1
      %p143 = por %p141, %p142
      %p144 = scmp.ne.s32.totalorder %s135, %s136
      %p145 = scmp.eq.s32.totalorder %s31, 0
      %p146 = por %p144, %p145
      %p147 = scmp.ne.s32.totalorder %s135, %s136
      %p148 = scmp.eq.s32.totalorder %s32, 1
      %p149 = por %p147, %p148
      %p151 = scmp.ne.s32.totalorder %s136, %s150
      %p152 = scmp.eq.s32.totalorder %s32, 0
      %p153 = por %p151, %p152
      %s155 = sadd.s32 %s154, 1
      %p158 = scmp.eq.s32.totalorder %s26, 1
      %p159 = scmp.ne.s32.totalorder %s154, %s156
      %p160 = scmp.eq.s32.totalorder %s26, 0
      %p161 = por %p159, %p160
      %p162 = scmp.ne.s32.totalorder %s154, %s156
      %p163 = scmp.eq.s32.totalorder %s31, 1
      %p164 = por %p162, %p163
      %p165 = scmp.ne.s32.totalorder %s156, %s157
      %p166 = scmp.eq.s32.totalorder %s31, 0
      %p167 = por %p165, %p166
      %p168 = scmp.ne.s32.totalorder %s156, %s157
      %p169 = scmp.eq.s32.totalorder %s32, 1
      %p170 = por %p168, %p169
      %p172 = scmp.ne.s32.totalorder %s157, %s171
      %p173 = scmp.eq.s32.totalorder %s32, 0
      %p174 = por %p172, %p173
      %s176 = sadd.s32 %s175, 1
      %p179 = scmp.eq.s32.totalorder %s26, 1
      %p180 = scmp.ne.s32.totalorder %s175, %s177
      %p181 = scmp.eq.s32.totalorder %s26, 0
      %p182 = por %p180, %p181
      %p183 = scmp.ne.s32.totalorder %s175, %s177
      %p184 = scmp.eq.s32.totalorder %s31, 1
      %p185 = por %p183, %p184
      %p186 = scmp.ne.s32.totalorder %s177, %s178
      %p187 = scmp.eq.s32.totalorder %s31, 0
      %p188 = por %p186, %p187
      %p189 = scmp.ne.s32.totalorder %s177, %s178
      %p190 = scmp.eq.s32.totalorder %s32, 1
      %p191 = por %p189, %p190
      %p193 = scmp.ne.s32.totalorder %s178, %s192
      %p194 = scmp.eq.s32.totalorder %s32, 0
      %p195 = por %p193, %p194
      %s197 = sadd.s32 %s196, 1
      %p200 = scmp.eq.s32.totalorder %s26, 1
      %p201 = scmp.ne.s32.totalorder %s196, %s198
      %p202 = scmp.eq.s32.totalorder %s26, 0
      %p203 = por %p201, %p202
      %p204 = scmp.ne.s32.totalorder %s196, %s198
      %p205 = scmp.eq.s32.totalorder %s31, 1
      %p206 = por %p204, %p205
      %p207 = scmp.ne.s32.totalorder %s198, %s199
      %p208 = scmp.eq.s32.totalorder %s31, 0
      %p209 = por %p207, %p208
      %p210 = scmp.ne.s32.totalorder %s198, %s199
      %p211 = scmp.eq.s32.totalorder %s32, 1
      %p212 = por %p210, %p211
      %p214 = scmp.ne.s32.totalorder %s199, %s213
      %p215 = scmp.eq.s32.totalorder %s32, 0
      %p216 = por %p214, %p215
      %s218 = sadd.s32 %s217, 1
      %p221 = scmp.eq.s32.totalorder %s26, 1
      %p222 = scmp.ne.s32.totalorder %s217, %s219
      %p223 = scmp.eq.s32.totalorder %s26, 0
      %p224 = por %p222, %p223
      %p225 = scmp.ne.s32.totalorder %s217, %s219
      %p226 = scmp.eq.s32.totalorder %s31, 1
      %p227 = por %p225, %p226
      %p228 = scmp.ne.s32.totalorder %s219, %s220
      %p229 = scmp.eq.s32.totalorder %s31, 0
      %p230 = por %p228, %p229
      %p231 = scmp.ne.s32.totalorder %s219, %s220
      %p232 = scmp.eq.s32.totalorder %s32, 1
      %p233 = por %p231, %p232
      %p235 = scmp.ne.s32.totalorder %s220, %s234
      %p236 = scmp.eq.s32.totalorder %s32, 0
      %p237 = por %p235, %p236
      %s238 = ssub.s32 %s26, %s33
      %p239 = scmp.eq.s32.totalorder %s238, 0
      %s241 = sadd.s32 %s240, 1
      %s242 = scalar_select %p239, %s240, %s241
      %p245 = pneg %p239
      %p246 = scmp.eq.s32.totalorder %s26, 1
      %p247 = por %p245, %p246
      %p248 = scmp.ne.s32.totalorder %s240, %s243
      %p249 = scmp.eq.s32.totalorder %s26, 0
      %p250 = por %p248, %p249
      %p251 = scmp.ne.s32.totalorder %s240, %s243
      %p252 = scmp.eq.s32.totalorder %s31, 1
      %p253 = por %p251, %p252
      %p254 = scmp.ne.s32.totalorder %s243, %s244
      %p255 = scmp.eq.s32.totalorder %s31, 0
      %p256 = por %p254, %p255
      %p257 = scmp.ne.s32.totalorder %s243, %s244
      %p258 = scmp.eq.s32.totalorder %s32, 1
      %p259 = por %p257, %p258
      %p261 = scmp.ne.s32.totalorder %s244, %s260
      %p262 = scmp.eq.s32.totalorder %s32, 0
      %p263 = por %p261, %p262
      %p264 = scmp.le.s32.totalorder 1, %s26
      %p265 = scmp.lt.s32.totalorder %s26, 3
      %p266 = pnand %p264, %p265
      %p267 = pneg %p266
      // Predicated region
      $region9: #{tpu_custom_call.1} parent=5 // pred_check
        _
      $region10: #{tpu_custom_call.1} parent=5 // pred_check_branch
        %269 = sbr.rel (%p266) target = $region12
      $region11: #{tpu_custom_call.1} parent=5 // pred_region
        %s270 = ssub.s32 %s26, 1
        // Predicated region
        $region13: #{tpu_custom_call.1} parent=11 // pred_check
          %p271 = pneg %p125
        $region14: #{tpu_custom_call.1} parent=11 // pred_check_branch
          %273 = sbr.rel (%p271) target = $region16
        $region15: #{tpu_custom_call.1} parent=11 // pred_region
          %275 = vsyncadd [#allocation12], 0
          %s276 = sshll.u32 %s3, 4
          %s277 = int_to_ptr.hbm [resolvable:$true] %s276
          %s278 = sshll.u32 [#allocation11], 4
          %s279 = int_to_ptr.vmem [resolvable:$true] %s278
          %284 = dma.hbm_to_vmem [thread:$0]  %s277, 1024, %s279, [#allocation12], 128, 128, 8
        $region16: #{tpu_custom_call.1} parent=11 // pred_fallthru
          _
        // Predicated region
        $region17: #{tpu_custom_call.1} parent=11 // pred_check
          %p285 = pneg %p146
        $region18: #{tpu_custom_call.1} parent=11 // pred_check_branch
          %287 = sbr.rel (%p285) target = $region20
        $region19: #{tpu_custom_call.1} parent=11 // pred_region
          %289 = vsyncadd [#allocation12], 0
          %s290 = sshll.u32 %s4, 4
          %s291 = int_to_ptr.hbm [resolvable:$true] %s290
          %s292 = sshll.u32 [#allocation13], 4
          %s293 = int_to_ptr.vmem [resolvable:$true] %s292
          %298 = dma.hbm_to_vmem [thread:$0]  %s291, 1024, %s293, [#allocation12], 128, 128, 8
        $region20: #{tpu_custom_call.1} parent=11 // pred_fallthru
          _
        // Predicated region
        $region21: #{tpu_custom_call.1} parent=11 // pred_check
          %p299 = pneg %p167
        $region22: #{tpu_custom_call.1} parent=11 // pred_check_branch
          %301 = sbr.rel (%p299) target = $region24
        $region23: #{tpu_custom_call.1} parent=11 // pred_region
          %303 = vsyncadd [#allocation15], 0
          %s304 = sshll.u32 %s5, 4
          %s305 = int_to_ptr.hbm [resolvable:$true] %s304
          %s306 = sshll.u32 [#allocation14], 4
          %s307 = int_to_ptr.vmem [resolvable:$true] %s306
          %312 = dma.hbm_to_vmem [thread:$0]  %s305, 1024, %s307, [#allocation15], 128, 128, 8
        $region24: #{tpu_custom_call.1} parent=11 // pred_fallthru
          _
        // Predicated region
        $region25: #{tpu_custom_call.1} parent=11 // pred_check
          %p313 = pneg %p188
        $region26: #{tpu_custom_call.1} parent=11 // pred_check_branch
          %315 = sbr.rel (%p313) target = $region28
        $region27: #{tpu_custom_call.1} parent=11 // pred_region
          _
        $region28: #{tpu_custom_call.1} parent=11 // pred_fallthru
          _
        // Predicated region
        $region29: #{tpu_custom_call.1} parent=11 // pred_check
          %p316 = pneg %p209
        $region30: #{tpu_custom_call.1} parent=11 // pred_check_branch
          %318 = sbr.rel (%p316) target = $region32
        $region31: #{tpu_custom_call.1} parent=11 // pred_region
          _
        $region32: #{tpu_custom_call.1} parent=11 // pred_fallthru
          _
        // Predicated region
        $region33: #{tpu_custom_call.1} parent=11 // pred_check
          %p319 = pneg %p230
        $region34: #{tpu_custom_call.1} parent=11 // pred_check_branch
          %321 = sbr.rel (%p319) target = $region36
        $region35: #{tpu_custom_call.1} parent=11 // pred_region
          _
        $region36: #{tpu_custom_call.1} parent=11 // pred_fallthru
          _
      $region12: #{tpu_custom_call.1} parent=5 // pred_fallthru
        _
      %p322 = scmp.lt.s32.totalorder %s26, 2
      // Predicated region
      $region37: #{tpu_custom_call.1} parent=5 // pred_check
        %p323 = pneg %p322
      $region38: #{tpu_custom_call.1} parent=5 // pred_check_branch
        %325 = sbr.rel (%p323) target = $region40
      $region39: #{tpu_custom_call.1} parent=5 // pred_region
        // Predicated region
        $region41: #{tpu_custom_call.1} parent=39 // pred_check
          %p326 = pneg %p46
        $region42: #{tpu_custom_call.1} parent=39 // pred_check_branch
          %328 = sbr.rel (%p326) target = $region44
        $region43: #{tpu_custom_call.1} parent=39 // pred_region
          %s329 = sand.u32 %s36, 1
          %s330 = scalar_lea.sflag [#allocation6], %s329
          %s331 = sand.u32 %s36, 1
          %s332 = smul.addr %s331, 16
          %s333 = scalar_lea.vmem [#allocation5], %s332
          %s334 = smul.u32 2, %s26
          %336 = vsyncadd %s330, 0
          %s337 = smul.addr %s334, 8
          %s338 = scalar_lea.hbm %s0, %s337
          %s339 = sshll.u32 %s338, 4
          %s340 = int_to_ptr.hbm [resolvable:$true] %s339
          %s341 = sshll.u32 %s333, 4
          %s342 = int_to_ptr.vmem [resolvable:$true] %s341
          %347 = dma.hbm_to_vmem [thread:$0]  %s340, 256, %s342, %s330, 128, 128, 8
        $region44: #{tpu_custom_call.1} parent=39 // pred_fallthru
          _
        // Predicated region
        $region45: #{tpu_custom_call.1} parent=39 // pred_check
          %p348 = pneg %p72
        $region46: #{tpu_custom_call.1} parent=39 // pred_check_branch
          %350 = sbr.rel (%p348) target = $region48
        $region47: #{tpu_custom_call.1} parent=39 // pred_region
          %s351 = sand.u32 %s26, 1
          %s352 = scalar_lea.sflag [#allocation9], %s351
          %s353 = sand.u32 %s62, 1
          %s354 = smul.addr %s353, 16
          %s355 = scalar_lea.vmem [#allocation8], %s354
          %s356 = smul.u32 2, %s26
          %358 = vsyncadd %s352, 0
          %s359 = smul.addr %s356, 8
          %s360 = scalar_lea.hbm %s1, %s359
          %s361 = sshll.u32 %s360, 4
          %s362 = int_to_ptr.hbm [resolvable:$true] %s361
          %s363 = sshll.u32 %s355, 4
          %s364 = int_to_ptr.vmem [resolvable:$true] %s363
          %369 = dma.hbm_to_vmem [thread:$0]  %s362, 256, %s364, %s352, 128, 128, 8
        $region48: #{tpu_custom_call.1} parent=39 // pred_fallthru
          _
        // Predicated region
        $region49: #{tpu_custom_call.1} parent=39 // pred_check
          %p370 = pneg %p98
        $region50: #{tpu_custom_call.1} parent=39 // pred_check_branch
          %372 = sbr.rel (%p370) target = $region52
        $region51: #{tpu_custom_call.1} parent=39 // pred_region
          %s373 = sand.u32 %s26, 1
          %s374 = scalar_lea.sflag [#allocation9], %s373
          %s375 = sand.u32 %s88, 1
          %s376 = smul.addr %s375, 16
          %s377 = scalar_lea.vmem [#allocation10], %s376
          %s378 = smul.u32 2, %s26
          %380 = vsyncadd %s374, 0
          %s381 = smul.addr %s378, 8
          %s382 = scalar_lea.hbm %s2, %s381
          %s383 = sshll.u32 %s382, 4
          %s384 = int_to_ptr.hbm [resolvable:$true] %s383
          %s385 = sshll.u32 %s377, 4
          %s386 = int_to_ptr.vmem [resolvable:$true] %s385
          %391 = dma.hbm_to_vmem [thread:$0]  %s384, 256, %s386, %s374, 128, 128, 8
        $region52: #{tpu_custom_call.1} parent=39 // pred_fallthru
          _
      $region40: #{tpu_custom_call.1} parent=5 // pred_fallthru
        _
      %p392 = scmp.le.s32.totalorder 1, %s26
      %p393 = scmp.lt.s32.totalorder %s26, 3
      %p394 = pnand %p392, %p393
      %p395 = pneg %p394
      // Predicated region
      $region53: #{tpu_custom_call.1} parent=5 // pred_check
        _
      $region54: #{tpu_custom_call.1} parent=5 // pred_check_branch
        %397 = sbr.rel (%p394) target = $region56
      $region55: #{tpu_custom_call.1} parent=5 // pred_region
        %s398 = ssub.s32 %s26, 1
        %s399 = sand.u32 %s39, 1
        %s400 = scalar_lea.sflag [#allocation6], %s399
        %s401 = sand.u32 %s39, 1
        %s402 = smul.addr %s401, 16
        %s403 = scalar_lea.vmem [#allocation5], %s402
        // Predicated region
        $region57: #{tpu_custom_call.1} parent=55 // pred_check
          %p404 = pneg %p52
        $region58: #{tpu_custom_call.1} parent=55 // pred_check_branch
          %406 = sbr.rel (%p404) target = $region60
        $region59: #{tpu_custom_call.1} parent=55 // pred_region
          %408 = dma.done %s400, 256
        $region60: #{tpu_custom_call.1} parent=55 // pred_fallthru
          _
        %s409 = sand.u32 %s31, 1
        %s410 = scalar_lea.sflag [#allocation9], %s409
        %s411 = sand.u32 %s65, 1
        %s412 = smul.addr %s411, 16
        %s413 = scalar_lea.vmem [#allocation8], %s412
        // Predicated region
        $region61: #{tpu_custom_call.1} parent=55 // pred_check
          %p414 = pneg %p78
        $region62: #{tpu_custom_call.1} parent=55 // pred_check_branch
          %416 = sbr.rel (%p414) target = $region64
        $region63: #{tpu_custom_call.1} parent=55 // pred_region
          %418 = dma.done %s410, 256
        $region64: #{tpu_custom_call.1} parent=55 // pred_fallthru
          _
        %s419 = sand.u32 %s31, 1
        %s420 = scalar_lea.sflag [#allocation9], %s419
        %s421 = sand.u32 %s91, 1
        %s422 = smul.addr %s421, 16
        %s423 = scalar_lea.vmem [#allocation10], %s422
        // Predicated region
        $region65: #{tpu_custom_call.1} parent=55 // pred_check
          %p424 = pneg %p104
        $region66: #{tpu_custom_call.1} parent=55 // pred_check_branch
          %426 = sbr.rel (%p424) target = $region68
        $region67: #{tpu_custom_call.1} parent=55 // pred_region
          %428 = dma.done %s420, 256
        $region68: #{tpu_custom_call.1} parent=55 // pred_fallthru
          _
        // Predicated region
        $region69: #{tpu_custom_call.1} parent=55 // pred_check
          %p429 = pneg %p125
        $region70: #{tpu_custom_call.1} parent=55 // pred_check_branch
          %431 = sbr.rel (%p429) target = $region72
        $region71: #{tpu_custom_call.1} parent=55 // pred_region
          %433 = dma.done [#allocation12], 1024
        $region72: #{tpu_custom_call.1} parent=55 // pred_fallthru
          _
        // Predicated region
        $region73: #{tpu_custom_call.1} parent=55 // pred_check
          %p434 = pneg %p146
        $region74: #{tpu_custom_call.1} parent=55 // pred_check_branch
          %436 = sbr.rel (%p434) target = $region76
        $region75: #{tpu_custom_call.1} parent=55 // pred_region
          %438 = dma.done [#allocation12], 1024
        $region76: #{tpu_custom_call.1} parent=55 // pred_fallthru
          _
        // Predicated region
        $region77: #{tpu_custom_call.1} parent=55 // pred_check
          %p439 = pneg %p167
        $region78: #{tpu_custom_call.1} parent=55 // pred_check_branch
          %441 = sbr.rel (%p439) target = $region80
        $region79: #{tpu_custom_call.1} parent=55 // pred_region
          %443 = dma.done [#allocation15], 1024
        $region80: #{tpu_custom_call.1} parent=55 // pred_fallthru
          _
        %s444 = sand.u32 %s39, 1
        %s445 = scalar_lea.sflag [#allocation6], %s444
        %s446 = sand.u32 %s39, 1
        %s447 = smul.addr %s446, 16
        %s448 = scalar_lea.vmem [#allocation5], %s447
        %p449 = pneg %p52
        %p450 = pneg %p49
        %s451 = sand.u32 %s31, 1
        %s452 = scalar_lea.sflag [#allocation9], %s451
        %s453 = sand.u32 %s65, 1
        %s454 = smul.addr %s453, 16
        %s455 = scalar_lea.vmem [#allocation8], %s454
        %p456 = pneg %p78
        %p457 = pneg %p75
        %s458 = sand.u32 %s31, 1
        %s459 = scalar_lea.sflag [#allocation9], %s458
        %s460 = sand.u32 %s91, 1
        %s461 = smul.addr %s460, 16
        %s462 = scalar_lea.vmem [#allocation10], %s461
        %p463 = pneg %p104
        %p464 = pneg %p101
        %p465 = pneg %p125
        %p466 = pneg %p122
        %p467 = pneg %p146
        %p468 = pneg %p143
        %p469 = pneg %p167
        %p470 = pneg %p164
        %p471 = pneg %p188
        %p472 = pneg %p185
        %p473 = pneg %p209
        %p474 = pneg %p206
        %p475 = pneg %p230
        %p476 = pneg %p227
        %p477 = pneg %p256
        %p478 = pneg %p253
        %s479 = sand.u32 %s243, 1
        %s480 = scalar_lea.sflag [#allocation7], %s479
        %s481 = sand.u32 %s243, 1
        %s482 = smul.addr %s481, 16
        %s483 = scalar_lea.vmem [#allocation16], %s482
        %s484 = smul.u32 2, %s31
        %s485 = smul.u32 2, %s31
        %s486 = smul.u32 2, %s31
        %s487 = smul.u32 2, %s31
        %v488 = vld [vmem:[%s403] sm:$0xff]
        %v489 = vld [vmem:[%s403 + $0x8] sm:$0xff]
        %v490 = vld [vmem:[#allocation11] sm:$0xff]
        %v491 = vld [vmem:[#allocation11 + $0x8] sm:$0xff]
        %v492 = vld [vmem:[#allocation11 + $0x10] sm:$0xff]
        %v493 = vld [vmem:[#allocation11 + $0x18] sm:$0xff]
        %v494 = vld [vmem:[#allocation11 + $0x20] sm:$0xff]
        %v495 = vld [vmem:[#allocation11 + $0x28] sm:$0xff]
        %v496 = vld [vmem:[#allocation11 + $0x30] sm:$0xff]
        %v497 = vld [vmem:[#allocation11 + $0x38] sm:$0xff]
        %v498 = vld [vmem:[%s6] sm:$0x1]
        %v500 = vperm.slane %v498, 0
        %vm502 = vcmask 523264
        %v504 = vsel %vm502, %v488, 0
        %v507 = vsel %vm502, %v489, 0
        %509 = vmatpush.msra.mxu0 0.0
        %510 = vmatpush.msra.mxu0 0.0
        %511 = vmatpush.msra.mxu0 0.0
        %512 = vmatpush.msra.mxu0 0.0
        %513 = vmatpush.msra.mxu0 0.0
        %514 = vmatpush.msra.mxu0 0.0
        %515 = vmatpush.msra.mxu0 0.0
        %516 = vmatpush.msra.mxu0 0.0
        %517 = vmatpush.msra.mxu0 %v497
        %518 = vmatpush.msra.mxu0 %v496
        %519 = vmatpush.msra.mxu0 %v495
        %520 = vmatpush.msra.mxu0 %v494
        %521 = vmatpush.msra.mxu0 %v493
        %522 = vmatpush.msra.mxu0 %v492
        %523 = vmatpush.msra.mxu0 %v491
        %524 = vmatpush.msra.mxu0 %v490
        %525 = vmatmul.f32.gmra.mxu0 %v504
        %v526 = vpop.f32.mrf.mxu0
        %v527 = vadd.f32 %v500, %v526
        %528 = vmatmul.f32.gmra.mxu0 %v507
        %v529 = vpop.f32.mrf.mxu0
        %v530 = vadd.f32 %v500, %v529
        %531 = vdwg.mxu0
        %532 = vst [vmem:[#allocation2] sm:$0xff] %v527
        %533 = vst [vmem:[#allocation2 + $0x8] sm:$0xff] %v530
        %v534 = vld [vmem:[%s413] sm:$0xff]
        %v535 = vld [vmem:[%s413 + $0x8] sm:$0xff]
        %v536 = vld [vmem:[#allocation13] sm:$0xff]
        %v537 = vld [vmem:[#allocation13 + $0x8] sm:$0xff]
        %v538 = vld [vmem:[#allocation13 + $0x10] sm:$0xff]
        %v539 = vld [vmem:[#allocation13 + $0x18] sm:$0xff]
        %v540 = vld [vmem:[#allocation13 + $0x20] sm:$0xff]
        %v541 = vld [vmem:[#allocation13 + $0x28] sm:$0xff]
        %v542 = vld [vmem:[#allocation13 + $0x30] sm:$0xff]
        %v543 = vld [vmem:[#allocation13 + $0x38] sm:$0xff]
        %v544 = vld [vmem:[%s7] sm:$0x1]
        %v546 = vperm.slane %v544, 0
        %v549 = vsel %vm502, %v534, 0
        %v552 = vsel %vm502, %v535, 0
        %554 = vmatpush.msra.mxu0 0.0
        %555 = vmatpush.msra.mxu0 0.0
        %556 = vmatpush.msra.mxu0 0.0
        %557 = vmatpush.msra.mxu0 0.0
        %558 = vmatpush.msra.mxu0 0.0
        %559 = vmatpush.msra.mxu0 0.0
        %560 = vmatpush.msra.mxu0 0.0
        %561 = vmatpush.msra.mxu0 0.0
        %562 = vmatpush.msra.mxu0 %v543
        %563 = vmatpush.msra.mxu0 %v542
        %564 = vmatpush.msra.mxu0 %v541
        %565 = vmatpush.msra.mxu0 %v540
        %566 = vmatpush.msra.mxu0 %v539
        %567 = vmatpush.msra.mxu0 %v538
        %568 = vmatpush.msra.mxu0 %v537
        %569 = vmatpush.msra.mxu0 %v536
        %570 = vmatmul.f32.gmra.mxu0 %v549
        %v571 = vpop.f32.mrf.mxu0
        %v572 = vadd.f32 %v546, %v571
        %573 = vmatmul.f32.gmra.mxu0 %v552
        %v574 = vpop.f32.mrf.mxu0
        %v575 = vadd.f32 %v546, %v574
        %576 = vdwg.mxu0
        %577 = vst [vmem:[#allocation3] sm:$0xff] %v572
        %578 = vst [vmem:[#allocation3 + $0x8] sm:$0xff] %v575
        %v579 = vld [vmem:[%s423] sm:$0xff]
        %v580 = vld [vmem:[%s423 + $0x8] sm:$0xff]
        %v581 = vld [vmem:[#allocation14] sm:$0xff]
        %v582 = vld [vmem:[#allocation14 + $0x8] sm:$0xff]
        %v583 = vld [vmem:[#allocation14 + $0x10] sm:$0xff]
        %v584 = vld [vmem:[#allocation14 + $0x18] sm:$0xff]
        %v585 = vld [vmem:[#allocation14 + $0x20] sm:$0xff]
        %v586 = vld [vmem:[#allocation14 + $0x28] sm:$0xff]
        %v587 = vld [vmem:[#allocation14 + $0x30] sm:$0xff]
        %v588 = vld [vmem:[#allocation14 + $0x38] sm:$0xff]
        %v589 = vld [vmem:[%s8] sm:$0x1]
        %v591 = vperm.slane %v589, 0
        %v594 = vsel %vm502, %v579, 0
        %v597 = vsel %vm502, %v580, 0
        %599 = vmatpush.msra.mxu0 0.0
        %600 = vmatpush.msra.mxu0 0.0
        %601 = vmatpush.msra.mxu0 0.0
        %602 = vmatpush.msra.mxu0 0.0
        %603 = vmatpush.msra.mxu0 0.0
        %604 = vmatpush.msra.mxu0 0.0
        %605 = vmatpush.msra.mxu0 0.0
        %606 = vmatpush.msra.mxu0 0.0
        %607 = vmatpush.msra.mxu0 %v588
        %608 = vmatpush.msra.mxu0 %v587
        %609 = vmatpush.msra.mxu0 %v586
        %610 = vmatpush.msra.mxu0 %v585
        %611 = vmatpush.msra.mxu0 %v584
        %612 = vmatpush.msra.mxu0 %v583
        %613 = vmatpush.msra.mxu0 %v582
        %614 = vmatpush.msra.mxu0 %v581
        %615 = vmatmul.f32.gmra.mxu0 %v594
        %v616 = vpop.f32.mrf.mxu0
        %v617 = vadd.f32 %v591, %v616
        %618 = vmatmul.f32.gmra.mxu0 %v597
        %v619 = vpop.f32.mrf.mxu0
        %v620 = vadd.f32 %v591, %v619
        %621 = vdwg.mxu0
        %622 = vst [vmem:[#allocation4] sm:$0xff] %v617
        %623 = vst [vmem:[#allocation4 + $0x8] sm:$0xff] %v620
        %v624 = vld [vmem:[#allocation2] sm:$0xff]
        %v625 = vld [vmem:[#allocation3] sm:$0xff]
        %v626 = vld [vmem:[#allocation4] sm:$0xff]
        %vm627 = vcmask 261120
        %v629 = vsel %vm627, %v624, 0
        %v632 = vsel %vm627, %v625, 0
        %634 = vmatpush.xpose.msra.mxu0 0.0
        %635 = vmatpush.xpose.msra.mxu0 0.0
        %636 = vmatpush.xpose.msra.mxu0 0.0
        %637 = vmatpush.xpose.msra.mxu0 0.0
        %638 = vmatpush.xpose.msra.mxu0 0.0
        %639 = vmatpush.xpose.msra.mxu0 0.0
        %640 = vmatpush.xpose.msra.mxu0 0.0
        %641 = vmatpush.xpose.msra.mxu0 0.0
        %642 = vmatpush.xpose.msra.mxu0 0.0
        %643 = vmatpush.xpose.msra.mxu0 0.0
        %644 = vmatpush.xpose.msra.mxu0 0.0
        %645 = vmatpush.xpose.msra.mxu0 0.0
        %646 = vmatpush.xpose.msra.mxu0 0.0
        %647 = vmatpush.xpose.msra.mxu0 0.0
        %648 = vmatpush.xpose.msra.mxu0 0.0
        %649 = vmatpush.xpose.msra.mxu0 %v632
        %650 = vmatmul.f32.gmra.mxu0 %v629
        %v651 = vpop.f32.mrf.mxu0
        %v652 = vadd.f32 0.0, %v651
        %653 = vdwg.mxu0
        %vm654 = vcmask 64512
        %v655 = vsel %vm654, %v652, -inf
        %656 = vmax.xlane.f32.xlu0 %v655
        %v657 = vpop.xlane.xlu0 %656
        %v658 = vsub.f32 %v652, %v657
        %v659 = vmul.f32 %v658, 1.442695
        %v660 = vpow.pop %v659
        %v661 = vsel %vm654, %v660, 0.0
        %662 = vadd.xlane.f32.xlu0 %v661
        %v663 = vpop.xlane.xlu0 %662
        %v664 = vrcp.pop %v663
        %v665 = vmul.f32 %v660, %v664
        %v667 = vsel %vm654, %v665, 0
        %669 = vmatpush.msra.mxu0 0.0
        %670 = vmatpush.msra.mxu0 0.0
        %671 = vmatpush.msra.mxu0 0.0
        %672 = vmatpush.msra.mxu0 0.0
        %673 = vmatpush.msra.mxu0 0.0
        %674 = vmatpush.msra.mxu0 0.0
        %675 = vmatpush.msra.mxu0 0.0
        %676 = vmatpush.msra.mxu0 0.0
        %677 = vmatpush.msra.mxu0 0.0
        %678 = vmatpush.msra.mxu0 0.0
        %679 = vmatpush.msra.mxu0 0.0
        %680 = vmatpush.msra.mxu0 0.0
        %681 = vmatpush.msra.mxu0 0.0
        %682 = vmatpush.msra.mxu0 0.0
        %683 = vmatpush.msra.mxu0 0.0
        %684 = vmatpush.msra.mxu0 %v626
        %685 = vmatmul.f32.gmra.mxu0 %v667
        %v686 = vpop.f32.mrf.mxu0
        %v687 = vadd.f32 0.0, %v686
        %688 = vdwg.mxu0
        %689 = vrot.lane.b32.xlu0 %v624, 96
        %v690 = vpop.permute.xlu0 %689
        %691 = vrot.lane.b32.xlu0 %v625, 96
        %v692 = vpop.permute.xlu0 %691
        %v693 = vsel %vm627, %v690, 0
        %v695 = vsel %vm627, %v692, 0
        %697 = vmatpush.xpose.msra.mxu0 0.0
        %698 = vmatpush.xpose.msra.mxu0 0.0
        %699 = vmatpush.xpose.msra.mxu0 0.0
        %700 = vmatpush.xpose.msra.mxu0 0.0
        %701 = vmatpush.xpose.msra.mxu0 0.0
        %702 = vmatpush.xpose.msra.mxu0 0.0
        %703 = vmatpush.xpose.msra.mxu0 0.0
        %704 = vmatpush.xpose.msra.mxu0 0.0
        %705 = vmatpush.xpose.msra.mxu0 0.0
        %706 = vmatpush.xpose.msra.mxu0 0.0
        %707 = vmatpush.xpose.msra.mxu0 0.0
        %708 = vmatpush.xpose.msra.mxu0 0.0
        %709 = vmatpush.xpose.msra.mxu0 0.0
        %710 = vmatpush.xpose.msra.mxu0 0.0
        %711 = vmatpush.xpose.msra.mxu0 0.0
        %712 = vmatpush.xpose.msra.mxu0 %v695
        %713 = vmatmul.f32.gmra.mxu0 %v693
        %v714 = vpop.f32.mrf.mxu0
        %v715 = vadd.f32 0.0, %v714
        %716 = vdwg.mxu0
        %v717 = vsel %vm654, %v715, -inf
        %718 = vmax.xlane.f32.xlu0 %v717
        %v719 = vpop.xlane.xlu0 %718
        %v720 = vsub.f32 %v715, %v719
        %v721 = vmul.f32 %v720, 1.442695
        %v722 = vpow.pop %v721
        %v723 = vsel %vm654, %v722, 0.0
        %724 = vadd.xlane.f32.xlu0 %v723
        %v725 = vpop.xlane.xlu0 %724
        %v726 = vrcp.pop %v725
        %v727 = vmul.f32 %v722, %v726
        %729 = vrot.lane.b32.xlu0 %v626, 96
        %v730 = vpop.permute.xlu0 %729
        %v733 = vsel %vm654, %v727, 0
        %735 = vmatpush.msra.mxu0 0.0
        %736 = vmatpush.msra.mxu0 0.0
        %737 = vmatpush.msra.mxu0 0.0
        %738 = vmatpush.msra.mxu0 0.0
        %739 = vmatpush.msra.mxu0 0.0
        %740 = vmatpush.msra.mxu0 0.0
        %741 = vmatpush.msra.mxu0 0.0
        %742 = vmatpush.msra.mxu0 0.0
        %743 = vmatpush.msra.mxu0 0.0
        %744 = vmatpush.msra.mxu0 0.0
        %745 = vmatpush.msra.mxu0 0.0
        %746 = vmatpush.msra.mxu0 0.0
        %747 = vmatpush.msra.mxu0 0.0
        %748 = vmatpush.msra.mxu0 0.0
        %749 = vmatpush.msra.mxu0 0.0
        %750 = vmatpush.msra.mxu0 %v730
        %751 = vmatmul.f32.gmra.mxu0 %v733
        %v752 = vpop.f32.mrf.mxu0
        %v753 = vadd.f32 0.0, %v752
        %754 = vdwg.mxu0
        %755 = vrot.lane.b32.xlu0 %v624, 64
        %v756 = vpop.permute.xlu0 %755
        %757 = vrot.lane.b32.xlu0 %v625, 64
        %v758 = vpop.permute.xlu0 %757
        %v759 = vsel %vm627, %v756, 0
        %v761 = vsel %vm627, %v758, 0
        %763 = vmatpush.xpose.msra.mxu0 0.0
        %764 = vmatpush.xpose.msra.mxu0 0.0
        %765 = vmatpush.xpose.msra.mxu0 0.0
        %766 = vmatpush.xpose.msra.mxu0 0.0
        %767 = vmatpush.xpose.msra.mxu0 0.0
        %768 = vmatpush.xpose.msra.mxu0 0.0
        %769 = vmatpush.xpose.msra.mxu0 0.0
        %770 = vmatpush.xpose.msra.mxu0 0.0
        %771 = vmatpush.xpose.msra.mxu0 0.0
        %772 = vmatpush.xpose.msra.mxu0 0.0
        %773 = vmatpush.xpose.msra.mxu0 0.0
        %774 = vmatpush.xpose.msra.mxu0 0.0
        %775 = vmatpush.xpose.msra.mxu0 0.0
        %776 = vmatpush.xpose.msra.mxu0 0.0
        %777 = vmatpush.xpose.msra.mxu0 0.0
        %778 = vmatpush.xpose.msra.mxu0 %v761
        %779 = vmatmul.f32.gmra.mxu0 %v759
        %v780 = vpop.f32.mrf.mxu0
        %v781 = vadd.f32 0.0, %v780
        %782 = vdwg.mxu0
        %v783 = vsel %vm654, %v781, -inf
        %784 = vmax.xlane.f32.xlu0 %v783
        %v785 = vpop.xlane.xlu0 %784
        %v786 = vsub.f32 %v781, %v785
        %v787 = vmul.f32 %v786, 1.442695
        %v788 = vpow.pop %v787
        %v789 = vsel %vm654, %v788, 0.0
        %790 = vadd.xlane.f32.xlu0 %v789
        %v791 = vpop.xlane.xlu0 %790
        %v792 = vrcp.pop %v791
        %v793 = vmul.f32 %v788, %v792
        %794 = vrot.lane.b32.xlu0 %v626, 64
        %v795 = vpop.permute.xlu0 %794
        %v798 = vsel %vm654, %v793, 0
        %800 = vmatpush.msra.mxu0 0.0
        %801 = vmatpush.msra.mxu0 0.0
        %802 = vmatpush.msra.mxu0 0.0
        %803 = vmatpush.msra.mxu0 0.0
        %804 = vmatpush.msra.mxu0 0.0
        %805 = vmatpush.msra.mxu0 0.0
        %806 = vmatpush.msra.mxu0 0.0
        %807 = vmatpush.msra.mxu0 0.0
        %808 = vmatpush.msra.mxu0 0.0
        %809 = vmatpush.msra.mxu0 0.0
        %810 = vmatpush.msra.mxu0 0.0
        %811 = vmatpush.msra.mxu0 0.0
        %812 = vmatpush.msra.mxu0 0.0
        %813 = vmatpush.msra.mxu0 0.0
        %814 = vmatpush.msra.mxu0 0.0
        %815 = vmatpush.msra.mxu0 %v795
        %816 = vmatmul.f32.gmra.mxu0 %v798
        %v817 = vpop.f32.mrf.mxu0
        %v818 = vadd.f32 0.0, %v817
        %819 = vdwg.mxu0
        %820 = vrot.lane.b32.xlu0 %v624, 32
        %v821 = vpop.permute.xlu0 %820
        %822 = vrot.lane.b32.xlu0 %v625, 32
        %v823 = vpop.permute.xlu0 %822
        %v824 = vsel %vm627, %v821, 0
        %v826 = vsel %vm627, %v823, 0
        %828 = vmatpush.xpose.msra.mxu0 0.0
        %829 = vmatpush.xpose.msra.mxu0 0.0
        %830 = vmatpush.xpose.msra.mxu0 0.0
        %831 = vmatpush.xpose.msra.mxu0 0.0
        %832 = vmatpush.xpose.msra.mxu0 0.0
        %833 = vmatpush.xpose.msra.mxu0 0.0
        %834 = vmatpush.xpose.msra.mxu0 0.0
        %835 = vmatpush.xpose.msra.mxu0 0.0
        %836 = vmatpush.xpose.msra.mxu0 0.0
        %837 = vmatpush.xpose.msra.mxu0 0.0
        %838 = vmatpush.xpose.msra.mxu0 0.0
        %839 = vmatpush.xpose.msra.mxu0 0.0
        %840 = vmatpush.xpose.msra.mxu0 0.0
        %841 = vmatpush.xpose.msra.mxu0 0.0
        %842 = vmatpush.xpose.msra.mxu0 0.0
        %843 = vmatpush.xpose.msra.mxu0 %v826
        %844 = vmatmul.f32.gmra.mxu0 %v824
        %v845 = vpop.f32.mrf.mxu0
        %v846 = vadd.f32 0.0, %v845
        %847 = vdwg.mxu0
        %v848 = vsel %vm654, %v846, -inf
        %849 = vmax.xlane.f32.xlu0 %v848
        %v850 = vpop.xlane.xlu0 %849
        %v851 = vsub.f32 %v846, %v850
        %v852 = vmul.f32 %v851, 1.442695
        %v853 = vpow.pop %v852
        %v854 = vsel %vm654, %v853, 0.0
        %855 = vadd.xlane.f32.xlu0 %v854
        %v856 = vpop.xlane.xlu0 %855
        %v857 = vrcp.pop %v856
        %v858 = vmul.f32 %v853, %v857
        %859 = vrot.lane.b32.xlu0 %v626, 32
        %v860 = vpop.permute.xlu0 %859
        %v863 = vsel %vm654, %v858, 0
        %865 = vmatpush.msra.mxu0 0.0
        %866 = vmatpush.msra.mxu0 0.0
        %867 = vmatpush.msra.mxu0 0.0
        %868 = vmatpush.msra.mxu0 0.0
        %869 = vmatpush.msra.mxu0 0.0
        %870 = vmatpush.msra.mxu0 0.0
        %871 = vmatpush.msra.mxu0 0.0
        %872 = vmatpush.msra.mxu0 0.0
        %873 = vmatpush.msra.mxu0 0.0
        %874 = vmatpush.msra.mxu0 0.0
        %875 = vmatpush.msra.mxu0 0.0
        %876 = vmatpush.msra.mxu0 0.0
        %877 = vmatpush.msra.mxu0 0.0
        %878 = vmatpush.msra.mxu0 0.0
        %879 = vmatpush.msra.mxu0 0.0
        %880 = vmatpush.msra.mxu0 %v860
        %881 = vmatmul.f32.gmra.mxu0 %v863
        %v882 = vpop.f32.mrf.mxu0
        %v883 = vadd.f32 0.0, %v882
        %884 = vdwg.mxu0
        %886 = vrot.lane.b32.xlu0 %v753, 32
        %v887 = vpop.permute.xlu0 %886
        %890 = vrot.lane.b32.xlu0 %v818, 64
        %v891 = vpop.permute.xlu0 %890
        %894 = vrot.lane.b32.xlu0 %v883, 96
        %v895 = vpop.permute.xlu0 %894
        %v897 = vsel %vm627, %v687, %v887
        %v898 = vsel %vm502, %v897, %v891
        %vm899 = vcmask 785408
        %v900 = vsel %vm899, %v898, %v895
        %901 = vst [vmem:[%s483] sm:$0xff] %v900
        %v902 = vld [vmem:[#allocation2 + $0x8] sm:$0xff]
        %v903 = vld [vmem:[#allocation3 + $0x8] sm:$0xff]
        %v904 = vld [vmem:[#allocation4 + $0x8] sm:$0xff]
        %v906 = vsel %vm627, %v902, 0
        %v909 = vsel %vm627, %v903, 0
        %911 = vmatpush.xpose.msra.mxu0 0.0
        %912 = vmatpush.xpose.msra.mxu0 0.0
        %913 = vmatpush.xpose.msra.mxu0 0.0
        %914 = vmatpush.xpose.msra.mxu0 0.0
        %915 = vmatpush.xpose.msra.mxu0 0.0
        %916 = vmatpush.xpose.msra.mxu0 0.0
        %917 = vmatpush.xpose.msra.mxu0 0.0
        %918 = vmatpush.xpose.msra.mxu0 0.0
        %919 = vmatpush.xpose.msra.mxu0 0.0
        %920 = vmatpush.xpose.msra.mxu0 0.0
        %921 = vmatpush.xpose.msra.mxu0 0.0
        %922 = vmatpush.xpose.msra.mxu0 0.0
        %923 = vmatpush.xpose.msra.mxu0 0.0
        %924 = vmatpush.xpose.msra.mxu0 0.0
        %925 = vmatpush.xpose.msra.mxu0 0.0
        %926 = vmatpush.xpose.msra.mxu0 %v909
        %927 = vmatmul.f32.gmra.mxu0 %v906
        %v928 = vpop.f32.mrf.mxu0
        %v929 = vadd.f32 0.0, %v928
        %930 = vdwg.mxu0
        %v931 = vsel %vm654, %v929, -inf
        %932 = vmax.xlane.f32.xlu0 %v931
        %v933 = vpop.xlane.xlu0 %932
        %v934 = vsub.f32 %v929, %v933
        %v935 = vmul.f32 %v934, 1.442695
        %v936 = vpow.pop %v935
        %v937 = vsel %vm654, %v936, 0.0
        %938 = vadd.xlane.f32.xlu0 %v937
        %v939 = vpop.xlane.xlu0 %938
        %v940 = vrcp.pop %v939
        %v941 = vmul.f32 %v936, %v940
        %v943 = vsel %vm654, %v941, 0
        %945 = vmatpush.msra.mxu0 0.0
        %946 = vmatpush.msra.mxu0 0.0
        %947 = vmatpush.msra.mxu0 0.0
        %948 = vmatpush.msra.mxu0 0.0
        %949 = vmatpush.msra.mxu0 0.0
        %950 = vmatpush.msra.mxu0 0.0
        %951 = vmatpush.msra.mxu0 0.0
        %952 = vmatpush.msra.mxu0 0.0
        %953 = vmatpush.msra.mxu0 0.0
        %954 = vmatpush.msra.mxu0 0.0
        %955 = vmatpush.msra.mxu0 0.0
        %956 = vmatpush.msra.mxu0 0.0
        %957 = vmatpush.msra.mxu0 0.0
        %958 = vmatpush.msra.mxu0 0.0
        %959 = vmatpush.msra.mxu0 0.0
        %960 = vmatpush.msra.mxu0 %v904
        %961 = vmatmul.f32.gmra.mxu0 %v943
        %v962 = vpop.f32.mrf.mxu0
        %v963 = vadd.f32 0.0, %v962
        %964 = vdwg.mxu0
        %965 = vrot.lane.b32.xlu0 %v902, 96
        %v966 = vpop.permute.xlu0 %965
        %967 = vrot.lane.b32.xlu0 %v903, 96
        %v968 = vpop.permute.xlu0 %967
        %v969 = vsel %vm627, %v966, 0
        %v971 = vsel %vm627, %v968, 0
        %973 = vmatpush.xpose.msra.mxu0 0.0
        %974 = vmatpush.xpose.msra.mxu0 0.0
        %975 = vmatpush.xpose.msra.mxu0 0.0
        %976 = vmatpush.xpose.msra.mxu0 0.0
        %977 = vmatpush.xpose.msra.mxu0 0.0
        %978 = vmatpush.xpose.msra.mxu0 0.0
        %979 = vmatpush.xpose.msra.mxu0 0.0
        %980 = vmatpush.xpose.msra.mxu0 0.0
        %981 = vmatpush.xpose.msra.mxu0 0.0
        %982 = vmatpush.xpose.msra.mxu0 0.0
        %983 = vmatpush.xpose.msra.mxu0 0.0
        %984 = vmatpush.xpose.msra.mxu0 0.0
        %985 = vmatpush.xpose.msra.mxu0 0.0
        %986 = vmatpush.xpose.msra.mxu0 0.0
        %987 = vmatpush.xpose.msra.mxu0 0.0
        %988 = vmatpush.xpose.msra.mxu0 %v971
        %989 = vmatmul.f32.gmra.mxu0 %v969
        %v990 = vpop.f32.mrf.mxu0
        %v991 = vadd.f32 0.0, %v990
        %992 = vdwg.mxu0
        %v993 = vsel %vm654, %v991, -inf
        %994 = vmax.xlane.f32.xlu0 %v993
        %v995 = vpop.xlane.xlu0 %994
        %v996 = vsub.f32 %v991, %v995
        %v997 = vmul.f32 %v996, 1.442695
        %v998 = vpow.pop %v997
        %v999 = vsel %vm654, %v998, 0.0
        %1000 = vadd.xlane.f32.xlu0 %v999
        %v1001 = vpop.xlane.xlu0 %1000
        %v1002 = vrcp.pop %v1001
        %v1003 = vmul.f32 %v998, %v1002
        %1005 = vrot.lane.b32.xlu0 %v904, 96
        %v1006 = vpop.permute.xlu0 %1005
        %v1009 = vsel %vm654, %v1003, 0
        %1011 = vmatpush.msra.mxu0 0.0
        %1012 = vmatpush.msra.mxu0 0.0
        %1013 = vmatpush.msra.mxu0 0.0
        %1014 = vmatpush.msra.mxu0 0.0
        %1015 = vmatpush.msra.mxu0 0.0
        %1016 = vmatpush.msra.mxu0 0.0
        %1017 = vmatpush.msra.mxu0 0.0
        %1018 = vmatpush.msra.mxu0 0.0
        %1019 = vmatpush.msra.mxu0 0.0
        %1020 = vmatpush.msra.mxu0 0.0
        %1021 = vmatpush.msra.mxu0 0.0
        %1022 = vmatpush.msra.mxu0 0.0
        %1023 = vmatpush.msra.mxu0 0.0
        %1024 = vmatpush.msra.mxu0 0.0
        %1025 = vmatpush.msra.mxu0 0.0
        %1026 = vmatpush.msra.mxu0 %v1006
        %1027 = vmatmul.f32.gmra.mxu0 %v1009
        %v1028 = vpop.f32.mrf.mxu0
        %v1029 = vadd.f32 0.0, %v1028
        %1030 = vdwg.mxu0
        %1031 = vrot.lane.b32.xlu0 %v902, 64
        %v1032 = vpop.permute.xlu0 %1031
        %1033 = vrot.lane.b32.xlu0 %v903, 64
        %v1034 = vpop.permute.xlu0 %1033
        %v1035 = vsel %vm627, %v1032, 0
        %v1037 = vsel %vm627, %v1034, 0
        %1039 = vmatpush.xpose.msra.mxu0 0.0
        %1040 = vmatpush.xpose.msra.mxu0 0.0
        %1041 = vmatpush.xpose.msra.mxu0 0.0
        %1042 = vmatpush.xpose.msra.mxu0 0.0
        %1043 = vmatpush.xpose.msra.mxu0 0.0
        %1044 = vmatpush.xpose.msra.mxu0 0.0
        %1045 = vmatpush.xpose.msra.mxu0 0.0
        %1046 = vmatpush.xpose.msra.mxu0 0.0
        %1047 = vmatpush.xpose.msra.mxu0 0.0
        %1048 = vmatpush.xpose.msra.mxu0 0.0
        %1049 = vmatpush.xpose.msra.mxu0 0.0
        %1050 = vmatpush.xpose.msra.mxu0 0.0
        %1051 = vmatpush.xpose.msra.mxu0 0.0
        %1052 = vmatpush.xpose.msra.mxu0 0.0
        %1053 = vmatpush.xpose.msra.mxu0 0.0
        %1054 = vmatpush.xpose.msra.mxu0 %v1037
        %1055 = vmatmul.f32.gmra.mxu0 %v1035
        %v1056 = vpop.f32.mrf.mxu0
        %v1057 = vadd.f32 0.0, %v1056
        %1058 = vdwg.mxu0
        %v1059 = vsel %vm654, %v1057, -inf
        %1060 = vmax.xlane.f32.xlu0 %v1059
        %v1061 = vpop.xlane.xlu0 %1060
        %v1062 = vsub.f32 %v1057, %v1061
        %v1063 = vmul.f32 %v1062, 1.442695
        %v1064 = vpow.pop %v1063
        %v1065 = vsel %vm654, %v1064, 0.0
        %1066 = vadd.xlane.f32.xlu0 %v1065
        %v1067 = vpop.xlane.xlu0 %1066
        %v1068 = vrcp.pop %v1067
        %v1069 = vmul.f32 %v1064, %v1068
        %1070 = vrot.lane.b32.xlu0 %v904, 64
        %v1071 = vpop.permute.xlu0 %1070
        %v1074 = vsel %vm654, %v1069, 0
        %1076 = vmatpush.msra.mxu0 0.0
        %1077 = vmatpush.msra.mxu0 0.0
        %1078 = vmatpush.msra.mxu0 0.0
        %1079 = vmatpush.msra.mxu0 0.0
        %1080 = vmatpush.msra.mxu0 0.0
        %1081 = vmatpush.msra.mxu0 0.0
        %1082 = vmatpush.msra.mxu0 0.0
        %1083 = vmatpush.msra.mxu0 0.0
        %1084 = vmatpush.msra.mxu0 0.0
        %1085 = vmatpush.msra.mxu0 0.0
        %1086 = vmatpush.msra.mxu0 0.0
        %1087 = vmatpush.msra.mxu0 0.0
        %1088 = vmatpush.msra.mxu0 0.0
        %1089 = vmatpush.msra.mxu0 0.0
        %1090 = vmatpush.msra.mxu0 0.0
        %1091 = vmatpush.msra.mxu0 %v1071
        %1092 = vmatmul.f32.gmra.mxu0 %v1074
        %v1093 = vpop.f32.mrf.mxu0
        %v1094 = vadd.f32 0.0, %v1093
        %1095 = vdwg.mxu0
        %1096 = vrot.lane.b32.xlu0 %v902, 32
        %v1097 = vpop.permute.xlu0 %1096
        %1098 = vrot.lane.b32.xlu0 %v903, 32
        %v1099 = vpop.permute.xlu0 %1098
        %v1100 = vsel %vm627, %v1097, 0
        %v1102 = vsel %vm627, %v1099, 0
        %1104 = vmatpush.xpose.msra.mxu0 0.0
        %1105 = vmatpush.xpose.msra.mxu0 0.0
        %1106 = vmatpush.xpose.msra.mxu0 0.0
        %1107 = vmatpush.xpose.msra.mxu0 0.0
        %1108 = vmatpush.xpose.msra.mxu0 0.0
        %1109 = vmatpush.xpose.msra.mxu0 0.0
        %1110 = vmatpush.xpose.msra.mxu0 0.0
        %1111 = vmatpush.xpose.msra.mxu0 0.0
        %1112 = vmatpush.xpose.msra.mxu0 0.0
        %1113 = vmatpush.xpose.msra.mxu0 0.0
        %1114 = vmatpush.xpose.msra.mxu0 0.0
        %1115 = vmatpush.xpose.msra.mxu0 0.0
        %1116 = vmatpush.xpose.msra.mxu0 0.0
        %1117 = vmatpush.xpose.msra.mxu0 0.0
        %1118 = vmatpush.xpose.msra.mxu0 0.0
        %1119 = vmatpush.xpose.msra.mxu0 %v1102
        %1120 = vmatmul.f32.gmra.mxu0 %v1100
        %v1121 = vpop.f32.mrf.mxu0
        %v1122 = vadd.f32 0.0, %v1121
        %1123 = vdwg.mxu0
        %v1124 = vsel %vm654, %v1122, -inf
        %1125 = vmax.xlane.f32.xlu0 %v1124
        %v1126 = vpop.xlane.xlu0 %1125
        %v1127 = vsub.f32 %v1122, %v1126
        %v1128 = vmul.f32 %v1127, 1.442695
        %v1129 = vpow.pop %v1128
        %v1130 = vsel %vm654, %v1129, 0.0
        %1131 = vadd.xlane.f32.xlu0 %v1130
        %v1132 = vpop.xlane.xlu0 %1131
        %v1133 = vrcp.pop %v1132
        %v1134 = vmul.f32 %v1129, %v1133
        %1135 = vrot.lane.b32.xlu0 %v904, 32
        %v1136 = vpop.permute.xlu0 %1135
        %v1139 = vsel %vm654, %v1134, 0
        %1141 = vmatpush.msra.mxu0 0.0
        %1142 = vmatpush.msra.mxu0 0.0
        %1143 = vmatpush.msra.mxu0 0.0
        %1144 = vmatpush.msra.mxu0 0.0
        %1145 = vmatpush.msra.mxu0 0.0
        %1146 = vmatpush.msra.mxu0 0.0
        %1147 = vmatpush.msra.mxu0 0.0
        %1148 = vmatpush.msra.mxu0 0.0
        %1149 = vmatpush.msra.mxu0 0.0
        %1150 = vmatpush.msra.mxu0 0.0
        %1151 = vmatpush.msra.mxu0 0.0
        %1152 = vmatpush.msra.mxu0 0.0
        %1153 = vmatpush.msra.mxu0 0.0
        %1154 = vmatpush.msra.mxu0 0.0
        %1155 = vmatpush.msra.mxu0 0.0
        %1156 = vmatpush.msra.mxu0 %v1136
        %1157 = vmatmul.f32.gmra.mxu0 %v1139
        %v1158 = vpop.f32.mrf.mxu0
        %v1159 = vadd.f32 0.0, %v1158
        %1160 = vdwg.mxu0
        %1162 = vrot.lane.b32.xlu0 %v1029, 32
        %v1163 = vpop.permute.xlu0 %1162
        %1166 = vrot.lane.b32.xlu0 %v1094, 64
        %v1167 = vpop.permute.xlu0 %1166
        %1170 = vrot.lane.b32.xlu0 %v1159, 96
        %v1171 = vpop.permute.xlu0 %1170
        %v1173 = vsel %vm627, %v963, %v1163
        %v1174 = vsel %vm502, %v1173, %v1167
        %v1175 = vsel %vm899, %v1174, %v1171
        %1176 = vst [vmem:[%s483 + $0x8] sm:$0xff] %v1175
        %s1177 = sand.u32 %s243, 1
        %s1178 = scalar_lea.sflag [#allocation7], %s1177
        %s1179 = sand.u32 %s243, 1
        %s1180 = smul.addr %s1179, 16
        %s1181 = scalar_lea.vmem [#allocation16], %s1180
        // Predicated region
        $region81: #{tpu_custom_call.1} parent=55 // pred_check
          %p1182 = pneg %p253
        $region82: #{tpu_custom_call.1} parent=55 // pred_check_branch
          %1184 = sbr.rel (%p1182) target = $region84
        $region83: #{tpu_custom_call.1} parent=55 // pred_region
          %s1185 = smul.u32 2, %s31
          %1187 = vsyncadd %s1178, 0
          %s1188 = smul.addr %s1185, 8
          %s1189 = scalar_lea.hbm %s9, %s1188
          %s1190 = sshll.u32 %s1181, 4
          %s1191 = int_to_ptr.vmem [resolvable:$true] %s1190
          %s1192 = sshll.u32 %s1189, 4
          %s1193 = int_to_ptr.hbm [resolvable:$true] %s1192
          %1198 = dma.vmem_to_hbm [thread:$0]  %s1191, 256, %s1193, %s1178, 128, 128, 8
        $region84: #{tpu_custom_call.1} parent=55 // pred_fallthru
          _
      $region56: #{tpu_custom_call.1} parent=5 // pred_fallthru
        _
      %p1199 = scmp.le.s32.totalorder 2, %s26
      // Predicated region
      $region85: #{tpu_custom_call.1} parent=5 // pred_check
        %p1200 = pneg %p1199
      $region86: #{tpu_custom_call.1} parent=5 // pred_check_branch
        %1202 = sbr.rel (%p1200) target = $region88
      $region87: #{tpu_custom_call.1} parent=5 // pred_region
        %s1203 = ssub.s32 %s26, 2
        // Predicated region
        $region89: #{tpu_custom_call.1} parent=87 // pred_check
          %p1204 = pneg %p259
        $region90: #{tpu_custom_call.1} parent=87 // pred_check_branch
          %1206 = sbr.rel (%p1204) target = $region92
        $region91: #{tpu_custom_call.1} parent=87 // pred_region
          %s1207 = sand.u32 %s244, 1
          %s1208 = scalar_lea.sflag [#allocation7], %s1207
          %s1209 = sand.u32 %s244, 1
          %s1210 = smul.addr %s1209, 16
          %s1211 = scalar_lea.vmem [#allocation16], %s1210
          %1213 = dma.done %s1208, 256
        $region92: #{tpu_custom_call.1} parent=87 // pred_fallthru
          _
      $region88: #{tpu_custom_call.1} parent=5 // pred_fallthru
        _
    $region6: #{tpu_custom_call.1} parent=1 // loop_footer
      %s30 = sadd.s32 1, %s26
    $region7: #{tpu_custom_call.1} parent=1 // loop_footer_branch
      %25 = sbr.rel target = $region3
    $region8: #{tpu_custom_call.1} parent=1 // loop_exit
      _
    %1214 = vsyncpa [#allocation6], 1
    %s1215 = scalar_lea.sflag [#allocation6], 1
    %1216 = vsyncpa %s1215, 1
    %1217 = vsyncpa [#allocation9], 1
    %s1218 = scalar_lea.sflag [#allocation9], 1
    %1219 = vsyncpa %s1218, 1
    %1220 = vsyncpa [#allocation12], 1
    %1221 = vsyncpa [#allocation15], 1
    %1222 = vsyncpa [#allocation7], 1
    %s1223 = scalar_lea.sflag [#allocation7], 1
    %1224 = vsyncpa %s1223, 1

// kernel: tpu_custom_call.1
$region0: #{tpu_custom_call.1}
  #allocation0 [shape = 'u32[]', space=smem, size = 0x4, offset = 0x4, fixed_abs, tag = 'smem constant byte address 0x4 - core index']
  #allocation1 [shape = 'u32[72,128]{1,0:T(1,128)}', space=vmem, size = 0x9000, scoped, tag = 'internal scratch']
  #allocation2 [shape = 'f32[16,128]{1,0:T(8,128)}', space=vmem, size = 0x2000, scoped, tag = 'scratch operand']
  #allocation3 [shape = 'f32[16,128]{1,0:T(8,128)}', space=vmem, size = 0x2000, scoped, tag = 'scratch operand']
  #allocation4 [shape = 'f32[16,128]{1,0:T(8,128)}', space=vmem, size = 0x2000, scoped, tag = 'scratch operand']
  %s0 = inlined_call_operand.hbm [shape: f32[32,64], index: 0, kind: input, shape index: {}]
  %s1 = inlined_call_operand.hbm [shape: f32[32,64], index: 1, kind: input, shape index: {}]
  %s2 = inlined_call_operand.hbm [shape: f32[32,64], index: 2, kind: input, shape index: {}]
  %s3 = inlined_call_operand.hbm [shape: f32[64,128], index: 3, kind: input, shape index: {}]
  %s4 = inlined_call_operand.hbm [shape: f32[64,128], index: 4, kind: input, shape index: {}]
  %s5 = inlined_call_operand.hbm [shape: f32[64,128], index: 5, kind: input, shape index: {}]
  %s6 = inlined_call_operand.vmem [shape: f32[1,128], index: 6, kind: input, shape index: {}]
  %s7 = inlined_call_operand.vmem [shape: f32[1,128], index: 7, kind: input, shape index: {}]
  %s8 = inlined_call_operand.vmem [shape: f32[1,128], index: 8, kind: input, shape index: {}]
  %s9 = inlined_call_operand.hbm [shape: f32[32,128], index: 9, kind: output, shape index: {}]
  %s10 = sld [smem:[#allocation0]]
  $region93: #{tpu_custom_call.1} parent=0
    _
  %s12 = ssub.s32 1, %s10
  %s13 = scalar_select 0, %s12, %s10
  $region1: #{tpu_custom_call.1} parent=0
    #allocation5 [shape = 'u8[16384]{0}', space=vmem, size = 0x4000, scoped, tag = 'input window, operand 0']
    #allocation6 [shape = 's32[2]{0}', space=sflag, size = 0x8, scoped, tag = 'scoped memory for tpu_custom_call.1']
    #allocation7 [shape = 's32[2]{0}', space=sflag, size = 0x8, scoped, tag = 'scoped memory for tpu_custom_call.1']
    #allocation8 [shape = 'u8[16384]{0}', space=vmem, size = 0x4000, scoped, tag = 'input window, operand 1']
    #allocation9 [shape = 's32[2]{0}', space=sflag, size = 0x8, scoped, tag = 'scoped memory for tpu_custom_call.1']
    #allocation10 [shape = 'u8[16384]{0}', space=vmem, size = 0x4000, scoped, tag = 'input window, operand 2']
    #allocation11 [shape = 'u8[32768]{0}', space=vmem, size = 0x8000, scoped, tag = 'input window, operand 3, single buffered']
    #allocation12 [shape = 's32[1]{0}', space=sflag, size = 0x4, scoped, tag = 'scoped memory for tpu_custom_call.1']
    #allocation13 [shape = 'u8[32768]{0}', space=vmem, size = 0x8000, scoped, tag = 'input window, operand 4, single buffered']
    #allocation14 [shape = 'u8[32768]{0}', space=vmem, size = 0x8000, scoped, tag = 'input window, operand 5, single buffered']
    #allocation15 [shape = 's32[1]{0}', space=sflag, size = 0x4, scoped, tag = 'scoped memory for tpu_custom_call.1']
    #allocation16 [shape = 'u8[16384]{0}', space=vmem, size = 0x4000, scoped, tag = 'output window, operand 0']
    %14 = vsyncpa [#allocation6], 0
    %s15 = scalar_lea.sflag [#allocation6], 1
    %16 = vsyncpa %s15, 0
    %17 = vsyncpa [#allocation9], 0
    %s18 = scalar_lea.sflag [#allocation9], 1
    %19 = vsyncpa %s18, 0
    %20 = vsyncpa [#allocation12], 0
    %21 = vsyncpa [#allocation15], 0
    %22 = vsyncpa [#allocation7], 0
    %s23 = scalar_lea.sflag [#allocation7], 1
    %24 = vsyncpa %s23, 0
    loop: start=0, step=1, limit=4
    $region2: #{tpu_custom_call.1} parent=1 // loop_pre_header
      _
    $region3: #{tpu_custom_call.1} parent=1 // loop_header
      %s26 = sphi 0, %s30
      %p27 = scmp.ge.s32.totalorder %s26, 4
      %s36 = sphi 0, %s38
      %s39 = sphi 0, %s36
      %s40 = sphi 0, %s39
      %s56 = sphi 0, %s40
      %s62 = sphi 0, %s64
      %s65 = sphi 0, %s62
      %s66 = sphi 0, %s65
      %s82 = sphi 0, %s66
      %s88 = sphi 0, %s90
      %s91 = sphi 0, %s88
      %s92 = sphi 0, %s91
      %s108 = sphi 0, %s92
      %s112 = sphi 0, %s112
      %s114 = sphi 0, %s112
      %s115 = sphi 0, %s114
      %s129 = sphi 0, %s115
      %s133 = sphi 0, %s133
      %s135 = sphi 0, %s133
      %s136 = sphi 0, %s135
      %s150 = sphi 0, %s136
      %s154 = sphi 0, %s154
      %s156 = sphi 0, %s154
      %s157 = sphi 0, %s156
      %s171 = sphi 0, %s157
      %s175 = sphi 0, %s175
      %s177 = sphi 0, %s175
      %s178 = sphi 0, %s177
      %s192 = sphi 0, %s178
      %s196 = sphi 0, %s196
      %s198 = sphi 0, %s196
      %s199 = sphi 0, %s198
      %s213 = sphi 0, %s199
      %s217 = sphi 0, %s217
      %s219 = sphi 0, %s217
      %s220 = sphi 0, %s219
      %s234 = sphi 0, %s220
      %s240 = sphi 0, %s242
      %s243 = sphi 0, %s240
      %s244 = sphi 0, %s243
      %s260 = sphi 0, %s244
    $region4: #{tpu_custom_call.1} parent=1 // loop_header_branch
      %29 = sbr.rel (%p27) target = $region8
    $region5: #{tpu_custom_call.1} parent=1 // loop_body
      %s31 = ssub.s32 %s26, 1
      %s32 = ssub.s32 %s26, 2
      %s33 = sadd.s32 %s26, 1
      %s34 = ssub.s32 %s26, %s33
      %p35 = scmp.eq.s32.totalorder %s34, 0
      %s37 = sadd.s32 %s36, 1
      %s38 = scalar_select %p35, %s36, %s37
      %p41 = pneg %p35
      %p42 = scmp.eq.s32.totalorder %s26, 1
      %p43 = por %p41, %p42
      %p44 = scmp.ne.s32.totalorder %s36, %s39
      %p45 = scmp.eq.s32.totalorder %s26, 0
      %p46 = por %p44, %p45
      %p47 = scmp.ne.s32.totalorder %s36, %s39
      %p48 = scmp.eq.s32.totalorder %s31, 1
      %p49 = por %p47, %p48
      %p50 = scmp.ne.s32.totalorder %s39, %s40
      %p51 = scmp.eq.s32.totalorder %s31, 0
      %p52 = por %p50, %p51
      %p53 = scmp.ne.s32.totalorder %s39, %s40
      %p54 = scmp.eq.s32.totalorder %s32, 1
      %p55 = por %p53, %p54
      %p57 = scmp.ne.s32.totalorder %s40, %s56
      %p58 = scmp.eq.s32.totalorder %s32, 0
      %p59 = por %p57, %p58
      %s60 = ssub.s32 %s26, %s33
      %p61 = scmp.eq.s32.totalorder %s60, 0
      %s63 = sadd.s32 %s62, 1
      %s64 = scalar_select %p61, %s62, %s63
      %p67 = pneg %p61
      %p68 = scmp.eq.s32.totalorder %s26, 1
      %p69 = por %p67, %p68
      %p70 = scmp.ne.s32.totalorder %s62, %s65
      %p71 = scmp.eq.s32.totalorder %s26, 0
      %p72 = por %p70, %p71
      %p73 = scmp.ne.s32.totalorder %s62, %s65
      %p74 = scmp.eq.s32.totalorder %s31, 1
      %p75 = por %p73, %p74
      %p76 = scmp.ne.s32.totalorder %s65, %s66
      %p77 = scmp.eq.s32.totalorder %s31, 0
      %p78 = por %p76, %p77
      %p79 = scmp.ne.s32.totalorder %s65, %s66
      %p80 = scmp.eq.s32.totalorder %s32, 1
      %p81 = por %p79, %p80
      %p83 = scmp.ne.s32.totalorder %s66, %s82
      %p84 = scmp.eq.s32.totalorder %s32, 0
      %p85 = por %p83, %p84
      %s86 = ssub.s32 %s26, %s33
      %p87 = scmp.eq.s32.totalorder %s86, 0
      %s89 = sadd.s32 %s88, 1
      %s90 = scalar_select %p87, %s88, %s89
      %p93 = pneg %p87
      %p94 = scmp.eq.s32.totalorder %s26, 1
      %p95 = por %p93, %p94
      %p96 = scmp.ne.s32.totalorder %s88, %s91
      %p97 = scmp.eq.s32.totalorder %s26, 0
      %p98 = por %p96, %p97
      %p99 = scmp.ne.s32.totalorder %s88, %s91
      %p100 = scmp.eq.s32.totalorder %s31, 1
      %p101 = por %p99, %p100
      %p102 = scmp.ne.s32.totalorder %s91, %s92
      %p103 = scmp.eq.s32.totalorder %s31, 0
      %p104 = por %p102, %p103
      %p105 = scmp.ne.s32.totalorder %s91, %s92
      %p106 = scmp.eq.s32.totalorder %s32, 1
      %p107 = por %p105, %p106
      %p109 = scmp.ne.s32.totalorder %s92, %s108
      %p110 = scmp.eq.s32.totalorder %s32, 0
      %p111 = por %p109, %p110
      %s113 = sadd.s32 %s112, 1
      %p116 = scmp.eq.s32.totalorder %s26, 1
      %p117 = scmp.ne.s32.totalorder %s112, %s114
      %p118 = scmp.eq.s32.totalorder %s26, 0
      %p119 = por %p117, %p118
      %p120 = scmp.ne.s32.totalorder %s112, %s114
      %p121 = scmp.eq.s32.totalorder %s31, 1
      %p122 = por %p120, %p121
      %p123 = scmp.ne.s32.totalorder %s114, %s115
      %p124 = scmp.eq.s32.totalorder %s31, 0
      %p125 = por %p123, %p124
      %p126 = scmp.ne.s32.totalorder %s114, %s115
      %p127 = scmp.eq.s32.totalorder %s32, 1
      %p128 = por %p126, %p127
      %p130 = scmp.ne.s32.totalorder %s115, %s129
      %p131 = scmp.eq.s32.totalorder %s32, 0
      %p132 = por %p130, %p131
      %s134 = sadd.s32 %s133, 1
      %p137 = scmp.eq.s32.totalorder %s26, 1
      %p138 = scmp.ne.s32.totalorder %s133, %s135
      %p139 = scmp.eq.s32.totalorder %s26, 0
      %p140 = por %p138, %p139
      %p141 = scmp.ne.s32.totalorder %s133, %s135
      %p142 = scmp.eq.s32.totalorder %s31, 1
      %p143 = por %p141, %p142
      %p144 = scmp.ne.s32.totalorder %s135, %s136
      %p145 = scmp.eq.s32.totalorder %s31, 0
      %p146 = por %p144, %p145
      %p147 = scmp.ne.s32.totalorder %s135, %s136
      %p148 = scmp.eq.s32.totalorder %s32, 1
      %p149 = por %p147, %p148
      %p151 = scmp.ne.s32.totalorder %s136, %s150
      %p152 = scmp.eq.s32.totalorder %s32, 0
      %p153 = por %p151, %p152
      %s155 = sadd.s32 %s154, 1
      %p158 = scmp.eq.s32.totalorder %s26, 1
      %p159 = scmp.ne.s32.totalorder %s154, %s156
      %p160 = scmp.eq.s32.totalorder %s26, 0
      %p161 = por %p159, %p160
      %p162 = scmp.ne.s32.totalorder %s154, %s156
      %p163 = scmp.eq.s32.totalorder %s31, 1
      %p164 = por %p162, %p163
      %p165 = scmp.ne.s32.totalorder %s156, %s157
      %p166 = scmp.eq.s32.totalorder %s31, 0
      %p167 = por %p165, %p166
      %p168 = scmp.ne.s32.totalorder %s156, %s157
      %p169 = scmp.eq.s32.totalorder %s32, 1
      %p170 = por %p168, %p169
      %p172 = scmp.ne.s32.totalorder %s157, %s171
      %p173 = scmp.eq.s32.totalorder %s32, 0
      %p174 = por %p172, %p173
      %s176 = sadd.s32 %s175, 1
      %p179 = scmp.eq.s32.totalorder %s26, 1
      %p180 = scmp.ne.s32.totalorder %s175, %s177
      %p181 = scmp.eq.s32.totalorder %s26, 0
      %p182 = por %p180, %p181
      %p183 = scmp.ne.s32.totalorder %s175, %s177
      %p184 = scmp.eq.s32.totalorder %s31, 1
      %p185 = por %p183, %p184
      %p186 = scmp.ne.s32.totalorder %s177, %s178
      %p187 = scmp.eq.s32.totalorder %s31, 0
      %p188 = por %p186, %p187
      %p189 = scmp.ne.s32.totalorder %s177, %s178
      %p190 = scmp.eq.s32.totalorder %s32, 1
      %p191 = por %p189, %p190
      %p193 = scmp.ne.s32.totalorder %s178, %s192
      %p194 = scmp.eq.s32.totalorder %s32, 0
      %p195 = por %p193, %p194
      %s197 = sadd.s32 %s196, 1
      %p200 = scmp.eq.s32.totalorder %s26, 1
      %p201 = scmp.ne.s32.totalorder %s196, %s198
      %p202 = scmp.eq.s32.totalorder %s26, 0
      %p203 = por %p201, %p202
      %p204 = scmp.ne.s32.totalorder %s196, %s198
      %p205 = scmp.eq.s32.totalorder %s31, 1
      %p206 = por %p204, %p205
      %p207 = scmp.ne.s32.totalorder %s198, %s199
      %p208 = scmp.eq.s32.totalorder %s31, 0
      %p209 = por %p207, %p208
      %p210 = scmp.ne.s32.totalorder %s198, %s199
      %p211 = scmp.eq.s32.totalorder %s32, 1
      %p212 = por %p210, %p211
      %p214 = scmp.ne.s32.totalorder %s199, %s213
      %p215 = scmp.eq.s32.totalorder %s32, 0
      %p216 = por %p214, %p215
      %s218 = sadd.s32 %s217, 1
      %p221 = scmp.eq.s32.totalorder %s26, 1
      %p222 = scmp.ne.s32.totalorder %s217, %s219
      %p223 = scmp.eq.s32.totalorder %s26, 0
      %p224 = por %p222, %p223
      %p225 = scmp.ne.s32.totalorder %s217, %s219
      %p226 = scmp.eq.s32.totalorder %s31, 1
      %p227 = por %p225, %p226
      %p228 = scmp.ne.s32.totalorder %s219, %s220
      %p229 = scmp.eq.s32.totalorder %s31, 0
      %p230 = por %p228, %p229
      %p231 = scmp.ne.s32.totalorder %s219, %s220
      %p232 = scmp.eq.s32.totalorder %s32, 1
      %p233 = por %p231, %p232
      %p235 = scmp.ne.s32.totalorder %s220, %s234
      %p236 = scmp.eq.s32.totalorder %s32, 0
      %p237 = por %p235, %p236
      %s238 = ssub.s32 %s26, %s33
      %p239 = scmp.eq.s32.totalorder %s238, 0
      %s241 = sadd.s32 %s240, 1
      %s242 = scalar_select %p239, %s240, %s241
      %p245 = pneg %p239
      %p246 = scmp.eq.s32.totalorder %s26, 1
      %p247 = por %p245, %p246
      %p248 = scmp.ne.s32.totalorder %s240, %s243
      %p249 = scmp.eq.s32.totalorder %s26, 0
      %p250 = por %p248, %p249
      %p251 = scmp.ne.s32.totalorder %s240, %s243
      %p252 = scmp.eq.s32.totalorder %s31, 1
      %p253 = por %p251, %p252
      %p254 = scmp.ne.s32.totalorder %s243, %s244
      %p255 = scmp.eq.s32.totalorder %s31, 0
      %p256 = por %p254, %p255
      %p257 = scmp.ne.s32.totalorder %s243, %s244
      %p258 = scmp.eq.s32.totalorder %s32, 1
      %p259 = por %p257, %p258
      %p261 = scmp.ne.s32.totalorder %s244, %s260
      %p262 = scmp.eq.s32.totalorder %s32, 0
      %p263 = por %p261, %p262
      %p264 = scmp.le.s32.totalorder 1, %s26
      %p265 = scmp.lt.s32.totalorder %s26, 3
      %p266 = pnand %p264, %p265
      %p267 = pneg %p266
      // Predicated region
      $region9: #{tpu_custom_call.1} parent=5 // pred_check
        _
      $region10: #{tpu_custom_call.1} parent=5 // pred_check_branch
        %269 = sbr.rel (%p266) target = $region12
      $region11: #{tpu_custom_call.1} parent=5 // pred_region
        %s270 = ssub.s32 %s26, 1
        // Predicated region
        $region13: #{tpu_custom_call.1} parent=11 // pred_check
          %p271 = pneg %p125
        $region14: #{tpu_custom_call.1} parent=11 // pred_check_branch
          %273 = sbr.rel (%p271) target = $region16
        $region15: #{tpu_custom_call.1} parent=11 // pred_region
          %275 = vsyncadd [#allocation12], 0
          %s276 = sshll.u32 %s3, 4
          %s277 = int_to_ptr.hbm [resolvable:$true] %s276
          %s278 = sshll.u32 [#allocation11], 4
          %s279 = int_to_ptr.vmem [resolvable:$true] %s278
          %284 = dma.hbm_to_vmem [thread:$0]  %s277, 1024, %s279, [#allocation12], 128, 128, 8
        $region16: #{tpu_custom_call.1} parent=11 // pred_fallthru
          _
        // Predicated region
        $region17: #{tpu_custom_call.1} parent=11 // pred_check
          %p285 = pneg %p146
        $region18: #{tpu_custom_call.1} parent=11 // pred_check_branch
          %287 = sbr.rel (%p285) target = $region20
        $region19: #{tpu_custom_call.1} parent=11 // pred_region
          %289 = vsyncadd [#allocation12], 0
          %s290 = sshll.u32 %s4, 4
          %s291 = int_to_ptr.hbm [resolvable:$true] %s290
          %s292 = sshll.u32 [#allocation13], 4
          %s293 = int_to_ptr.vmem [resolvable:$true] %s292
          %298 = dma.hbm_to_vmem [thread:$0]  %s291, 1024, %s293, [#allocation12], 128, 128, 8
        $region20: #{tpu_custom_call.1} parent=11 // pred_fallthru
          _
        // Predicated region
        $region21: #{tpu_custom_call.1} parent=11 // pred_check
          %p299 = pneg %p167
        $region22: #{tpu_custom_call.1} parent=11 // pred_check_branch
          %301 = sbr.rel (%p299) target = $region24
        $region23: #{tpu_custom_call.1} parent=11 // pred_region
          %303 = vsyncadd [#allocation15], 0
          %s304 = sshll.u32 %s5, 4
          %s305 = int_to_ptr.hbm [resolvable:$true] %s304
          %s306 = sshll.u32 [#allocation14], 4
          %s307 = int_to_ptr.vmem [resolvable:$true] %s306
          %312 = dma.hbm_to_vmem [thread:$0]  %s305, 1024, %s307, [#allocation15], 128, 128, 8
        $region24: #{tpu_custom_call.1} parent=11 // pred_fallthru
          _
        // Predicated region
        $region25: #{tpu_custom_call.1} parent=11 // pred_check
          %p313 = pneg %p188
        $region26: #{tpu_custom_call.1} parent=11 // pred_check_branch
          %315 = sbr.rel (%p313) target = $region28
        $region27: #{tpu_custom_call.1} parent=11 // pred_region
          _
        $region28: #{tpu_custom_call.1} parent=11 // pred_fallthru
          _
        // Predicated region
        $region29: #{tpu_custom_call.1} parent=11 // pred_check
          %p316 = pneg %p209
        $region30: #{tpu_custom_call.1} parent=11 // pred_check_branch
          %318 = sbr.rel (%p316) target = $region32
        $region31: #{tpu_custom_call.1} parent=11 // pred_region
          _
        $region32: #{tpu_custom_call.1} parent=11 // pred_fallthru
          _
        // Predicated region
        $region33: #{tpu_custom_call.1} parent=11 // pred_check
          %p319 = pneg %p230
        $region34: #{tpu_custom_call.1} parent=11 // pred_check_branch
          %321 = sbr.rel (%p319) target = $region36
        $region35: #{tpu_custom_call.1} parent=11 // pred_region
          _
        $region36: #{tpu_custom_call.1} parent=11 // pred_fallthru
          _
      $region12: #{tpu_custom_call.1} parent=5 // pred_fallthru
        _
      %p322 = scmp.lt.s32.totalorder %s26, 2
      // Predicated region
      $region37: #{tpu_custom_call.1} parent=5 // pred_check
        %p323 = pneg %p322
      $region38: #{tpu_custom_call.1} parent=5 // pred_check_branch
        %325 = sbr.rel (%p323) target = $region40
      $region39: #{tpu_custom_call.1} parent=5 // pred_region
        // Predicated region
        $region41: #{tpu_custom_call.1} parent=39 // pred_check
          %p326 = pneg %p46
        $region42: #{tpu_custom_call.1} parent=39 // pred_check_branch
          %328 = sbr.rel (%p326) target = $region44
        $region43: #{tpu_custom_call.1} parent=39 // pred_region
          %s329 = sand.u32 %s36, 1
          %s330 = scalar_lea.sflag [#allocation6], %s329
          %s331 = sand.u32 %s36, 1
          %s332 = smul.addr %s331, 16
          %s333 = scalar_lea.vmem [#allocation5], %s332
          %s334 = smul.u32 2, %s26
          %336 = vsyncadd %s330, 0
          %s337 = smul.addr %s334, 8
          %s338 = scalar_lea.hbm %s0, %s337
          %s339 = sshll.u32 %s338, 4
          %s340 = int_to_ptr.hbm [resolvable:$true] %s339
          %s341 = sshll.u32 %s333, 4
          %s342 = int_to_ptr.vmem [resolvable:$true] %s341
          %347 = dma.hbm_to_vmem [thread:$0]  %s340, 256, %s342, %s330, 128, 128, 8
        $region44: #{tpu_custom_call.1} parent=39 // pred_fallthru
          _
        // Predicated region
        $region45: #{tpu_custom_call.1} parent=39 // pred_check
          %p348 = pneg %p72
        $region46: #{tpu_custom_call.1} parent=39 // pred_check_branch
          %350 = sbr.rel (%p348) target = $region48
        $region47: #{tpu_custom_call.1} parent=39 // pred_region
          %s351 = sand.u32 %s26, 1
          %s352 = scalar_lea.sflag [#allocation9], %s351
          %s353 = sand.u32 %s62, 1
          %s354 = smul.addr %s353, 16
          %s355 = scalar_lea.vmem [#allocation8], %s354
          %s356 = smul.u32 2, %s26
          %358 = vsyncadd %s352, 0
          %s359 = smul.addr %s356, 8
          %s360 = scalar_lea.hbm %s1, %s359
          %s361 = sshll.u32 %s360, 4
          %s362 = int_to_ptr.hbm [resolvable:$true] %s361
          %s363 = sshll.u32 %s355, 4
          %s364 = int_to_ptr.vmem [resolvable:$true] %s363
          %369 = dma.hbm_to_vmem [thread:$0]  %s362, 256, %s364, %s352, 128, 128, 8
        $region48: #{tpu_custom_call.1} parent=39 // pred_fallthru
          _
        // Predicated region
        $region49: #{tpu_custom_call.1} parent=39 // pred_check
          %p370 = pneg %p98
        $region50: #{tpu_custom_call.1} parent=39 // pred_check_branch
          %372 = sbr.rel (%p370) target = $region52
        $region51: #{tpu_custom_call.1} parent=39 // pred_region
          %s373 = sand.u32 %s26, 1
          %s374 = scalar_lea.sflag [#allocation9], %s373
          %s375 = sand.u32 %s88, 1
          %s376 = smul.addr %s375, 16
          %s377 = scalar_lea.vmem [#allocation10], %s376
          %s378 = smul.u32 2, %s26
          %380 = vsyncadd %s374, 0
          %s381 = smul.addr %s378, 8
          %s382 = scalar_lea.hbm %s2, %s381
          %s383 = sshll.u32 %s382, 4
          %s384 = int_to_ptr.hbm [resolvable:$true] %s383
          %s385 = sshll.u32 %s377, 4
          %s386 = int_to_ptr.vmem [resolvable:$true] %s385
          %391 = dma.hbm_to_vmem [thread:$0]  %s384, 256, %s386, %s374, 128, 128, 8
        $region52: #{tpu_custom_call.1} parent=39 // pred_fallthru
          _
      $region40: #{tpu_custom_call.1} parent=5 // pred_fallthru
        _
      %p392 = scmp.le.s32.totalorder 1, %s26
      %p393 = scmp.lt.s32.totalorder %s26, 3
      %p394 = pnand %p392, %p393
      %p395 = pneg %p394
      // Predicated region
      $region53: #{tpu_custom_call.1} parent=5 // pred_check
        _
      $region54: #{tpu_custom_call.1} parent=5 // pred_check_branch
        %397 = sbr.rel (%p394) target = $region56
      $region55: #{tpu_custom_call.1} parent=5 // pred_region
        %s398 = ssub.s32 %s26, 1
        %s399 = sand.u32 %s39, 1
        %s400 = scalar_lea.sflag [#allocation6], %s399
        %s401 = sand.u32 %s39, 1
        %s402 = smul.addr %s401, 16
        %s403 = scalar_lea.vmem [#allocation5], %s402
        // Predicated region
        $region57: #{tpu_custom_call.1} parent=55 // pred_check
          %p404 = pneg %p52
        $region58: #{tpu_custom_call.1} parent=55 // pred_check_branch
          %406 = sbr.rel (%p404) target = $region60
        $region59: #{tpu_custom_call.1} parent=55 // pred_region
          %408 = dma.done %s400, 256
        $region60: #{tpu_custom_call.1} parent=55 // pred_fallthru
          _
        %s409 = sand.u32 %s31, 1
        %s410 = scalar_lea.sflag [#allocation9], %s409
        %s411 = sand.u32 %s65, 1
        %s412 = smul.addr %s411, 16
        %s413 = scalar_lea.vmem [#allocation8], %s412
        // Predicated region
        $region61: #{tpu_custom_call.1} parent=55 // pred_check
          %p414 = pneg %p78
        $region62: #{tpu_custom_call.1} parent=55 // pred_check_branch
          %416 = sbr.rel (%p414) target = $region64
        $region63: #{tpu_custom_call.1} parent=55 // pred_region
          %418 = dma.done %s410, 256
        $region64: #{tpu_custom_call.1} parent=55 // pred_fallthru
          _
        %s419 = sand.u32 %s31, 1
        %s420 = scalar_lea.sflag [#allocation9], %s419
        %s421 = sand.u32 %s91, 1
        %s422 = smul.addr %s421, 16
        %s423 = scalar_lea.vmem [#allocation10], %s422
        // Predicated region
        $region65: #{tpu_custom_call.1} parent=55 // pred_check
          %p424 = pneg %p104
        $region66: #{tpu_custom_call.1} parent=55 // pred_check_branch
          %426 = sbr.rel (%p424) target = $region68
        $region67: #{tpu_custom_call.1} parent=55 // pred_region
          %428 = dma.done %s420, 256
        $region68: #{tpu_custom_call.1} parent=55 // pred_fallthru
          _
        // Predicated region
        $region69: #{tpu_custom_call.1} parent=55 // pred_check
          %p429 = pneg %p125
        $region70: #{tpu_custom_call.1} parent=55 // pred_check_branch
          %431 = sbr.rel (%p429) target = $region72
        $region71: #{tpu_custom_call.1} parent=55 // pred_region
          %433 = dma.done [#allocation12], 1024
        $region72: #{tpu_custom_call.1} parent=55 // pred_fallthru
          _
        // Predicated region
        $region73: #{tpu_custom_call.1} parent=55 // pred_check
          %p434 = pneg %p146
        $region74: #{tpu_custom_call.1} parent=55 // pred_check_branch
          %436 = sbr.rel (%p434) target = $region76
        $region75: #{tpu_custom_call.1} parent=55 // pred_region
          %438 = dma.done [#allocation12], 1024
        $region76: #{tpu_custom_call.1} parent=55 // pred_fallthru
          _
        // Predicated region
        $region77: #{tpu_custom_call.1} parent=55 // pred_check
          %p439 = pneg %p167
        $region78: #{tpu_custom_call.1} parent=55 // pred_check_branch
          %441 = sbr.rel (%p439) target = $region80
        $region79: #{tpu_custom_call.1} parent=55 // pred_region
          %443 = dma.done [#allocation15], 1024
        $region80: #{tpu_custom_call.1} parent=55 // pred_fallthru
          _
        %s444 = sand.u32 %s39, 1
        %s445 = scalar_lea.sflag [#allocation6], %s444
        %s446 = sand.u32 %s39, 1
        %s447 = smul.addr %s446, 16
        %s448 = scalar_lea.vmem [#allocation5], %s447
        %p449 = pneg %p52
        %p450 = pneg %p49
        %s451 = sand.u32 %s31, 1
        %s452 = scalar_lea.sflag [#allocation9], %s451
        %s453 = sand.u32 %s65, 1
        %s454 = smul.addr %s453, 16
        %s455 = scalar_lea.vmem [#allocation8], %s454
        %p456 = pneg %p78
        %p457 = pneg %p75
        %s458 = sand.u32 %s31, 1
        %s459 = scalar_lea.sflag [#allocation9], %s458
        %s460 = sand.u32 %s91, 1
        %s461 = smul.addr %s460, 16
        %s462 = scalar_lea.vmem [#allocation10], %s461
        %p463 = pneg %p104
        %p464 = pneg %p101
        %p465 = pneg %p125
        %p466 = pneg %p122
        %p467 = pneg %p146
        %p468 = pneg %p143
        %p469 = pneg %p167
        %p470 = pneg %p164
        %p471 = pneg %p188
        %p472 = pneg %p185
        %p473 = pneg %p209
        %p474 = pneg %p206
        %p475 = pneg %p230
        %p476 = pneg %p227
        %p477 = pneg %p256
        %p478 = pneg %p253
        %s479 = sand.u32 %s243, 1
        %s480 = scalar_lea.sflag [#allocation7], %s479
        %s481 = sand.u32 %s243, 1
        %s482 = smul.addr %s481, 16
        %s483 = scalar_lea.vmem [#allocation16], %s482
        %s484 = smul.u32 2, %s31
        %s485 = smul.u32 2, %s31
        %s486 = smul.u32 2, %s31
        %s487 = smul.u32 2, %s31
        %v488 = vld [vmem:[%s403] sm:$0xff]
        %v489 = vld [vmem:[%s403 + $0x8] sm:$0xff]
        %v490 = vld [vmem:[#allocation11] sm:$0xff]
        %v491 = vld [vmem:[#allocation11 + $0x8] sm:$0xff]
        %v492 = vld [vmem:[#allocation11 + $0x10] sm:$0xff]
        %v493 = vld [vmem:[#allocation11 + $0x18] sm:$0xff]
        %v494 = vld [vmem:[#allocation11 + $0x20] sm:$0xff]
        %v495 = vld [vmem:[#allocation11 + $0x28] sm:$0xff]
        %v496 = vld [vmem:[#allocation11 + $0x30] sm:$0xff]
        %v497 = vld [vmem:[#allocation11 + $0x38] sm:$0xff]
        %v498 = vld [vmem:[%s6] sm:$0x1]
        %v500 = vperm.slane %v498, 0
        %vm502 = vcmask 523264
        %v504 = vsel %vm502, %v488, 0
        %v507 = vsel %vm502, %v489, 0
        %509 = vmatpush.msra.mxu0 0.0
        %510 = vmatpush.msra.mxu0 0.0
        %511 = vmatpush.msra.mxu0 0.0
        %512 = vmatpush.msra.mxu0 0.0
        %513 = vmatpush.msra.mxu0 0.0
        %514 = vmatpush.msra.mxu0 0.0
        %515 = vmatpush.msra.mxu0 0.0
        %516 = vmatpush.msra.mxu0 0.0
        %517 = vmatpush.msra.mxu0 %v497
        %518 = vmatpush.msra.mxu0 %v496
        %519 = vmatpush.msra.mxu0 %v495
        %520 = vmatpush.msra.mxu0 %v494
        %521 = vmatpush.msra.mxu0 %v493
        %522 = vmatpush.msra.mxu0 %v492
        %523 = vmatpush.msra.mxu0 %v491
        %524 = vmatpush.msra.mxu0 %v490
        %525 = vmatmul.f32.gmra.mxu0 %v504
        %v526 = vpop.f32.mrf.mxu0
        %v527 = vadd.f32 %v500, %v526
        %528 = vmatmul.f32.gmra.mxu0 %v507
        %v529 = vpop.f32.mrf.mxu0
        %v530 = vadd.f32 %v500, %v529
        %531 = vdwg.mxu0
        %532 = vst [vmem:[#allocation2] sm:$0xff] %v527
        %533 = vst [vmem:[#allocation2 + $0x8] sm:$0xff] %v530
        %v534 = vld [vmem:[%s413] sm:$0xff]
        %v535 = vld [vmem:[%s413 + $0x8] sm:$0xff]
        %v536 = vld [vmem:[#allocation13] sm:$0xff]
        %v537 = vld [vmem:[#allocation13 + $0x8] sm:$0xff]
        %v538 = vld [vmem:[#allocation13 + $0x10] sm:$0xff]
        %v539 = vld [vmem:[#allocation13 + $0x18] sm:$0xff]
        %v540 = vld [vmem:[#allocation13 + $0x20] sm:$0xff]
        %v541 = vld [vmem:[#allocation13 + $0x28] sm:$0xff]
        %v542 = vld [vmem:[#allocation13 + $0x30] sm:$0xff]
        %v543 = vld [vmem:[#allocation13 + $0x38] sm:$0xff]
        %v544 = vld [vmem:[%s7] sm:$0x1]
        %v546 = vperm.slane %v544, 0
        %v549 = vsel %vm502, %v534, 0
        %v552 = vsel %vm502, %v535, 0
        %554 = vmatpush.msra.mxu0 0.0
        %555 = vmatpush.msra.mxu0 0.0
        %556 = vmatpush.msra.mxu0 0.0
        %557 = vmatpush.msra.mxu0 0.0
        %558 = vmatpush.msra.mxu0 0.0
        %559 = vmatpush.msra.mxu0 0.0
        %560 = vmatpush.msra.mxu0 0.0
        %561 = vmatpush.msra.mxu0 0.0
        %562 = vmatpush.msra.mxu0 %v543
        %563 = vmatpush.msra.mxu0 %v542
        %564 = vmatpush.msra.mxu0 %v541
        %565 = vmatpush.msra.mxu0 %v540
        %566 = vmatpush.msra.mxu0 %v539
        %567 = vmatpush.msra.mxu0 %v538
        %568 = vmatpush.msra.mxu0 %v537
        %569 = vmatpush.msra.mxu0 %v536
        %570 = vmatmul.f32.gmra.mxu0 %v549
        %v571 = vpop.f32.mrf.mxu0
        %v572 = vadd.f32 %v546, %v571
        %573 = vmatmul.f32.gmra.mxu0 %v552
        %v574 = vpop.f32.mrf.mxu0
        %v575 = vadd.f32 %v546, %v574
        %576 = vdwg.mxu0
        %577 = vst [vmem:[#allocation3] sm:$0xff] %v572
        %578 = vst [vmem:[#allocation3 + $0x8] sm:$0xff] %v575
        %v579 = vld [vmem:[%s423] sm:$0xff]
        %v580 = vld [vmem:[%s423 + $0x8] sm:$0xff]
        %v581 = vld [vmem:[#allocation14] sm:$0xff]
        %v582 = vld [vmem:[#allocation14 + $0x8] sm:$0xff]
        %v583 = vld [vmem:[#allocation14 + $0x10] sm:$0xff]
        %v584 = vld [vmem:[#allocation14 + $0x18] sm:$0xff]
        %v585 = vld [vmem:[#allocation14 + $0x20] sm:$0xff]
        %v586 = vld [vmem:[#allocation14 + $0x28] sm:$0xff]
        %v587 = vld [vmem:[#allocation14 + $0x30] sm:$0xff]
        %v588 = vld [vmem:[#allocation14 + $0x38] sm:$0xff]
        %v589 = vld [vmem:[%s8] sm:$0x1]
        %v591 = vperm.slane %v589, 0
        %v594 = vsel %vm502, %v579, 0
        %v597 = vsel %vm502, %v580, 0
        %599 = vmatpush.msra.mxu0 0.0
        %600 = vmatpush.msra.mxu0 0.0
        %601 = vmatpush.msra.mxu0 0.0
        %602 = vmatpush.msra.mxu0 0.0
        %603 = vmatpush.msra.mxu0 0.0
        %604 = vmatpush.msra.mxu0 0.0
        %605 = vmatpush.msra.mxu0 0.0
        %606 = vmatpush.msra.mxu0 0.0
        %607 = vmatpush.msra.mxu0 %v588
        %608 = vmatpush.msra.mxu0 %v587
        %609 = vmatpush.msra.mxu0 %v586
        %610 = vmatpush.msra.mxu0 %v585
        %611 = vmatpush.msra.mxu0 %v584
        %612 = vmatpush.msra.mxu0 %v583
        %613 = vmatpush.msra.mxu0 %v582
        %614 = vmatpush.msra.mxu0 %v581
        %615 = vmatmul.f32.gmra.mxu0 %v594
        %v616 = vpop.f32.mrf.mxu0
        %v617 = vadd.f32 %v591, %v616
        %618 = vmatmul.f32.gmra.mxu0 %v597
        %v619 = vpop.f32.mrf.mxu0
        %v620 = vadd.f32 %v591, %v619
        %621 = vdwg.mxu0
        %622 = vst [vmem:[#allocation4] sm:$0xff] %v617
        %623 = vst [vmem:[#allocation4 + $0x8] sm:$0xff] %v620
        %v624 = vld [vmem:[#allocation2] sm:$0xff]
        %v625 = vld [vmem:[#allocation3] sm:$0xff]
        %v626 = vld [vmem:[#allocation4] sm:$0xff]
        %vm627 = vcmask 261120
        %v629 = vsel %vm627, %v624, 0
        %v632 = vsel %vm627, %v625, 0
        %634 = vmatpush.xpose.msra.mxu0 0.0
        %635 = vmatpush.xpose.msra.mxu0 0.0
        %636 = vmatpush.xpose.msra.mxu0 0.0
        %637 = vmatpush.xpose.msra.mxu0 0.0
        %638 = vmatpush.xpose.msra.mxu0 0.0
        %639 = vmatpush.xpose.msra.mxu0 0.0
        %640 = vmatpush.xpose.msra.mxu0 0.0
        %641 = vmatpush.xpose.msra.mxu0 0.0
        %642 = vmatpush.xpose.msra.mxu0 0.0
        %643 = vmatpush.xpose.msra.mxu0 0.0
        %644 = vmatpush.xpose.msra.mxu0 0.0
        %645 = vmatpush.xpose.msra.mxu0 0.0
        %646 = vmatpush.xpose.msra.mxu0 0.0
        %647 = vmatpush.xpose.msra.mxu0 0.0
        %648 = vmatpush.xpose.msra.mxu0 0.0
        %649 = vmatpush.xpose.msra.mxu0 %v632
        %650 = vmatmul.f32.gmra.mxu0 %v629
        %v651 = vpop.f32.mrf.mxu0
        %v652 = vadd.f32 0.0, %v651
        %653 = vdwg.mxu0
        %vm654 = vcmask 64512
        %v655 = vsel %vm654, %v652, -inf
        %656 = vmax.xlane.f32.xlu0 %v655
        %v657 = vpop.xlane.xlu0 %656
        %v658 = vsub.f32 %v652, %v657
        %v659 = vmul.f32 %v658, 1.442695
        %v660 = vpow.pop %v659
        %v661 = vsel %vm654, %v660, 0.0
        %662 = vadd.xlane.f32.xlu0 %v661
        %v663 = vpop.xlane.xlu0 %662
        %v664 = vrcp.pop %v663
        %v665 = vmul.f32 %v660, %v664
        %v667 = vsel %vm654, %v665, 0
        %669 = vmatpush.msra.mxu0 0.0
        %670 = vmatpush.msra.mxu0 0.0
        %671 = vmatpush.msra.mxu0 0.0
        %672 = vmatpush.msra.mxu0 0.0
        %673 = vmatpush.msra.mxu0 0.0
        %674 = vmatpush.msra.mxu0 0.0
        %675 = vmatpush.msra.mxu0 0.0
        %676 = vmatpush.msra.mxu0 0.0
        %677 = vmatpush.msra.mxu0 0.0
        %678 = vmatpush.msra.mxu0 0.0
        %679 = vmatpush.msra.mxu0 0.0
        %680 = vmatpush.msra.mxu0 0.0
        %681 = vmatpush.msra.mxu0 0.0
        %682 = vmatpush.msra.mxu0 0.0
        %683 = vmatpush.msra.mxu0 0.0
        %684 = vmatpush.msra.mxu0 %v626
        %685 = vmatmul.f32.gmra.mxu0 %v667
        %v686 = vpop.f32.mrf.mxu0
        %v687 = vadd.f32 0.0, %v686
        %688 = vdwg.mxu0
        %689 = vrot.lane.b32.xlu0 %v624, 96
        %v690 = vpop.permute.xlu0 %689
        %691 = vrot.lane.b32.xlu0 %v625, 96
        %v692 = vpop.permute.xlu0 %691
        %v693 = vsel %vm627, %v690, 0
        %v695 = vsel %vm627, %v692, 0
        %697 = vmatpush.xpose.msra.mxu0 0.0
        %698 = vmatpush.xpose.msra.mxu0 0.0
        %699 = vmatpush.xpose.msra.mxu0 0.0
        %700 = vmatpush.xpose.msra.mxu0 0.0
        %701 = vmatpush.xpose.msra.mxu0 0.0
        %702 = vmatpush.xpose.msra.mxu0 0.0
        %703 = vmatpush.xpose.msra.mxu0 0.0
        %704 = vmatpush.xpose.msra.mxu0 0.0
        %705 = vmatpush.xpose.msra.mxu0 0.0
        %706 = vmatpush.xpose.msra.mxu0 0.0
        %707 = vmatpush.xpose.msra.mxu0 0.0
        %708 = vmatpush.xpose.msra.mxu0 0.0
        %709 = vmatpush.xpose.msra.mxu0 0.0
        %710 = vmatpush.xpose.msra.mxu0 0.0
        %711 = vmatpush.xpose.msra.mxu0 0.0
        %712 = vmatpush.xpose.msra.mxu0 %v695
        %713 = vmatmul.f32.gmra.mxu0 %v693
        %v714 = vpop.f32.mrf.mxu0
        %v715 = vadd.f32 0.0, %v714
        %716 = vdwg.mxu0
        %v717 = vsel %vm654, %v715, -inf
        %718 = vmax.xlane.f32.xlu0 %v717
        %v719 = vpop.xlane.xlu0 %718
        %v720 = vsub.f32 %v715, %v719
        %v721 = vmul.f32 %v720, 1.442695
        %v722 = vpow.pop %v721
        %v723 = vsel %vm654, %v722, 0.0
        %724 = vadd.xlane.f32.xlu0 %v723
        %v725 = vpop.xlane.xlu0 %724
        %v726 = vrcp.pop %v725
        %v727 = vmul.f32 %v722, %v726
        %729 = vrot.lane.b32.xlu0 %v626, 96
        %v730 = vpop.permute.xlu0 %729
        %v733 = vsel %vm654, %v727, 0
        %735 = vmatpush.msra.mxu0 0.0
        %736 = vmatpush.msra.mxu0 0.0
        %737 = vmatpush.msra.mxu0 0.0
        %738 = vmatpush.msra.mxu0 0.0
        %739 = vmatpush.msra.mxu0 0.0
        %740 = vmatpush.msra.mxu0 0.0
        %741 = vmatpush.msra.mxu0 0.0
        %742 = vmatpush.msra.mxu0 0.0
        %743 = vmatpush.msra.mxu0 0.0
        %744 = vmatpush.msra.mxu0 0.0
        %745 = vmatpush.msra.mxu0 0.0
        %746 = vmatpush.msra.mxu0 0.0
        %747 = vmatpush.msra.mxu0 0.0
        %748 = vmatpush.msra.mxu0 0.0
        %749 = vmatpush.msra.mxu0 0.0
        %750 = vmatpush.msra.mxu0 %v730
        %751 = vmatmul.f32.gmra.mxu0 %v733
        %v752 = vpop.f32.mrf.mxu0
        %v753 = vadd.f32 0.0, %v752
        %754 = vdwg.mxu0
        %755 = vrot.lane.b32.xlu0 %v624, 64
        %v756 = vpop.permute.xlu0 %755
        %757 = vrot.lane.b32.xlu0 %v625, 64
        %v758 = vpop.permute.xlu0 %757
        %v759 = vsel %vm627, %v756, 0
        %v761 = vsel %vm627, %v758, 0
        %763 = vmatpush.xpose.msra.mxu0 0.0
        %764 = vmatpush.xpose.msra.mxu0 0.0
        %765 = vmatpush.xpose.msra.mxu0 0.0
        %766 = vmatpush.xpose.msra.mxu0 0.0
        %767 = vmatpush.xpose.msra.mxu0 0.0
        %768 = vmatpush.xpose.msra.mxu0 0.0
        %769 = vmatpush.xpose.msra.mxu0 0.0
        %770 = vmatpush.xpose.msra.mxu0 0.0
        %771 = vmatpush.xpose.msra.mxu0 0.0
        %772 = vmatpush.xpose.msra.mxu0 0.0
        %773 = vmatpush.xpose.msra.mxu0 0.0
        %774 = vmatpush.xpose.msra.mxu0 0.0
        %775 = vmatpush.xpose.msra.mxu0 0.0
        %776 = vmatpush.xpose.msra.mxu0 0.0
        %777 = vmatpush.xpose.msra.mxu0 0.0
        %778 = vmatpush.xpose.msra.mxu0 %v761
        %779 = vmatmul.f32.gmra.mxu0 %v759
        %v780 = vpop.f32.mrf.mxu0
        %v781 = vadd.f32 0.0, %v780
        %782 = vdwg.mxu0
        %v783 = vsel %vm654, %v781, -inf
        %784 = vmax.xlane.f32.xlu0 %v783
        %v785 = vpop.xlane.xlu0 %784
        %v786 = vsub.f32 %v781, %v785
        %v787 = vmul.f32 %v786, 1.442695
        %v788 = vpow.pop %v787
        %v789 = vsel %vm654, %v788, 0.0
        %790 = vadd.xlane.f32.xlu0 %v789
        %v791 = vpop.xlane.xlu0 %790
        %v792 = vrcp.pop %v791
        %v793 = vmul.f32 %v788, %v792
        %794 = vrot.lane.b32.xlu0 %v626, 64
        %v795 = vpop.permute.xlu0 %794
        %v798 = vsel %vm654, %v793, 0
        %800 = vmatpush.msra.mxu0 0.0
        %801 = vmatpush.msra.mxu0 0.0
        %802 = vmatpush.msra.mxu0 0.0
        %803 = vmatpush.msra.mxu0 0.0
        %804 = vmatpush.msra.mxu0 0.0
        %805 = vmatpush.msra.mxu0 0.0
        %806 = vmatpush.msra.mxu0 0.0
        %807 = vmatpush.msra.mxu0 0.0
        %808 = vmatpush.msra.mxu0 0.0
        %809 = vmatpush.msra.mxu0 0.0
        %810 = vmatpush.msra.mxu0 0.0
        %811 = vmatpush.msra.mxu0 0.0
        %812 = vmatpush.msra.mxu0 0.0
        %813 = vmatpush.msra.mxu0 0.0
        %814 = vmatpush.msra.mxu0 0.0
        %815 = vmatpush.msra.mxu0 %v795
        %816 = vmatmul.f32.gmra.mxu0 %v798
        %v817 = vpop.f32.mrf.mxu0
        %v818 = vadd.f32 0.0, %v817
        %819 = vdwg.mxu0
        %820 = vrot.lane.b32.xlu0 %v624, 32
        %v821 = vpop.permute.xlu0 %820
        %822 = vrot.lane.b32.xlu0 %v625, 32
        %v823 = vpop.permute.xlu0 %822
        %v824 = vsel %vm627, %v821, 0
        %v826 = vsel %vm627, %v823, 0
        %828 = vmatpush.xpose.msra.mxu0 0.0
        %829 = vmatpush.xpose.msra.mxu0 0.0
        %830 = vmatpush.xpose.msra.mxu0 0.0
        %831 = vmatpush.xpose.msra.mxu0 0.0
        %832 = vmatpush.xpose.msra.mxu0 0.0
        %833 = vmatpush.xpose.msra.mxu0 0.0
        %834 = vmatpush.xpose.msra.mxu0 0.0
        %835 = vmatpush.xpose.msra.mxu0 0.0
        %836 = vmatpush.xpose.msra.mxu0 0.0
        %837 = vmatpush.xpose.msra.mxu0 0.0
        %838 = vmatpush.xpose.msra.mxu0 0.0
        %839 = vmatpush.xpose.msra.mxu0 0.0
        %840 = vmatpush.xpose.msra.mxu0 0.0
        %841 = vmatpush.xpose.msra.mxu0 0.0
        %842 = vmatpush.xpose.msra.mxu0 0.0
        %843 = vmatpush.xpose.msra.mxu0 %v826
        %844 = vmatmul.f32.gmra.mxu0 %v824
        %v845 = vpop.f32.mrf.mxu0
        %v846 = vadd.f32 0.0, %v845
        %847 = vdwg.mxu0
        %v848 = vsel %vm654, %v846, -inf
        %849 = vmax.xlane.f32.xlu0 %v848
        %v850 = vpop.xlane.xlu0 %849
        %v851 = vsub.f32 %v846, %v850
        %v852 = vmul.f32 %v851, 1.442695
        %v853 = vpow.pop %v852
        %v854 = vsel %vm654, %v853, 0.0
        %855 = vadd.xlane.f32.xlu0 %v854
        %v856 = vpop.xlane.xlu0 %855
        %v857 = vrcp.pop %v856
        %v858 = vmul.f32 %v853, %v857
        %859 = vrot.lane.b32.xlu0 %v626, 32
        %v860 = vpop.permute.xlu0 %859
        %v863 = vsel %vm654, %v858, 0
        %865 = vmatpush.msra.mxu0 0.0
        %866 = vmatpush.msra.mxu0 0.0
        %867 = vmatpush.msra.mxu0 0.0
        %868 = vmatpush.msra.mxu0 0.0
        %869 = vmatpush.msra.mxu0 0.0
        %870 = vmatpush.msra.mxu0 0.0
        %871 = vmatpush.msra.mxu0 0.0
        %872 = vmatpush.msra.mxu0 0.0
        %873 = vmatpush.msra.mxu0 0.0
        %874 = vmatpush.msra.mxu0 0.0
        %875 = vmatpush.msra.mxu0 0.0
        %876 = vmatpush.msra.mxu0 0.0
        %877 = vmatpush.msra.mxu0 0.0
        %878 = vmatpush.msra.mxu0 0.0
        %879 = vmatpush.msra.mxu0 0.0
        %880 = vmatpush.msra.mxu0 %v860
        %881 = vmatmul.f32.gmra.mxu0 %v863
        %v882 = vpop.f32.mrf.mxu0
        %v883 = vadd.f32 0.0, %v882
        %884 = vdwg.mxu0
        %886 = vrot.lane.b32.xlu0 %v753, 32
        %v887 = vpop.permute.xlu0 %886
        %890 = vrot.lane.b32.xlu0 %v818, 64
        %v891 = vpop.permute.xlu0 %890
        %894 = vrot.lane.b32.xlu0 %v883, 96
        %v895 = vpop.permute.xlu0 %894
        %v897 = vsel %vm627, %v687, %v887
        %v898 = vsel %vm502, %v897, %v891
        %vm899 = vcmask 785408
        %v900 = vsel %vm899, %v898, %v895
        %901 = vst [vmem:[%s483] sm:$0xff] %v900
        %v902 = vld [vmem:[#allocation2 + $0x8] sm:$0xff]
        %v903 = vld [vmem:[#allocation3 + $0x8] sm:$0xff]
        %v904 = vld [vmem:[#allocation4 + $0x8] sm:$0xff]
        %v906 = vsel %vm627, %v902, 0
        %v909 = vsel %vm627, %v903, 0
        %911 = vmatpush.xpose.msra.mxu0 0.0
        %912 = vmatpush.xpose.msra.mxu0 0.0
        %913 = vmatpush.xpose.msra.mxu0 0.0
        %914 = vmatpush.xpose.msra.mxu0 0.0
        %915 = vmatpush.xpose.msra.mxu0 0.0
        %916 = vmatpush.xpose.msra.mxu0 0.0
        %917 = vmatpush.xpose.msra.mxu0 0.0
        %918 = vmatpush.xpose.msra.mxu0 0.0
        %919 = vmatpush.xpose.msra.mxu0 0.0
        %920 = vmatpush.xpose.msra.mxu0 0.0
        %921 = vmatpush.xpose.msra.mxu0 0.0
        %922 = vmatpush.xpose.msra.mxu0 0.0
        %923 = vmatpush.xpose.msra.mxu0 0.0
        %924 = vmatpush.xpose.msra.mxu0 0.0
        %925 = vmatpush.xpose.msra.mxu0 0.0
        %926 = vmatpush.xpose.msra.mxu0 %v909
        %927 = vmatmul.f32.gmra.mxu0 %v906
        %v928 = vpop.f32.mrf.mxu0
        %v929 = vadd.f32 0.0, %v928
        %930 = vdwg.mxu0
        %v931 = vsel %vm654, %v929, -inf
        %932 = vmax.xlane.f32.xlu0 %v931
        %v933 = vpop.xlane.xlu0 %932
        %v934 = vsub.f32 %v929, %v933
        %v935 = vmul.f32 %v934, 1.442695
        %v936 = vpow.pop %v935
        %v937 = vsel %vm654, %v936, 0.0
        %938 = vadd.xlane.f32.xlu0 %v937
        %v939 = vpop.xlane.xlu0 %938
        %v940 = vrcp.pop %v939
        %v941 = vmul.f32 %v936, %v940
        %v943 = vsel %vm654, %v941, 0
        %945 = vmatpush.msra.mxu0 0.0
        %946 = vmatpush.msra.mxu0 0.0
        %947 = vmatpush.msra.mxu0 0.0
        %948 = vmatpush.msra.mxu0 0.0
        %949 = vmatpush.msra.mxu0 0.0
        %950 = vmatpush.msra.mxu0 0.0
        %951 = vmatpush.msra.mxu0 0.0
        %952 = vmatpush.msra.mxu0 0.0
        %953 = vmatpush.msra.mxu0 0.0
        %954 = vmatpush.msra.mxu0 0.0
        %955 = vmatpush.msra.mxu0 0.0
        %956 = vmatpush.msra.mxu0 0.0
        %957 = vmatpush.msra.mxu0 0.0
        %958 = vmatpush.msra.mxu0 0.0
        %959 = vmatpush.msra.mxu0 0.0
        %960 = vmatpush.msra.mxu0 %v904
        %961 = vmatmul.f32.gmra.mxu0 %v943
        %v962 = vpop.f32.mrf.mxu0
        %v963 = vadd.f32 0.0, %v962
        %964 = vdwg.mxu0
        %965 = vrot.lane.b32.xlu0 %v902, 96
        %v966 = vpop.permute.xlu0 %965
        %967 = vrot.lane.b32.xlu0 %v903, 96
        %v968 = vpop.permute.xlu0 %967
        %v969 = vsel %vm627, %v966, 0
        %v971 = vsel %vm627, %v968, 0
        %973 = vmatpush.xpose.msra.mxu0 0.0
        %974 = vmatpush.xpose.msra.mxu0 0.0
        %975 = vmatpush.xpose.msra.mxu0 0.0
        %976 = vmatpush.xpose.msra.mxu0 0.0
        %977 = vmatpush.xpose.msra.mxu0 0.0
        %978 = vmatpush.xpose.msra.mxu0 0.0
        %979 = vmatpush.xpose.msra.mxu0 0.0
        %980 = vmatpush.xpose.msra.mxu0 0.0
        %981 = vmatpush.xpose.msra.mxu0 0.0
        %982 = vmatpush.xpose.msra.mxu0 0.0
        %983 = vmatpush.xpose.msra.mxu0 0.0
        %984 = vmatpush.xpose.msra.mxu0 0.0
        %985 = vmatpush.xpose.msra.mxu0 0.0
        %986 = vmatpush.xpose.msra.mxu0 0.0
        %987 = vmatpush.xpose.msra.mxu0 0.0
        %988 = vmatpush.xpose.msra.mxu0 %v971
        %989 = vmatmul.f32.gmra.mxu0 %v969
        %v990 = vpop.f32.mrf.mxu0
        %v991 = vadd.f32 0.0, %v990
        %992 = vdwg.mxu0
        %v993 = vsel %vm654, %v991, -inf
        %994 = vmax.xlane.f32.xlu0 %v993
        %v995 = vpop.xlane.xlu0 %994
        %v996 = vsub.f32 %v991, %v995
        %v997 = vmul.f32 %v996, 1.442695
        %v998 = vpow.pop %v997
        %v999 = vsel %vm654, %v998, 0.0
        %1000 = vadd.xlane.f32.xlu0 %v999
        %v1001 = vpop.xlane.xlu0 %1000
        %v1002 = vrcp.pop %v1001
        %v1003 = vmul.f32 %v998, %v1002
        %1005 = vrot.lane.b32.xlu0 %v904, 96
        %v1006 = vpop.permute.xlu0 %1005
        %v1009 = vsel %vm654, %v1003, 0
        %1011 = vmatpush.msra.mxu0 0.0
        %1012 = vmatpush.msra.mxu0 0.0
        %1013 = vmatpush.msra.mxu0 0.0
        %1014 = vmatpush.msra.mxu0 0.0
        %1015 = vmatpush.msra.mxu0 0.0
        %1016 = vmatpush.msra.mxu0 0.0
        %1017 = vmatpush.msra.mxu0 0.0
        %1018 = vmatpush.msra.mxu0 0.0
        %1019 = vmatpush.msra.mxu0 0.0
        %1020 = vmatpush.msra.mxu0 0.0
        %1021 = vmatpush.msra.mxu0 0.0
        %1022 = vmatpush.msra.mxu0 0.0
        %1023 = vmatpush.msra.mxu0 0.0
        %1024 = vmatpush.msra.mxu0 0.0
        %1025 = vmatpush.msra.mxu0 0.0
        %1026 = vmatpush.msra.mxu0 %v1006
        %1027 = vmatmul.f32.gmra.mxu0 %v1009
        %v1028 = vpop.f32.mrf.mxu0
        %v1029 = vadd.f32 0.0, %v1028
        %1030 = vdwg.mxu0
        %1031 = vrot.lane.b32.xlu0 %v902, 64
        %v1032 = vpop.permute.xlu0 %1031
        %1033 = vrot.lane.b32.xlu0 %v903, 64
        %v1034 = vpop.permute.xlu0 %1033
        %v1035 = vsel %vm627, %v1032, 0
        %v1037 = vsel %vm627, %v1034, 0
        %1039 = vmatpush.xpose.msra.mxu0 0.0
        %1040 = vmatpush.xpose.msra.mxu0 0.0
        %1041 = vmatpush.xpose.msra.mxu0 0.0
        %1042 = vmatpush.xpose.msra.mxu0 0.0
        %1043 = vmatpush.xpose.msra.mxu0 0.0
        %1044 = vmatpush.xpose.msra.mxu0 0.0
        %1045 = vmatpush.xpose.msra.mxu0 0.0
        %1046 = vmatpush.xpose.msra.mxu0 0.0
        %1047 = vmatpush.xpose.msra.mxu0 0.0
        %1048 = vmatpush.xpose.msra.mxu0 0.0
        %1049 = vmatpush.xpose.msra.mxu0 0.0
        %1050 = vmatpush.xpose.msra.mxu0 0.0
        %1051 = vmatpush.xpose.msra.mxu0 0.0
        %1052 = vmatpush.xpose.msra.mxu0 0.0
        %1053 = vmatpush.xpose.msra.mxu0 0.0
        %1054 = vmatpush.xpose.msra.mxu0 %v1037
        %1055 = vmatmul.f32.gmra.mxu0 %v1035
        %v1056 = vpop.f32.mrf.mxu0
        %v1057 = vadd.f32 0.0, %v1056
        %1058 = vdwg.mxu0
        %v1059 = vsel %vm654, %v1057, -inf
        %1060 = vmax.xlane.f32.xlu0 %v1059
        %v1061 = vpop.xlane.xlu0 %1060
        %v1062 = vsub.f32 %v1057, %v1061
        %v1063 = vmul.f32 %v1062, 1.442695
        %v1064 = vpow.pop %v1063
        %v1065 = vsel %vm654, %v1064, 0.0
        %1066 = vadd.xlane.f32.xlu0 %v1065
        %v1067 = vpop.xlane.xlu0 %1066
        %v1068 = vrcp.pop %v1067
        %v1069 = vmul.f32 %v1064, %v1068
        %1070 = vrot.lane.b32.xlu0 %v904, 64
        %v1071 = vpop.permute.xlu0 %1070
        %v1074 = vsel %vm654, %v1069, 0
        %1076 = vmatpush.msra.mxu0 0.0
        %1077 = vmatpush.msra.mxu0 0.0
        %1078 = vmatpush.msra.mxu0 0.0
        %1079 = vmatpush.msra.mxu0 0.0
        %1080 = vmatpush.msra.mxu0 0.0
        %1081 = vmatpush.msra.mxu0 0.0
        %1082 = vmatpush.msra.mxu0 0.0
        %1083 = vmatpush.msra.mxu0 0.0
        %1084 = vmatpush.msra.mxu0 0.0
        %1085 = vmatpush.msra.mxu0 0.0
        %1086 = vmatpush.msra.mxu0 0.0
        %1087 = vmatpush.msra.mxu0 0.0
        %1088 = vmatpush.msra.mxu0 0.0
        %1089 = vmatpush.msra.mxu0 0.0
        %1090 = vmatpush.msra.mxu0 0.0
        %1091 = vmatpush.msra.mxu0 %v1071
        %1092 = vmatmul.f32.gmra.mxu0 %v1074
        %v1093 = vpop.f32.mrf.mxu0
        %v1094 = vadd.f32 0.0, %v1093
        %1095 = vdwg.mxu0
        %1096 = vrot.lane.b32.xlu0 %v902, 32
        %v1097 = vpop.permute.xlu0 %1096
        %1098 = vrot.lane.b32.xlu0 %v903, 32
        %v1099 = vpop.permute.xlu0 %1098
        %v1100 = vsel %vm627, %v1097, 0
        %v1102 = vsel %vm627, %v1099, 0
        %1104 = vmatpush.xpose.msra.mxu0 0.0
        %1105 = vmatpush.xpose.msra.mxu0 0.0
        %1106 = vmatpush.xpose.msra.mxu0 0.0
        %1107 = vmatpush.xpose.msra.mxu0 0.0
        %1108 = vmatpush.xpose.msra.mxu0 0.0
        %1109 = vmatpush.xpose.msra.mxu0 0.0
        %1110 = vmatpush.xpose.msra.mxu0 0.0
        %1111 = vmatpush.xpose.msra.mxu0 0.0
        %1112 = vmatpush.xpose.msra.mxu0 0.0
        %1113 = vmatpush.xpose.msra.mxu0 0.0
        %1114 = vmatpush.xpose.msra.mxu0 0.0
        %1115 = vmatpush.xpose.msra.mxu0 0.0
        %1116 = vmatpush.xpose.msra.mxu0 0.0
        %1117 = vmatpush.xpose.msra.mxu0 0.0
        %1118 = vmatpush.xpose.msra.mxu0 0.0
        %1119 = vmatpush.xpose.msra.mxu0 %v1102
        %1120 = vmatmul.f32.gmra.mxu0 %v1100
        %v1121 = vpop.f32.mrf.mxu0
        %v1122 = vadd.f32 0.0, %v1121
        %1123 = vdwg.mxu0
        %v1124 = vsel %vm654, %v1122, -inf
        %1125 = vmax.xlane.f32.xlu0 %v1124
        %v1126 = vpop.xlane.xlu0 %1125
        %v1127 = vsub.f32 %v1122, %v1126
        %v1128 = vmul.f32 %v1127, 1.442695
        %v1129 = vpow.pop %v1128
        %v1130 = vsel %vm654, %v1129, 0.0
        %1131 = vadd.xlane.f32.xlu0 %v1130
        %v1132 = vpop.xlane.xlu0 %1131
        %v1133 = vrcp.pop %v1132
        %v1134 = vmul.f32 %v1129, %v1133
        %1135 = vrot.lane.b32.xlu0 %v904, 32
        %v1136 = vpop.permute.xlu0 %1135
        %v1139 = vsel %vm654, %v1134, 0
        %1141 = vmatpush.msra.mxu0 0.0
        %1142 = vmatpush.msra.mxu0 0.0
        %1143 = vmatpush.msra.mxu0 0.0
        %1144 = vmatpush.msra.mxu0 0.0
        %1145 = vmatpush.msra.mxu0 0.0
        %1146 = vmatpush.msra.mxu0 0.0
        %1147 = vmatpush.msra.mxu0 0.0
        %1148 = vmatpush.msra.mxu0 0.0
        %1149 = vmatpush.msra.mxu0 0.0
        %1150 = vmatpush.msra.mxu0 0.0
        %1151 = vmatpush.msra.mxu0 0.0
        %1152 = vmatpush.msra.mxu0 0.0
        %1153 = vmatpush.msra.mxu0 0.0
        %1154 = vmatpush.msra.mxu0 0.0
        %1155 = vmatpush.msra.mxu0 0.0
        %1156 = vmatpush.msra.mxu0 %v1136
        %1157 = vmatmul.f32.gmra.mxu0 %v1139
        %v1158 = vpop.f32.mrf.mxu0
        %v1159 = vadd.f32 0.0, %v1158
        %1160 = vdwg.mxu0
        %1162 = vrot.lane.b32.xlu0 %v1029, 32
        %v1163 = vpop.permute.xlu0 %1162
        %1166 = vrot.lane.b32.xlu0 %v1094, 64
        %v1167 = vpop.permute.xlu0 %1166
        %1170 = vrot.lane.b32.xlu0 %v1159, 96
        %v1171 = vpop.permute.xlu0 %1170
        %v1173 = vsel %vm627, %v963, %v1163
        %v1174 = vsel %vm502, %v1173, %v1167
        %v1175 = vsel %vm899, %v1174, %v1171
        %1176 = vst [vmem:[%s483 + $0x8] sm:$0xff] %v1175
        %s1177 = sand.u32 %s243, 1
        %s1178 = scalar_lea.sflag [#allocation7], %s1177
        %s1179 = sand.u32 %s243, 1
        %s1180 = smul.addr %s1179, 16
        %s1181 = scalar_lea.vmem [#allocation16], %s1180
        // Predicated region
        $region81: #{tpu_custom_call.1} parent=55 // pred_check
          %p1182 = pneg %p253
        $region82: #{tpu_custom_call.1} parent=55 // pred_check_branch
          %1184 = sbr.rel (%p1182) target = $region84
        $region83: #{tpu_custom_call.1} parent=55 // pred_region
          %s1185 = smul.u32 2, %s31
          %1187 = vsyncadd %s1178, 0
          %s1188 = smul.addr %s1185, 8
          %s1189 = scalar_lea.hbm %s9, %s1188
          %s1190 = sshll.u32 %s1181, 4
          %s1191 = int_to_ptr.vmem [resolvable:$true] %s1190
          %s1192 = sshll.u32 %s1189, 4
          %s1193 = int_to_ptr.hbm [resolvable:$true] %s1192
          %1198 = dma.vmem_to_hbm [thread:$0]  %s1191, 256, %s1193, %s1178, 128, 128, 8
        $region84: #{tpu_custom_call.1} parent=55 // pred_fallthru
          _
      $region56: #{tpu_custom_call.1} parent=5 // pred_fallthru
        _
      %p1199 = scmp.le.s32.totalorder 2, %s26
      // Predicated region
      $region85: #{tpu_custom_call.1} parent=5 // pred_check
        %p1200 = pneg %p1199
      $region86: #{tpu_custom_call.1} parent=5 // pred_check_branch
        %1202 = sbr.rel (%p1200) target = $region88
      $region87: #{tpu_custom_call.1} parent=5 // pred_region
        %s1203 = ssub.s32 %s26, 2
        // Predicated region
        $region89: #{tpu_custom_call.1} parent=87 // pred_check
          %p1204 = pneg %p259
        $region90: #{tpu_custom_call.1} parent=87 // pred_check_branch
          %1206 = sbr.rel (%p1204) target = $region92
        $region91: #{tpu_custom_call.1} parent=87 // pred_region
          %s1207 = sand.u32 %s244, 1
          %s1208 = scalar_lea.sflag [#allocation7], %s1207
          %s1209 = sand.u32 %s244, 1
          %s1210 = smul.addr %s1209, 16
          %s1211 = scalar_lea.vmem [#allocation16], %s1210
          %1213 = dma.done %s1208, 256
        $region92: #{tpu_custom_call.1} parent=87 // pred_fallthru
          _
      $region88: #{tpu_custom_call.1} parent=5 // pred_fallthru
        _
    $region6: #{tpu_custom_call.1} parent=1 // loop_footer
      %s30 = sadd.s32 1, %s26
    $region7: #{tpu_custom_call.1} parent=1 // loop_footer_branch
      %25 = sbr.rel target = $region3
    $region8: #{tpu_custom_call.1} parent=1 // loop_exit
      _
    %1214 = vsyncpa [#allocation6], 1
    %s1215 = scalar_lea.sflag [#allocation6], 1
    %1216 = vsyncpa %s1215, 1
    %1217 = vsyncpa [#allocation9], 1
    %s1218 = scalar_lea.sflag [#allocation9], 1
    %1219 = vsyncpa %s1218, 1
    %1220 = vsyncpa [#allocation12], 1
    %1221 = vsyncpa [#allocation15], 1
    %1222 = vsyncpa [#allocation7], 1
    %s1223 = scalar_lea.sflag [#allocation7], 1
    %1224 = vsyncpa %s1223, 1

</llo_original>
